<compile_context>
chip_gen: v5e
topology: v5e:2x2
jax: 0.10.0
libtpu: 0.0.40
codegen_flags: <defaults>
</compile_context>

<pallas_src>
import jax
import jax.numpy as jnp
from jax.experimental import pallas as pl
from jax.experimental.pallas import tpu as pltpu

KSIZE = 31
PAD = 15
NUM_SEG_MAPS = 7
MAX_TILE_B = 32  # bound on unrolled per-row-tile IR (row-pass matmul loop)


def _rsum(x):
    """(tile_b, H, W) -> (tile_b, 1): reduce H (sublanes, VALU) first, then one lane reduce."""
    return jnp.sum(jnp.sum(x, axis=1), axis=-1, keepdims=True)


def _make_kernel(num_scales, h_valid):
    """Kernel factory. Args: mask, pred_0..S-1, ph, pw, bce_out, wiou_out, weit_scratch."""

    def kernel(*refs):
        mask_ref = refs[0]
        pred_refs = refs[1:1 + num_scales]
        ph_ref = refs[1 + num_scales]
        pw_ref = refs[2 + num_scales]
        bce_ref = refs[3 + num_scales]
        wiou_ref = refs[4 + num_scales]
        weit_ref = refs[5 + num_scales]

        tile_b, H, W = mask_ref.shape

        mask_in = mask_ref[...]
        mask = mask_in.astype(jnp.float32)       # (TILE_B, H, W) f32 for elementwise math
        mask16 = mask_in.astype(jnp.bfloat16)    # exact for binary {0,1} masks

        ph = ph_ref[...]                         # (H, H) bf16 band-of-ones (half-width 15)
        pw = pw_ref[...]                         # (W, W) bf16 band-of-ones

        # Row-validity multiplier, only when H was padded up to a sublane multiple.
        if h_valid != H:
            row_ids = jax.lax.broadcasted_iota(jnp.int32, (H, W), 0)
            valid = (row_ids < h_valid).astype(jnp.float32)     # (H, W)
        else:
            valid = None

        # ---- 31x31 zero-padded box sum (F.avg_pool2d, count_include_pad=True), on the MXU ----
        # Column pass: one big 2-D matmul, contraction over W (lanes). H % 8 == 0 guarantees the
        # (tile_b, H, W) -> (tile_b*H, W) reshape is layout-preserving.
        col = jnp.dot(mask16.reshape(tile_b * H, W), pw,
                      preferred_element_type=jnp.float32)        # (TILE_B*H, W)
        col16 = col.astype(jnp.bfloat16).reshape(tile_b, H, W)   # integer sums <= 31 -> exact
        # Row pass: unrolled 2-D matmuls reusing the single resident ph (no (tile_b,H,H) broadcast
        # materialized). weit is written straight into VMEM scratch and shared by all scales.
        inv_k2 = 1.0 / float(KSIZE * KSIZE)
        for b in range(tile_b):
            pooled_b = jnp.dot(ph, col16[b], preferred_element_type=jnp.float32)   # (H, W)
            w_b = 1.0 + 5.0 * jnp.abs(pooled_b * inv_k2 - mask[b])
            if valid is not None:
                w_b = w_b * valid                 # zero weight on padded rows
            weit_ref[b] = w_b

        weit = weit_ref[...]                      # (TILE_B, H, W)
        mw = mask * weit
        mw_sum = _rsum(mw)                        # (TILE_B, 1)

        inv_hw = 1.0 / float(h_valid * W)

        bce_cols = []
        wiou_cols = []
        for k in range(num_scales):
            pred = pred_refs[k][...].astype(jnp.float32)          # (TILE_B, H, W)

            # 3 EUP transcendentals per element per scale: exp, log, approx-recip.
            e = jnp.exp(-jnp.abs(pred))          # shared by the BCE softplus and the sigmoid
            one_plus_e = 1.0 + e                 # hoisted: feeds both log() and reciprocal()

            # Numerically-stable BCE-with-logits (matches torch); the reduction='mean' quirk is
            # handled in the wrapper (per-image mean here, mean over B outside).
            bce = jnp.maximum(pred, 0.0) - pred * mask + jnp.log(one_plus_e)
            if valid is not None:
                bce = bce * valid
            bce_cols.append(_rsum(bce) * inv_hw)                  # (TILE_B, 1)

            # Sigmoid from the same e: approx EUP reciprocal + one VALU Newton step (near-exact).
            r0 = pl.reciprocal(one_plus_e, approx=True)
            r = r0 * (2.0 - one_plus_e * r0)
            sig = jnp.where(pred >= 0.0, r, e * r)

            inter = _rsum(sig * mw)                               # (TILE_B, 1)
            union = _rsum(sig * weit) + mw_sum
            wiou_cols.append(1.0 - (inter + 1.0) / (union - inter + 1.0))

        # One lane-contiguous store per output per tile (instead of 2*S width-1 column stores).
        bce_ref[...] = jnp.concatenate(bce_cols, axis=-1)[None]    # (1, TILE_B, S)
        wiou_ref[...] = jnp.concatenate(wiou_cols, axis=-1)[None]

    return kernel


def _pick_tile_b(B, H, W, S, budget_bytes, input_bytes):
    """Rows per grid step so double-buffered inputs + f32 working set fit the VMEM budget."""
    per_b = (1 + S) * H * W * input_bytes * 2   # mask + S preds, double-buffered, input dtype
    per_b += 10 * H * W * 4                     # f32 working set (weit scratch, col, pred, e, ...)
    fixed = 2 * 2 * (H * H + W * W)             # double-buffered bf16 ph / pw blocks
    fixed += 64 * 1024                          # outputs + slack
    tile = (budget_bytes - fixed) // max(per_b, 1)
    return int(max(1, min(B, tile)))


def multi_scale_iou(targets, input_full, input_full_cnn=None, input_full_trans=None,
                    input_1_2=None, input_1_4=None, input_1_8=None, input_1_16=None,
                    *, tile_b=None, compute_all_scales=False, cast_inputs_to_bf16=True):
    """JAX/Pallas equivalent of MultiScaleIoU.forward. Returns 1 - loss_1_1 (scalar f32)."""
    preds = (input_full, input_full_cnn, input_full_trans,
             input_1_2, input_1_4, input_1_8, input_1_16)
    if not compute_all_scales:
        # Only loss_1_1 reaches the return value; scales 1..6 only feed self.loss_mat in torch.
        preds = preds[:1]
    S = len(preds)

    N, C, H, W = targets.shape
    B = N * C
    h_pad = ((H + 7) // 8) * 8   # sublane alignment for layout-preserving in-kernel reshapes

    in_dtype = jnp.bfloat16 if cast_inputs_to_bf16 else jnp.float32
    in_bytes = jnp.dtype(in_dtype).itemsize

    # Per-generation VMEM: v7x 64 MiB/TC, v5e/v6e 128 MiB. Align tile budget with compiler limit.
    try:
        vmem_cap = int(pltpu.get_tpu_info().vmem_capacity_bytes)
    except Exception:
        vmem_cap = 64 * 1024 * 1024
    vmem_limit = int(min((vmem_cap * 3) // 4, 96 * 1024 * 1024))   # ~48 MiB v7x, ~96 MiB v5e/v6e
    budget = max(vmem_limit - 6 * 1024 * 1024, 8 * 1024 * 1024)    # headroom for the compiler

    if tile_b is None:
        tile_b = _pick_tile_b(B, h_pad, W, S, budget, in_bytes)
    tile_b = int(max(1, min(tile_b, B, MAX_TILE_B)))
    if B >= 2:
        tile_b = min(tile_b, -(-B // 2))   # num_tiles >= 2: shard across v7x's 2 TensorCores

    num_tiles = -(-B // tile_b)
    b_pad = num_tiles * tile_b

    # bf16 in HBM halves streamed bytes (exact for binary masks; small numeric change for logits).
    mask = targets.reshape(B, H, W).astype(in_dtype)
    pred_list = [p.reshape(B, H, W).astype(in_dtype) for p in preds]
    if b_pad != B or h_pad != H:
        padw = ((0, b_pad - B), (0, h_pad - H), (0, 0))
        mask = jnp.pad(mask, padw)
        pred_list = [jnp.pad(p, padw) for p in pred_list]

    # Banded all-ones matrices implementing the 31x31 zero-padded box sum (bf16 exact: 0/1).
    ih = jnp.arange(h_pad)
    iw = jnp.arange(W)
    ph = (jnp.abs(ih[:, None] - ih[None, :]) <= PAD).astype(jnp.bfloat16)   # (h_pad, h_pad)
    pw = (jnp.abs(iw[:, None] - iw[None, :]) <= PAD).astype(jnp.bfloat16)   # (W, W)

    row_spec = pl.BlockSpec((tile_b, h_pad, W), lambda i: (i, 0, 0))
    in_specs = [row_spec] * (1 + S) + [
        pl.BlockSpec((h_pad, h_pad), lambda i: (0, 0)),
        pl.BlockSpec((W, W), lambda i: (0, 0)),
    ]
    out_specs = [pl.BlockSpec((1, tile_b, S), lambda i: (i, 0, 0))] * 2
    out_shape = [jax.ShapeDtypeStruct((num_tiles, tile_b, S), jnp.float32)] * 2

    bce_t, wiou_t = pl.pallas_call(
        _make_kernel(S, H),
        grid=(num_tiles,),
        in_specs=in_specs,
        out_specs=out_specs,
        out_shape=out_shape,
        scratch_shapes=[pltpu.VMEM((tile_b, h_pad, W), jnp.float32)],   # weit, shared by scales
        compiler_params=pltpu.CompilerParams(
            dimension_semantics=("parallel",),
            vmem_limit_bytes=vmem_limit,
        ),
    )(mask, *pred_list, ph, pw)

    bce = bce_t.reshape(b_pad, S)[:B]     # per-(n,c) mean BCE, per scale
    wiou = wiou_t.reshape(b_pad, S)[:B]   # per-(n,c) weighted-IoU term, per scale

    # Per-scale loss = scalar-mean wbce (legacy reduce='none' -> 'mean' quirk) + mean-over-B wiou.
    # TODO(synk): torch writes all 7 per-scale losses into self.loss_mat (mutable CUDA module
    # state); that in-place side effect has no functional JAX equivalent — only the returned
    # scalar is reproduced (hence compute_all_scales defaults to False).
    loss_mat = jnp.mean(bce, axis=0) + jnp.mean(wiou, axis=0)   # (S,) == self.loss_mat[:S]
    return 1.0 - loss_mat[0]


# ------------------------- pure-JAX f32 reference (for sanity check) -------------------------
def _avg_pool_31(mask_f32):
    """(B, H, W) -> (B, H, W): 31x31 zero-padded average pool, count_include_pad=True."""
    x = mask_f32[:, None, :, :]
    k = jnp.ones((1, 1, KSIZE, KSIZE), jnp.float32) / float(KSIZE * KSIZE)
    y = jax.lax.conv_general_dilated(
        x, k, window_strides=(1, 1), padding=[(PAD, PAD), (PAD, PAD)],
        dimension_numbers=("NCHW", "OIHW", "NCHW"))
    return y[:, 0]


def _reference(targets, preds):
    N, C, H, W = targets.shape
    B = N * C
    mask = targets.reshape(B, H, W).astype(jnp.float32)
    avg = _avg_pool_31(mask)
    weit = 1.0 + 5.0 * jnp.abs(avg - mask)
    x = preds[0].reshape(B, H, W).astype(jnp.float32)
    bce = jnp.maximum(x, 0.0) - x * mask + jnp.log1p(jnp.exp(-jnp.abs(x)))
    wbce = jnp.mean(bce)                       # legacy reduce='none' -> reduction='mean' quirk
    sig = jax.nn.sigmoid(x)
    inter = jnp.sum(sig * mask * weit, axis=(1, 2))
    union = jnp.sum((sig + mask) * weit, axis=(1, 2))
    wiou = 1.0 - (inter + 1.0) / (union - inter + 1.0)
    return 1.0 - (wbce + jnp.mean(wiou))


if __name__ == "__main__":
    key = jax.random.PRNGKey(0)
    N, C, Hs, Ws = 2, 4, 32, 32   # H,W > 2*PAD+1 keeps the box filter non-trivial; H%8==0
    keys = jax.random.split(key, 8)

    targets = jax.random.bernoulli(keys[0], p=0.5, shape=(N, C, Hs, Ws)).astype(jnp.float32)
    preds = [jax.random.normal(k, (N, C, Hs, Ws), dtype=jnp.float32) for k in keys[1:]]

    # Full 7-scale path (exercises the in-kernel scale loop, auto tile sizing, grid >= 2 tiles).
    out_full = multi_scale_iou(targets, *preds, compute_all_scales=True)
    # Default fast path (only loss_1_1 reaches the return value).
    out_fast = multi_scale_iou(targets, *preds)
    out_full, out_fast = jax.block_until_ready((out_full, out_fast))

    ref = jax.block_until_ready(_reference(targets, preds))
    assert out_full.shape == () and out_full.dtype == jnp.float32
    assert abs(float(out_full) - float(ref)) < 3e-2
    assert abs(float(out_fast) - float(ref)) < 3e-2

    # Non-multiple-of-8 spatial size exercises the padded-row masking path.
    tgt2 = jax.random.bernoulli(keys[1], p=0.5, shape=(2, 1, 20, 20)).astype(jnp.float32)
    prd2 = [jax.random.normal(k, (2, 1, 20, 20), dtype=jnp.float32) for k in keys[:7]]
    out2 = jax.block_until_ready(multi_scale_iou(tgt2, *prd2))
    ref2 = jax.block_until_ready(_reference(tgt2, prd2))
    assert abs(float(out2) - float(ref2)) < 3e-2

    print("KERNEL_OK")
</pallas_src>

<mosaic_0001>
module attributes {stable_mosaic.version = 11 : i64} {
  func.func @kernel(%arg0: i32, %arg1: memref<4x32x32xbf16, #tpu.memory_space<vmem>>, %arg2: memref<4x32x32xbf16, #tpu.memory_space<vmem>>, %arg3: memref<4x32x32xbf16, #tpu.memory_space<vmem>>, %arg4: memref<4x32x32xbf16, #tpu.memory_space<vmem>>, %arg5: memref<4x32x32xbf16, #tpu.memory_space<vmem>>, %arg6: memref<4x32x32xbf16, #tpu.memory_space<vmem>>, %arg7: memref<4x32x32xbf16, #tpu.memory_space<vmem>>, %arg8: memref<4x32x32xbf16, #tpu.memory_space<vmem>>, %arg9: memref<32x32xbf16, #tpu.memory_space<vmem>>, %arg10: memref<32x32xbf16, #tpu.memory_space<vmem>>, %arg11: memref<1x4x7xf32, #tpu.memory_space<vmem>>, %arg12: memref<1x4x7xf32, #tpu.memory_space<vmem>>, %arg13: memref<4x32x32xf32, #tpu.memory_space<vmem>>) attributes {dimension_semantics = [#tpu.dimension_semantics<parallel>], iteration_bounds = array<i64: 2>, scalar_prefetch = 0 : i64, scratch_operands = 1 : i64, tpu.core_type = #tpu.core_type<tc>, window_params = [{transform_indices = @transform_0, window_bounds = array<i64: 4, 32, 32>}, {transform_indices = @transform_1, window_bounds = array<i64: 4, 32, 32>}, {transform_indices = @transform_2, window_bounds = array<i64: 4, 32, 32>}, {transform_indices = @transform_3, window_bounds = array<i64: 4, 32, 32>}, {transform_indices = @transform_4, window_bounds = array<i64: 4, 32, 32>}, {transform_indices = @transform_5, window_bounds = array<i64: 4, 32, 32>}, {transform_indices = @transform_6, window_bounds = array<i64: 4, 32, 32>}, {transform_indices = @transform_7, window_bounds = array<i64: 4, 32, 32>}, {pipeline_mode = #tpu.pipeline_mode<synchronous>, transform_indices = @transform_8, window_bounds = array<i64: 32, 32>}, {pipeline_mode = #tpu.pipeline_mode<synchronous>, transform_indices = @transform_9, window_bounds = array<i64: 32, 32>}, {transform_indices = @transform_10, window_bounds = array<i64: 1, 4, 7>}, {transform_indices = @transform_11, window_bounds = array<i64: 1, 4, 7>}]} {
    %c0 = arith.constant 0 : index
    %c0_0 = arith.constant 0 : index
    %c0_1 = arith.constant 0 : index
    %0 = vector.load %arg1[%c0, %c0_0, %c0_1] : memref<4x32x32xbf16, #tpu.memory_space<vmem>>, vector<4x32x32xbf16>
    %1 = arith.extf %0 : vector<4x32x32xbf16> to vector<4x32x32xf32>
    %c0_2 = arith.constant 0 : index
    %c0_3 = arith.constant 0 : index
    %2 = vector.load %arg9[%c0_2, %c0_3] : memref<32x32xbf16, #tpu.memory_space<vmem>>, vector<32x32xbf16>
    %c0_4 = arith.constant 0 : index
    %c0_5 = arith.constant 0 : index
    %3 = vector.load %arg10[%c0_4, %c0_5] : memref<32x32xbf16, #tpu.memory_space<vmem>>, vector<32x32xbf16>
    %4 = vector.shape_cast %0 : vector<4x32x32xbf16> to vector<128x32xbf16>
    %cst = arith.constant dense<0.000000e+00> : vector<128x32xf32>
    %5 = tpu.matmul %4, %3, %cst {dimension_numbers = #tpu.dot_dimension_numbers<[1], [0], [0], [1], [0, 0, 1, 1], [], []>} : vector<128x32xbf16>, vector<32x32xbf16>, vector<128x32xf32> -> vector<128x32xf32>
    %6 = arith.truncf %5 : vector<128x32xf32> to vector<128x32xbf16>
    %7 = vector.shape_cast %6 : vector<128x32xbf16> to vector<4x32x32xbf16>
    %8 = vector.extract_strided_slice %7 {offsets = [0, 0, 0], sizes = [1, 32, 32], strides = [1, 1, 1]} : vector<4x32x32xbf16> to vector<1x32x32xbf16>
    %9 = vector.shape_cast %8 : vector<1x32x32xbf16> to vector<32x32xbf16>
    %cst_6 = arith.constant dense<0.000000e+00> : vector<32x32xf32>
    %10 = tpu.matmul %2, %9, %cst_6 {dimension_numbers = #tpu.dot_dimension_numbers<[1], [0], [0], [1], [0, 0, 1, 1], [], []>} : vector<32x32xbf16>, vector<32x32xbf16>, vector<32x32xf32> -> vector<32x32xf32>
    %cst_7 = arith.constant 0.00104058278 : f32
    %11 = vector.broadcast %cst_7 : f32 to vector<32x32xf32>
    %12 = arith.mulf %10, %11 : vector<32x32xf32>
    %13 = vector.extract_strided_slice %1 {offsets = [0, 0, 0], sizes = [1, 32, 32], strides = [1, 1, 1]} : vector<4x32x32xf32> to vector<1x32x32xf32>
    %14 = vector.shape_cast %13 : vector<1x32x32xf32> to vector<32x32xf32>
    %15 = arith.subf %12, %14 : vector<32x32xf32>
    %16 = math.absf %15 : vector<32x32xf32>
    %cst_8 = arith.constant 5.000000e+00 : f32
    %17 = vector.broadcast %cst_8 : f32 to vector<32x32xf32>
    %18 = arith.mulf %17, %16 : vector<32x32xf32>
    %cst_9 = arith.constant 1.000000e+00 : f32
    %19 = vector.broadcast %cst_9 : f32 to vector<32x32xf32>
    %20 = arith.addf %19, %18 : vector<32x32xf32>
    %c0_10 = arith.constant 0 : index
    %c0_11 = arith.constant 0 : index
    %c0_12 = arith.constant 0 : index
    %21 = vector.load %arg13[%c0_10, %c0_11, %c0_12] : memref<4x32x32xf32, #tpu.memory_space<vmem>>, vector<1x32x32xf32>
    %22 = vector.shape_cast %21 : vector<1x32x32xf32> to vector<32x32xf32>
    %23 = vector.shape_cast %20 : vector<32x32xf32> to vector<1x32x32xf32>
    tpu.vector_store %arg13[%c0_10, %c0_11, %c0_12], %23 {strides = array<i32>} : memref<4x32x32xf32, #tpu.memory_space<vmem>>, vector<1x32x32xf32>,
    %24 = vector.extract_strided_slice %7 {offsets = [1, 0, 0], sizes = [1, 32, 32], strides = [1, 1, 1]} : vector<4x32x32xbf16> to vector<1x32x32xbf16>
    %25 = vector.shape_cast %24 : vector<1x32x32xbf16> to vector<32x32xbf16>
    %cst_13 = arith.constant dense<0.000000e+00> : vector<32x32xf32>
    %26 = tpu.matmul %2, %25, %cst_13 {dimension_numbers = #tpu.dot_dimension_numbers<[1], [0], [0], [1], [0, 0, 1, 1], [], []>} : vector<32x32xbf16>, vector<32x32xbf16>, vector<32x32xf32> -> vector<32x32xf32>
    %cst_14 = arith.constant 0.00104058278 : f32
    %27 = vector.broadcast %cst_14 : f32 to vector<32x32xf32>
    %28 = arith.mulf %26, %27 : vector<32x32xf32>
    %29 = vector.extract_strided_slice %1 {offsets = [1, 0, 0], sizes = [1, 32, 32], strides = [1, 1, 1]} : vector<4x32x32xf32> to vector<1x32x32xf32>
    %30 = vector.shape_cast %29 : vector<1x32x32xf32> to vector<32x32xf32>
    %31 = arith.subf %28, %30 : vector<32x32xf32>
    %32 = math.absf %31 : vector<32x32xf32>
    %cst_15 = arith.constant 5.000000e+00 : f32
    %33 = vector.broadcast %cst_15 : f32 to vector<32x32xf32>
    %34 = arith.mulf %33, %32 : vector<32x32xf32>
    %cst_16 = arith.constant 1.000000e+00 : f32
    %35 = vector.broadcast %cst_16 : f32 to vector<32x32xf32>
    %36 = arith.addf %35, %34 : vector<32x32xf32>
    %c1 = arith.constant 1 : index
    %c0_17 = arith.constant 0 : index
    %c0_18 = arith.constant 0 : index
    %37 = vector.load %arg13[%c1, %c0_17, %c0_18] : memref<4x32x32xf32, #tpu.memory_space<vmem>>, vector<1x32x32xf32>
    %38 = vector.shape_cast %37 : vector<1x32x32xf32> to vector<32x32xf32>
    %39 = vector.shape_cast %36 : vector<32x32xf32> to vector<1x32x32xf32>
    tpu.vector_store %arg13[%c1, %c0_17, %c0_18], %39 {strides = array<i32>} : memref<4x32x32xf32, #tpu.memory_space<vmem>>, vector<1x32x32xf32>,
    %40 = vector.extract_strided_slice %7 {offsets = [2, 0, 0], sizes = [1, 32, 32], strides = [1, 1, 1]} : vector<4x32x32xbf16> to vector<1x32x32xbf16>
    %41 = vector.shape_cast %40 : vector<1x32x32xbf16> to vector<32x32xbf16>
    %cst_19 = arith.constant dense<0.000000e+00> : vector<32x32xf32>
    %42 = tpu.matmul %2, %41, %cst_19 {dimension_numbers = #tpu.dot_dimension_numbers<[1], [0], [0], [1], [0, 0, 1, 1], [], []>} : vector<32x32xbf16>, vector<32x32xbf16>, vector<32x32xf32> -> vector<32x32xf32>
    %cst_20 = arith.constant 0.00104058278 : f32
    %43 = vector.broadcast %cst_20 : f32 to vector<32x32xf32>
    %44 = arith.mulf %42, %43 : vector<32x32xf32>
    %45 = vector.extract_strided_slice %1 {offsets = [2, 0, 0], sizes = [1, 32, 32], strides = [1, 1, 1]} : vector<4x32x32xf32> to vector<1x32x32xf32>
    %46 = vector.shape_cast %45 : vector<1x32x32xf32> to vector<32x32xf32>
    %47 = arith.subf %44, %46 : vector<32x32xf32>
    %48 = math.absf %47 : vector<32x32xf32>
    %cst_21 = arith.constant 5.000000e+00 : f32
    %49 = vector.broadcast %cst_21 : f32 to vector<32x32xf32>
    %50 = arith.mulf %49, %48 : vector<32x32xf32>
    %cst_22 = arith.constant 1.000000e+00 : f32
    %51 = vector.broadcast %cst_22 : f32 to vector<32x32xf32>
    %52 = arith.addf %51, %50 : vector<32x32xf32>
    %c2 = arith.constant 2 : index
    %c0_23 = arith.constant 0 : index
    %c0_24 = arith.constant 0 : index
    %53 = vector.load %arg13[%c2, %c0_23, %c0_24] : memref<4x32x32xf32, #tpu.memory_space<vmem>>, vector<1x32x32xf32>
    %54 = vector.shape_cast %53 : vector<1x32x32xf32> to vector<32x32xf32>
    %55 = vector.shape_cast %52 : vector<32x32xf32> to vector<1x32x32xf32>
    tpu.vector_store %arg13[%c2, %c0_23, %c0_24], %55 {strides = array<i32>} : memref<4x32x32xf32, #tpu.memory_space<vmem>>, vector<1x32x32xf32>,
    %56 = vector.extract_strided_slice %7 {offsets = [3, 0, 0], sizes = [1, 32, 32], strides = [1, 1, 1]} : vector<4x32x32xbf16> to vector<1x32x32xbf16>
    %57 = vector.shape_cast %56 : vector<1x32x32xbf16> to vector<32x32xbf16>
    %cst_25 = arith.constant dense<0.000000e+00> : vector<32x32xf32>
    %58 = tpu.matmul %2, %57, %cst_25 {dimension_numbers = #tpu.dot_dimension_numbers<[1], [0], [0], [1], [0, 0, 1, 1], [], []>} : vector<32x32xbf16>, vector<32x32xbf16>, vector<32x32xf32> -> vector<32x32xf32>
    %cst_26 = arith.constant 0.00104058278 : f32
    %59 = vector.broadcast %cst_26 : f32 to vector<32x32xf32>
    %60 = arith.mulf %58, %59 : vector<32x32xf32>
    %61 = vector.extract_strided_slice %1 {offsets = [3, 0, 0], sizes = [1, 32, 32], strides = [1, 1, 1]} : vector<4x32x32xf32> to vector<1x32x32xf32>
    %62 = vector.shape_cast %61 : vector<1x32x32xf32> to vector<32x32xf32>
    %63 = arith.subf %60, %62 : vector<32x32xf32>
    %64 = math.absf %63 : vector<32x32xf32>
    %cst_27 = arith.constant 5.000000e+00 : f32
    %65 = vector.broadcast %cst_27 : f32 to vector<32x32xf32>
    %66 = arith.mulf %65, %64 : vector<32x32xf32>
    %cst_28 = arith.constant 1.000000e+00 : f32
    %67 = vector.broadcast %cst_28 : f32 to vector<32x32xf32>
    %68 = arith.addf %67, %66 : vector<32x32xf32>
    %c3 = arith.constant 3 : index
    %c0_29 = arith.constant 0 : index
    %c0_30 = arith.constant 0 : index
    %69 = vector.load %arg13[%c3, %c0_29, %c0_30] : memref<4x32x32xf32, #tpu.memory_space<vmem>>, vector<1x32x32xf32>
    %70 = vector.shape_cast %69 : vector<1x32x32xf32> to vector<32x32xf32>
    %71 = vector.shape_cast %68 : vector<32x32xf32> to vector<1x32x32xf32>
    tpu.vector_store %arg13[%c3, %c0_29, %c0_30], %71 {strides = array<i32>} : memref<4x32x32xf32, #tpu.memory_space<vmem>>, vector<1x32x32xf32>,
    %c0_31 = arith.constant 0 : index
    %c0_32 = arith.constant 0 : index
    %c0_33 = arith.constant 0 : index
    %72 = vector.load %arg13[%c0_31, %c0_32, %c0_33] : memref<4x32x32xf32, #tpu.memory_space<vmem>>, vector<4x32x32xf32>
    %73 = arith.mulf %1, %72 : vector<4x32x32xf32>
    %cst_34 = arith.constant dense<0.000000e+00> : vector<4x32xf32>
    %74 = vector.multi_reduction <add>, %73, %cst_34 [1] : vector<4x32x32xf32> to vector<4x32xf32>
    %cst_35 = arith.constant dense<0.000000e+00> : vector<4xf32>
    %75 = vector.multi_reduction <add>, %74, %cst_35 [1] : vector<4x32xf32> to vector<4xf32>
    %76 = vector.shape_cast %75 : vector<4xf32> to vector<4x1xf32>
    %c0_36 = arith.constant 0 : index
    %c0_37 = arith.constant 0 : index
    %c0_38 = arith.constant 0 : index
    %77 = vector.load %arg2[%c0_36, %c0_37, %c0_38] : memref<4x32x32xbf16, #tpu.memory_space<vmem>>, vector<4x32x32xbf16>
    %78 = arith.extf %77 : vector<4x32x32xbf16> to vector<4x32x32xf32>
    %79 = math.absf %78 : vector<4x32x32xf32>
    %cst_39 = arith.constant 0.000000e+00 : f32
    %80 = vector.broadcast %cst_39 : f32 to vector<4x32x32xf32>
    %81 = arith.subf %80, %79 : vector<4x32x32xf32>
    %82 = math.exp %81 : vector<4x32x32xf32>
    %cst_40 = arith.constant 1.000000e+00 : f32
    %83 = vector.broadcast %cst_40 : f32 to vector<4x32x32xf32>
    %84 = arith.addf %83, %82 : vector<4x32x32xf32>
    %cst_41 = arith.constant 0.000000e+00 : f32
    %85 = vector.broadcast %cst_41 : f32 to vector<4x32x32xf32>
    %86 = arith.maximumf %78, %85 : vector<4x32x32xf32>
    %87 = arith.mulf %78, %1 : vector<4x32x32xf32>
    %88 = arith.subf %86, %87 : vector<4x32x32xf32>
    %89 = math.log %84 : vector<4x32x32xf32>
    %90 = arith.addf %88, %89 : vector<4x32x32xf32>
    %cst_42 = arith.constant dense<0.000000e+00> : vector<4x32xf32>
    %91 = vector.multi_reduction <add>, %90, %cst_42 [1] : vector<4x32x32xf32> to vector<4x32xf32>
    %cst_43 = arith.constant dense<0.000000e+00> : vector<4xf32>
    %92 = vector.multi_reduction <add>, %91, %cst_43 [1] : vector<4x32xf32> to vector<4xf32>
    %93 = vector.shape_cast %92 : vector<4xf32> to vector<4x1xf32>
    %cst_44 = arith.constant 9.765625E-4 : f32
    %94 = vector.broadcast %cst_44 : f32 to vector<4x1xf32>
    %95 = arith.mulf %93, %94 : vector<4x1xf32>
    %96 = tpu.reciprocal %84 {approx = true} : vector<4x32x32xf32> -> vector<4x32x32xf32>
    %97 = arith.mulf %84, %96 : vector<4x32x32xf32>
    %cst_45 = arith.constant 2.000000e+00 : f32
    %98 = vector.broadcast %cst_45 : f32 to vector<4x32x32xf32>
    %99 = arith.subf %98, %97 : vector<4x32x32xf32>
    %100 = arith.mulf %96, %99 : vector<4x32x32xf32>
    %cst_46 = arith.constant 0.000000e+00 : f32
    %101 = vector.broadcast %cst_46 : f32 to vector<4x32x32xf32>
    %102 = arith.cmpf oge, %78, %101 : vector<4x32x32xf32>
    %103 = arith.mulf %82, %100 : vector<4x32x32xf32>
    %104 = arith.select %102, %100, %103 : vector<4x32x32xi1>, vector<4x32x32xf32>
    %105 = arith.mulf %104, %73 : vector<4x32x32xf32>
    %cst_47 = arith.constant dense<0.000000e+00> : vector<4x32xf32>
    %106 = vector.multi_reduction <add>, %105, %cst_47 [1] : vector<4x32x32xf32> to vector<4x32xf32>
    %cst_48 = arith.constant dense<0.000000e+00> : vector<4xf32>
    %107 = vector.multi_reduction <add>, %106, %cst_48 [1] : vector<4x32xf32> to vector<4xf32>
    %108 = vector.shape_cast %107 : vector<4xf32> to vector<4x1xf32>
    %109 = arith.mulf %104, %72 : vector<4x32x32xf32>
    %cst_49 = arith.constant dense<0.000000e+00> : vector<4x32xf32>
    %110 = vector.multi_reduction <add>, %109, %cst_49 [1] : vector<4x32x32xf32> to vector<4x32xf32>
    %cst_50 = arith.constant dense<0.000000e+00> : vector<4xf32>
    %111 = vector.multi_reduction <add>, %110, %cst_50 [1] : vector<4x32xf32> to vector<4xf32>
    %112 = vector.shape_cast %111 : vector<4xf32> to vector<4x1xf32>
    %113 = arith.addf %112, %76 : vector<4x1xf32>
    %cst_51 = arith.constant 1.000000e+00 : f32
    %114 = vector.broadcast %cst_51 : f32 to vector<4x1xf32>
    %115 = arith.addf %108, %114 : vector<4x1xf32>
    %116 = arith.subf %113, %108 : vector<4x1xf32>
    %cst_52 = arith.constant 1.000000e+00 : f32
    %117 = vector.broadcast %cst_52 : f32 to vector<4x1xf32>
    %118 = arith.addf %116, %117 : vector<4x1xf32>
    %119 = arith.divf %115, %118 : vector<4x1xf32>
    %cst_53 = arith.constant 1.000000e+00 : f32
    %120 = vector.broadcast %cst_53 : f32 to vector<4x1xf32>
    %121 = arith.subf %120, %119 : vector<4x1xf32>
    %c0_54 = arith.constant 0 : index
    %c0_55 = arith.constant 0 : index
    %c0_56 = arith.constant 0 : index
    %122 = vector.load %arg3[%c0_54, %c0_55, %c0_56] : memref<4x32x32xbf16, #tpu.memory_space<vmem>>, vector<4x32x32xbf16>
    %123 = arith.extf %122 : vector<4x32x32xbf16> to vector<4x32x32xf32>
    %124 = math.absf %123 : vector<4x32x32xf32>
    %cst_57 = arith.constant 0.000000e+00 : f32
    %125 = vector.broadcast %cst_57 : f32 to vector<4x32x32xf32>
    %126 = arith.subf %125, %124 : vector<4x32x32xf32>
    %127 = math.exp %126 : vector<4x32x32xf32>
    %cst_58 = arith.constant 1.000000e+00 : f32
    %128 = vector.broadcast %cst_58 : f32 to vector<4x32x32xf32>
    %129 = arith.addf %128, %127 : vector<4x32x32xf32>
    %cst_59 = arith.constant 0.000000e+00 : f32
    %130 = vector.broadcast %cst_59 : f32 to vector<4x32x32xf32>
    %131 = arith.maximumf %123, %130 : vector<4x32x32xf32>
    %132 = arith.mulf %123, %1 : vector<4x32x32xf32>
    %133 = arith.subf %131, %132 : vector<4x32x32xf32>
    %134 = math.log %129 : vector<4x32x32xf32>
    %135 = arith.addf %133, %134 : vector<4x32x32xf32>
    %cst_60 = arith.constant dense<0.000000e+00> : vector<4x32xf32>
    %136 = vector.multi_reduction <add>, %135, %cst_60 [1] : vector<4x32x32xf32> to vector<4x32xf32>
    %cst_61 = arith.constant dense<0.000000e+00> : vector<4xf32>
    %137 = vector.multi_reduction <add>, %136, %cst_61 [1] : vector<4x32xf32> to vector<4xf32>
    %138 = vector.shape_cast %137 : vector<4xf32> to vector<4x1xf32>
    %cst_62 = arith.constant 9.765625E-4 : f32
    %139 = vector.broadcast %cst_62 : f32 to vector<4x1xf32>
    %140 = arith.mulf %138, %139 : vector<4x1xf32>
    %141 = tpu.reciprocal %129 {approx = true} : vector<4x32x32xf32> -> vector<4x32x32xf32>
    %142 = arith.mulf %129, %141 : vector<4x32x32xf32>
    %cst_63 = arith.constant 2.000000e+00 : f32
    %143 = vector.broadcast %cst_63 : f32 to vector<4x32x32xf32>
    %144 = arith.subf %143, %142 : vector<4x32x32xf32>
    %145 = arith.mulf %141, %144 : vector<4x32x32xf32>
    %cst_64 = arith.constant 0.000000e+00 : f32
    %146 = vector.broadcast %cst_64 : f32 to vector<4x32x32xf32>
    %147 = arith.cmpf oge, %123, %146 : vector<4x32x32xf32>
    %148 = arith.mulf %127, %145 : vector<4x32x32xf32>
    %149 = arith.select %147, %145, %148 : vector<4x32x32xi1>, vector<4x32x32xf32>
    %150 = arith.mulf %149, %73 : vector<4x32x32xf32>
    %cst_65 = arith.constant dense<0.000000e+00> : vector<4x32xf32>
    %151 = vector.multi_reduction <add>, %150, %cst_65 [1] : vector<4x32x32xf32> to vector<4x32xf32>
    %cst_66 = arith.constant dense<0.000000e+00> : vector<4xf32>
    %152 = vector.multi_reduction <add>, %151, %cst_66 [1] : vector<4x32xf32> to vector<4xf32>
    %153 = vector.shape_cast %152 : vector<4xf32> to vector<4x1xf32>
    %154 = arith.mulf %149, %72 : vector<4x32x32xf32>
    %cst_67 = arith.constant dense<0.000000e+00> : vector<4x32xf32>
    %155 = vector.multi_reduction <add>, %154, %cst_67 [1] : vector<4x32x32xf32> to vector<4x32xf32>
    %cst_68 = arith.constant dense<0.000000e+00> : vector<4xf32>
    %156 = vector.multi_reduction <add>, %155, %cst_68 [1] : vector<4x32xf32> to vector<4xf32>
    %157 = vector.shape_cast %156 : vector<4xf32> to vector<4x1xf32>
    %158 = arith.addf %157, %76 : vector<4x1xf32>
    %cst_69 = arith.constant 1.000000e+00 : f32
    %159 = vector.broadcast %cst_69 : f32 to vector<4x1xf32>
    %160 = arith.addf %153, %159 : vector<4x1xf32>
    %161 = arith.subf %158, %153 : vector<4x1xf32>
    %cst_70 = arith.constant 1.000000e+00 : f32
    %162 = vector.broadcast %cst_70 : f32 to vector<4x1xf32>
    %163 = arith.addf %161, %162 : vector<4x1xf32>
    %164 = arith.divf %160, %163 : vector<4x1xf32>
    %cst_71 = arith.constant 1.000000e+00 : f32
    %165 = vector.broadcast %cst_71 : f32 to vector<4x1xf32>
    %166 = arith.subf %165, %164 : vector<4x1xf32>
    %c0_72 = arith.constant 0 : index
    %c0_73 = arith.constant 0 : index
    %c0_74 = arith.constant 0 : index
    %167 = vector.load %arg4[%c0_72, %c0_73, %c0_74] : memref<4x32x32xbf16, #tpu.memory_space<vmem>>, vector<4x32x32xbf16>
    %168 = arith.extf %167 : vector<4x32x32xbf16> to vector<4x32x32xf32>
    %169 = math.absf %168 : vector<4x32x32xf32>
    %cst_75 = arith.constant 0.000000e+00 : f32
    %170 = vector.broadcast %cst_75 : f32 to vector<4x32x32xf32>
    %171 = arith.subf %170, %169 : vector<4x32x32xf32>
    %172 = math.exp %171 : vector<4x32x32xf32>
    %cst_76 = arith.constant 1.000000e+00 : f32
    %173 = vector.broadcast %cst_76 : f32 to vector<4x32x32xf32>
    %174 = arith.addf %173, %172 : vector<4x32x32xf32>
    %cst_77 = arith.constant 0.000000e+00 : f32
    %175 = vector.broadcast %cst_77 : f32 to vector<4x32x32xf32>
    %176 = arith.maximumf %168, %175 : vector<4x32x32xf32>
    %177 = arith.mulf %168, %1 : vector<4x32x32xf32>
    %178 = arith.subf %176, %177 : vector<4x32x32xf32>
    %179 = math.log %174 : vector<4x32x32xf32>
    %180 = arith.addf %178, %179 : vector<4x32x32xf32>
    %cst_78 = arith.constant dense<0.000000e+00> : vector<4x32xf32>
    %181 = vector.multi_reduction <add>, %180, %cst_78 [1] : vector<4x32x32xf32> to vector<4x32xf32>
    %cst_79 = arith.constant dense<0.000000e+00> : vector<4xf32>
    %182 = vector.multi_reduction <add>, %181, %cst_79 [1] : vector<4x32xf32> to vector<4xf32>
    %183 = vector.shape_cast %182 : vector<4xf32> to vector<4x1xf32>
    %cst_80 = arith.constant 9.765625E-4 : f32
    %184 = vector.broadcast %cst_80 : f32 to vector<4x1xf32>
    %185 = arith.mulf %183, %184 : vector<4x1xf32>
    %186 = tpu.reciprocal %174 {approx = true} : vector<4x32x32xf32> -> vector<4x32x32xf32>
    %187 = arith.mulf %174, %186 : vector<4x32x32xf32>
    %cst_81 = arith.constant 2.000000e+00 : f32
    %188 = vector.broadcast %cst_81 : f32 to vector<4x32x32xf32>
    %189 = arith.subf %188, %187 : vector<4x32x32xf32>
    %190 = arith.mulf %186, %189 : vector<4x32x32xf32>
    %cst_82 = arith.constant 0.000000e+00 : f32
    %191 = vector.broadcast %cst_82 : f32 to vector<4x32x32xf32>
    %192 = arith.cmpf oge, %168, %191 : vector<4x32x32xf32>
    %193 = arith.mulf %172, %190 : vector<4x32x32xf32>
    %194 = arith.select %192, %190, %193 : vector<4x32x32xi1>, vector<4x32x32xf32>
    %195 = arith.mulf %194, %73 : vector<4x32x32xf32>
    %cst_83 = arith.constant dense<0.000000e+00> : vector<4x32xf32>
    %196 = vector.multi_reduction <add>, %195, %cst_83 [1] : vector<4x32x32xf32> to vector<4x32xf32>
    %cst_84 = arith.constant dense<0.000000e+00> : vector<4xf32>
    %197 = vector.multi_reduction <add>, %196, %cst_84 [1] : vector<4x32xf32> to vector<4xf32>
    %198 = vector.shape_cast %197 : vector<4xf32> to vector<4x1xf32>
    %199 = arith.mulf %194, %72 : vector<4x32x32xf32>
    %cst_85 = arith.constant dense<0.000000e+00> : vector<4x32xf32>
    %200 = vector.multi_reduction <add>, %199, %cst_85 [1] : vector<4x32x32xf32> to vector<4x32xf32>
    %cst_86 = arith.constant dense<0.000000e+00> : vector<4xf32>
    %201 = vector.multi_reduction <add>, %200, %cst_86 [1] : vector<4x32xf32> to vector<4xf32>
    %202 = vector.shape_cast %201 : vector<4xf32> to vector<4x1xf32>
    %203 = arith.addf %202, %76 : vector<4x1xf32>
    %cst_87 = arith.constant 1.000000e+00 : f32
    %204 = vector.broadcast %cst_87 : f32 to vector<4x1xf32>
    %205 = arith.addf %198, %204 : vector<4x1xf32>
    %206 = arith.subf %203, %198 : vector<4x1xf32>
    %cst_88 = arith.constant 1.000000e+00 : f32
    %207 = vector.broadcast %cst_88 : f32 to vector<4x1xf32>
    %208 = arith.addf %206, %207 : vector<4x1xf32>
    %209 = arith.divf %205, %208 : vector<4x1xf32>
    %cst_89 = arith.constant 1.000000e+00 : f32
    %210 = vector.broadcast %cst_89 : f32 to vector<4x1xf32>
    %211 = arith.subf %210, %209 : vector<4x1xf32>
    %c0_90 = arith.constant 0 : index
    %c0_91 = arith.constant 0 : index
    %c0_92 = arith.constant 0 : index
    %212 = vector.load %arg5[%c0_90, %c0_91, %c0_92] : memref<4x32x32xbf16, #tpu.memory_space<vmem>>, vector<4x32x32xbf16>
    %213 = arith.extf %212 : vector<4x32x32xbf16> to vector<4x32x32xf32>
    %214 = math.absf %213 : vector<4x32x32xf32>
    %cst_93 = arith.constant 0.000000e+00 : f32
    %215 = vector.broadcast %cst_93 : f32 to vector<4x32x32xf32>
    %216 = arith.subf %215, %214 : vector<4x32x32xf32>
    %217 = math.exp %216 : vector<4x32x32xf32>
    %cst_94 = arith.constant 1.000000e+00 : f32
    %218 = vector.broadcast %cst_94 : f32 to vector<4x32x32xf32>
    %219 = arith.addf %218, %217 : vector<4x32x32xf32>
    %cst_95 = arith.constant 0.000000e+00 : f32
    %220 = vector.broadcast %cst_95 : f32 to vector<4x32x32xf32>
    %221 = arith.maximumf %213, %220 : vector<4x32x32xf32>
    %222 = arith.mulf %213, %1 : vector<4x32x32xf32>
    %223 = arith.subf %221, %222 : vector<4x32x32xf32>
    %224 = math.log %219 : vector<4x32x32xf32>
    %225 = arith.addf %223, %224 : vector<4x32x32xf32>
    %cst_96 = arith.constant dense<0.000000e+00> : vector<4x32xf32>
    %226 = vector.multi_reduction <add>, %225, %cst_96 [1] : vector<4x32x32xf32> to vector<4x32xf32>
    %cst_97 = arith.constant dense<0.000000e+00> : vector<4xf32>
    %227 = vector.multi_reduction <add>, %226, %cst_97 [1] : vector<4x32xf32> to vector<4xf32>
    %228 = vector.shape_cast %227 : vector<4xf32> to vector<4x1xf32>
    %cst_98 = arith.constant 9.765625E-4 : f32
    %229 = vector.broadcast %cst_98 : f32 to vector<4x1xf32>
    %230 = arith.mulf %228, %229 : vector<4x1xf32>
    %231 = tpu.reciprocal %219 {approx = true} : vector<4x32x32xf32> -> vector<4x32x32xf32>
    %232 = arith.mulf %219, %231 : vector<4x32x32xf32>
    %cst_99 = arith.constant 2.000000e+00 : f32
    %233 = vector.broadcast %cst_99 : f32 to vector<4x32x32xf32>
    %234 = arith.subf %233, %232 : vector<4x32x32xf32>
    %235 = arith.mulf %231, %234 : vector<4x32x32xf32>
    %cst_100 = arith.constant 0.000000e+00 : f32
    %236 = vector.broadcast %cst_100 : f32 to vector<4x32x32xf32>
    %237 = arith.cmpf oge, %213, %236 : vector<4x32x32xf32>
    %238 = arith.mulf %217, %235 : vector<4x32x32xf32>
    %239 = arith.select %237, %235, %238 : vector<4x32x32xi1>, vector<4x32x32xf32>
    %240 = arith.mulf %239, %73 : vector<4x32x32xf32>
    %cst_101 = arith.constant dense<0.000000e+00> : vector<4x32xf32>
    %241 = vector.multi_reduction <add>, %240, %cst_101 [1] : vector<4x32x32xf32> to vector<4x32xf32>
    %cst_102 = arith.constant dense<0.000000e+00> : vector<4xf32>
    %242 = vector.multi_reduction <add>, %241, %cst_102 [1] : vector<4x32xf32> to vector<4xf32>
    %243 = vector.shape_cast %242 : vector<4xf32> to vector<4x1xf32>
    %244 = arith.mulf %239, %72 : vector<4x32x32xf32>
    %cst_103 = arith.constant dense<0.000000e+00> : vector<4x32xf32>
    %245 = vector.multi_reduction <add>, %244, %cst_103 [1] : vector<4x32x32xf32> to vector<4x32xf32>
    %cst_104 = arith.constant dense<0.000000e+00> : vector<4xf32>
    %246 = vector.multi_reduction <add>, %245, %cst_104 [1] : vector<4x32xf32> to vector<4xf32>
    %247 = vector.shape_cast %246 : vector<4xf32> to vector<4x1xf32>
    %248 = arith.addf %247, %76 : vector<4x1xf32>
    %cst_105 = arith.constant 1.000000e+00 : f32
    %249 = vector.broadcast %cst_105 : f32 to vector<4x1xf32>
    %250 = arith.addf %243, %249 : vector<4x1xf32>
    %251 = arith.subf %248, %243 : vector<4x1xf32>
    %cst_106 = arith.constant 1.000000e+00 : f32
    %252 = vector.broadcast %cst_106 : f32 to vector<4x1xf32>
    %253 = arith.addf %251, %252 : vector<4x1xf32>
    %254 = arith.divf %250, %253 : vector<4x1xf32>
    %cst_107 = arith.constant 1.000000e+00 : f32
    %255 = vector.broadcast %cst_107 : f32 to vector<4x1xf32>
    %256 = arith.subf %255, %254 : vector<4x1xf32>
    %c0_108 = arith.constant 0 : index
    %c0_109 = arith.constant 0 : index
    %c0_110 = arith.constant 0 : index
    %257 = vector.load %arg6[%c0_108, %c0_109, %c0_110] : memref<4x32x32xbf16, #tpu.memory_space<vmem>>, vector<4x32x32xbf16>
    %258 = arith.extf %257 : vector<4x32x32xbf16> to vector<4x32x32xf32>
    %259 = math.absf %258 : vector<4x32x32xf32>
    %cst_111 = arith.constant 0.000000e+00 : f32
    %260 = vector.broadcast %cst_111 : f32 to vector<4x32x32xf32>
    %261 = arith.subf %260, %259 : vector<4x32x32xf32>
    %262 = math.exp %261 : vector<4x32x32xf32>
    %cst_112 = arith.constant 1.000000e+00 : f32
    %263 = vector.broadcast %cst_112 : f32 to vector<4x32x32xf32>
    %264 = arith.addf %263, %262 : vector<4x32x32xf32>
    %cst_113 = arith.constant 0.000000e+00 : f32
    %265 = vector.broadcast %cst_113 : f32 to vector<4x32x32xf32>
    %266 = arith.maximumf %258, %265 : vector<4x32x32xf32>
    %267 = arith.mulf %258, %1 : vector<4x32x32xf32>
    %268 = arith.subf %266, %267 : vector<4x32x32xf32>
    %269 = math.log %264 : vector<4x32x32xf32>
    %270 = arith.addf %268, %269 : vector<4x32x32xf32>
    %cst_114 = arith.constant dense<0.000000e+00> : vector<4x32xf32>
    %271 = vector.multi_reduction <add>, %270, %cst_114 [1] : vector<4x32x32xf32> to vector<4x32xf32>
    %cst_115 = arith.constant dense<0.000000e+00> : vector<4xf32>
    %272 = vector.multi_reduction <add>, %271, %cst_115 [1] : vector<4x32xf32> to vector<4xf32>
    %273 = vector.shape_cast %272 : vector<4xf32> to vector<4x1xf32>
    %cst_116 = arith.constant 9.765625E-4 : f32
    %274 = vector.broadcast %cst_116 : f32 to vector<4x1xf32>
    %275 = arith.mulf %273, %274 : vector<4x1xf32>
    %276 = tpu.reciprocal %264 {approx = true} : vector<4x32x32xf32> -> vector<4x32x32xf32>
    %277 = arith.mulf %264, %276 : vector<4x32x32xf32>
    %cst_117 = arith.constant 2.000000e+00 : f32
    %278 = vector.broadcast %cst_117 : f32 to vector<4x32x32xf32>
    %279 = arith.subf %278, %277 : vector<4x32x32xf32>
    %280 = arith.mulf %276, %279 : vector<4x32x32xf32>
    %cst_118 = arith.constant 0.000000e+00 : f32
    %281 = vector.broadcast %cst_118 : f32 to vector<4x32x32xf32>
    %282 = arith.cmpf oge, %258, %281 : vector<4x32x32xf32>
    %283 = arith.mulf %262, %280 : vector<4x32x32xf32>
    %284 = arith.select %282, %280, %283 : vector<4x32x32xi1>, vector<4x32x32xf32>
    %285 = arith.mulf %284, %73 : vector<4x32x32xf32>
    %cst_119 = arith.constant dense<0.000000e+00> : vector<4x32xf32>
    %286 = vector.multi_reduction <add>, %285, %cst_119 [1] : vector<4x32x32xf32> to vector<4x32xf32>
    %cst_120 = arith.constant dense<0.000000e+00> : vector<4xf32>
    %287 = vector.multi_reduction <add>, %286, %cst_120 [1] : vector<4x32xf32> to vector<4xf32>
    %288 = vector.shape_cast %287 : vector<4xf32> to vector<4x1xf32>
    %289 = arith.mulf %284, %72 : vector<4x32x32xf32>
    %cst_121 = arith.constant dense<0.000000e+00> : vector<4x32xf32>
    %290 = vector.multi_reduction <add>, %289, %cst_121 [1] : vector<4x32x32xf32> to vector<4x32xf32>
    %cst_122 = arith.constant dense<0.000000e+00> : vector<4xf32>
    %291 = vector.multi_reduction <add>, %290, %cst_122 [1] : vector<4x32xf32> to vector<4xf32>
    %292 = vector.shape_cast %291 : vector<4xf32> to vector<4x1xf32>
    %293 = arith.addf %292, %76 : vector<4x1xf32>
    %cst_123 = arith.constant 1.000000e+00 : f32
    %294 = vector.broadcast %cst_123 : f32 to vector<4x1xf32>
    %295 = arith.addf %288, %294 : vector<4x1xf32>
    %296 = arith.subf %293, %288 : vector<4x1xf32>
    %cst_124 = arith.constant 1.000000e+00 : f32
    %297 = vector.broadcast %cst_124 : f32 to vector<4x1xf32>
    %298 = arith.addf %296, %297 : vector<4x1xf32>
    %299 = arith.divf %295, %298 : vector<4x1xf32>
    %cst_125 = arith.constant 1.000000e+00 : f32
    %300 = vector.broadcast %cst_125 : f32 to vector<4x1xf32>
    %301 = arith.subf %300, %299 : vector<4x1xf32>
    %c0_126 = arith.constant 0 : index
    %c0_127 = arith.constant 0 : index
    %c0_128 = arith.constant 0 : index
    %302 = vector.load %arg7[%c0_126, %c0_127, %c0_128] : memref<4x32x32xbf16, #tpu.memory_space<vmem>>, vector<4x32x32xbf16>
    %303 = arith.extf %302 : vector<4x32x32xbf16> to vector<4x32x32xf32>
    %304 = math.absf %303 : vector<4x32x32xf32>
    %cst_129 = arith.constant 0.000000e+00 : f32
    %305 = vector.broadcast %cst_129 : f32 to vector<4x32x32xf32>
    %306 = arith.subf %305, %304 : vector<4x32x32xf32>
    %307 = math.exp %306 : vector<4x32x32xf32>
    %cst_130 = arith.constant 1.000000e+00 : f32
    %308 = vector.broadcast %cst_130 : f32 to vector<4x32x32xf32>
    %309 = arith.addf %308, %307 : vector<4x32x32xf32>
    %cst_131 = arith.constant 0.000000e+00 : f32
    %310 = vector.broadcast %cst_131 : f32 to vector<4x32x32xf32>
    %311 = arith.maximumf %303, %310 : vector<4x32x32xf32>
    %312 = arith.mulf %303, %1 : vector<4x32x32xf32>
    %313 = arith.subf %311, %312 : vector<4x32x32xf32>
    %314 = math.log %309 : vector<4x32x32xf32>
    %315 = arith.addf %313, %314 : vector<4x32x32xf32>
    %cst_132 = arith.constant dense<0.000000e+00> : vector<4x32xf32>
    %316 = vector.multi_reduction <add>, %315, %cst_132 [1] : vector<4x32x32xf32> to vector<4x32xf32>
    %cst_133 = arith.constant dense<0.000000e+00> : vector<4xf32>
    %317 = vector.multi_reduction <add>, %316, %cst_133 [1] : vector<4x32xf32> to vector<4xf32>
    %318 = vector.shape_cast %317 : vector<4xf32> to vector<4x1xf32>
    %cst_134 = arith.constant 9.765625E-4 : f32
    %319 = vector.broadcast %cst_134 : f32 to vector<4x1xf32>
    %320 = arith.mulf %318, %319 : vector<4x1xf32>
    %321 = tpu.reciprocal %309 {approx = true} : vector<4x32x32xf32> -> vector<4x32x32xf32>
    %322 = arith.mulf %309, %321 : vector<4x32x32xf32>
    %cst_135 = arith.constant 2.000000e+00 : f32
    %323 = vector.broadcast %cst_135 : f32 to vector<4x32x32xf32>
    %324 = arith.subf %323, %322 : vector<4x32x32xf32>
    %325 = arith.mulf %321, %324 : vector<4x32x32xf32>
    %cst_136 = arith.constant 0.000000e+00 : f32
    %326 = vector.broadcast %cst_136 : f32 to vector<4x32x32xf32>
    %327 = arith.cmpf oge, %303, %326 : vector<4x32x32xf32>
    %328 = arith.mulf %307, %325 : vector<4x32x32xf32>
    %329 = arith.select %327, %325, %328 : vector<4x32x32xi1>, vector<4x32x32xf32>
    %330 = arith.mulf %329, %73 : vector<4x32x32xf32>
    %cst_137 = arith.constant dense<0.000000e+00> : vector<4x32xf32>
    %331 = vector.multi_reduction <add>, %330, %cst_137 [1] : vector<4x32x32xf32> to vector<4x32xf32>
    %cst_138 = arith.constant dense<0.000000e+00> : vector<4xf32>
    %332 = vector.multi_reduction <add>, %331, %cst_138 [1] : vector<4x32xf32> to vector<4xf32>
    %333 = vector.shape_cast %332 : vector<4xf32> to vector<4x1xf32>
    %334 = arith.mulf %329, %72 : vector<4x32x32xf32>
    %cst_139 = arith.constant dense<0.000000e+00> : vector<4x32xf32>
    %335 = vector.multi_reduction <add>, %334, %cst_139 [1] : vector<4x32x32xf32> to vector<4x32xf32>
    %cst_140 = arith.constant dense<0.000000e+00> : vector<4xf32>
    %336 = vector.multi_reduction <add>, %335, %cst_140 [1] : vector<4x32xf32> to vector<4xf32>
    %337 = vector.shape_cast %336 : vector<4xf32> to vector<4x1xf32>
    %338 = arith.addf %337, %76 : vector<4x1xf32>
    %cst_141 = arith.constant 1.000000e+00 : f32
    %339 = vector.broadcast %cst_141 : f32 to vector<4x1xf32>
    %340 = arith.addf %333, %339 : vector<4x1xf32>
    %341 = arith.subf %338, %333 : vector<4x1xf32>
    %cst_142 = arith.constant 1.000000e+00 : f32
    %342 = vector.broadcast %cst_142 : f32 to vector<4x1xf32>
    %343 = arith.addf %341, %342 : vector<4x1xf32>
    %344 = arith.divf %340, %343 : vector<4x1xf32>
    %cst_143 = arith.constant 1.000000e+00 : f32
    %345 = vector.broadcast %cst_143 : f32 to vector<4x1xf32>
    %346 = arith.subf %345, %344 : vector<4x1xf32>
    %c0_144 = arith.constant 0 : index
    %c0_145 = arith.constant 0 : index
    %c0_146 = arith.constant 0 : index
    %347 = vector.load %arg8[%c0_144, %c0_145, %c0_146] : memref<4x32x32xbf16, #tpu.memory_space<vmem>>, vector<4x32x32xbf16>
    %348 = arith.extf %347 : vector<4x32x32xbf16> to vector<4x32x32xf32>
    %349 = math.absf %348 : vector<4x32x32xf32>
    %cst_147 = arith.constant 0.000000e+00 : f32
    %350 = vector.broadcast %cst_147 : f32 to vector<4x32x32xf32>
    %351 = arith.subf %350, %349 : vector<4x32x32xf32>
    %352 = math.exp %351 : vector<4x32x32xf32>
    %cst_148 = arith.constant 1.000000e+00 : f32
    %353 = vector.broadcast %cst_148 : f32 to vector<4x32x32xf32>
    %354 = arith.addf %353, %352 : vector<4x32x32xf32>
    %cst_149 = arith.constant 0.000000e+00 : f32
    %355 = vector.broadcast %cst_149 : f32 to vector<4x32x32xf32>
    %356 = arith.maximumf %348, %355 : vector<4x32x32xf32>
    %357 = arith.mulf %348, %1 : vector<4x32x32xf32>
    %358 = arith.subf %356, %357 : vector<4x32x32xf32>
    %359 = math.log %354 : vector<4x32x32xf32>
    %360 = arith.addf %358, %359 : vector<4x32x32xf32>
    %cst_150 = arith.constant dense<0.000000e+00> : vector<4x32xf32>
    %361 = vector.multi_reduction <add>, %360, %cst_150 [1] : vector<4x32x32xf32> to vector<4x32xf32>
    %cst_151 = arith.constant dense<0.000000e+00> : vector<4xf32>
    %362 = vector.multi_reduction <add>, %361, %cst_151 [1] : vector<4x32xf32> to vector<4xf32>
    %363 = vector.shape_cast %362 : vector<4xf32> to vector<4x1xf32>
    %cst_152 = arith.constant 9.765625E-4 : f32
    %364 = vector.broadcast %cst_152 : f32 to vector<4x1xf32>
    %365 = arith.mulf %363, %364 : vector<4x1xf32>
    %366 = tpu.reciprocal %354 {approx = true} : vector<4x32x32xf32> -> vector<4x32x32xf32>
    %367 = arith.mulf %354, %366 : vector<4x32x32xf32>
    %cst_153 = arith.constant 2.000000e+00 : f32
    %368 = vector.broadcast %cst_153 : f32 to vector<4x32x32xf32>
    %369 = arith.subf %368, %367 : vector<4x32x32xf32>
    %370 = arith.mulf %366, %369 : vector<4x32x32xf32>
    %cst_154 = arith.constant 0.000000e+00 : f32
    %371 = vector.broadcast %cst_154 : f32 to vector<4x32x32xf32>
    %372 = arith.cmpf oge, %348, %371 : vector<4x32x32xf32>
    %373 = arith.mulf %352, %370 : vector<4x32x32xf32>
    %374 = arith.select %372, %370, %373 : vector<4x32x32xi1>, vector<4x32x32xf32>
    %375 = arith.mulf %374, %73 : vector<4x32x32xf32>
    %cst_155 = arith.constant dense<0.000000e+00> : vector<4x32xf32>
    %376 = vector.multi_reduction <add>, %375, %cst_155 [1] : vector<4x32x32xf32> to vector<4x32xf32>
    %cst_156 = arith.constant dense<0.000000e+00> : vector<4xf32>
    %377 = vector.multi_reduction <add>, %376, %cst_156 [1] : vector<4x32xf32> to vector<4xf32>
    %378 = vector.shape_cast %377 : vector<4xf32> to vector<4x1xf32>
    %379 = arith.mulf %374, %72 : vector<4x32x32xf32>
    %cst_157 = arith.constant dense<0.000000e+00> : vector<4x32xf32>
    %380 = vector.multi_reduction <add>, %379, %cst_157 [1] : vector<4x32x32xf32> to vector<4x32xf32>
    %cst_158 = arith.constant dense<0.000000e+00> : vector<4xf32>
    %381 = vector.multi_reduction <add>, %380, %cst_158 [1] : vector<4x32xf32> to vector<4xf32>
    %382 = vector.shape_cast %381 : vector<4xf32> to vector<4x1xf32>
    %383 = arith.addf %382, %76 : vector<4x1xf32>
    %cst_159 = arith.constant 1.000000e+00 : f32
    %384 = vector.broadcast %cst_159 : f32 to vector<4x1xf32>
    %385 = arith.addf %378, %384 : vector<4x1xf32>
    %386 = arith.subf %383, %378 : vector<4x1xf32>
    %cst_160 = arith.constant 1.000000e+00 : f32
    %387 = vector.broadcast %cst_160 : f32 to vector<4x1xf32>
    %388 = arith.addf %386, %387 : vector<4x1xf32>
    %389 = arith.divf %385, %388 : vector<4x1xf32>
    %cst_161 = arith.constant 1.000000e+00 : f32
    %390 = vector.broadcast %cst_161 : f32 to vector<4x1xf32>
    %391 = arith.subf %390, %389 : vector<4x1xf32>
    %392 = tpu.concatenate %95, %140, %185, %230, %275, %320, %365 in 1 : vector<4x1xf32>, vector<4x1xf32>, vector<4x1xf32>, vector<4x1xf32>, vector<4x1xf32>, vector<4x1xf32>, vector<4x1xf32> -> vector<4x7xf32>
    %393 = vector.shape_cast %392 : vector<4x7xf32> to vector<1x4x7xf32>
    %c0_162 = arith.constant 0 : index
    %c0_163 = arith.constant 0 : index
    %c0_164 = arith.constant 0 : index
    %394 = vector.load %arg11[%c0_162, %c0_163, %c0_164] : memref<1x4x7xf32, #tpu.memory_space<vmem>>, vector<1x4x7xf32>
    tpu.vector_store %arg11[%c0_162, %c0_163, %c0_164], %393 {strides = array<i32>} : memref<1x4x7xf32, #tpu.memory_space<vmem>>, vector<1x4x7xf32>,
    %395 = tpu.concatenate %121, %166, %211, %256, %301, %346, %391 in 1 : vector<4x1xf32>, vector<4x1xf32>, vector<4x1xf32>, vector<4x1xf32>, vector<4x1xf32>, vector<4x1xf32>, vector<4x1xf32> -> vector<4x7xf32>
    %396 = vector.shape_cast %395 : vector<4x7xf32> to vector<1x4x7xf32>
    %c0_165 = arith.constant 0 : index
    %c0_166 = arith.constant 0 : index
    %c0_167 = arith.constant 0 : index
    %397 = vector.load %arg12[%c0_165, %c0_166, %c0_167] : memref<1x4x7xf32, #tpu.memory_space<vmem>>, vector<1x4x7xf32>
    tpu.vector_store %arg12[%c0_165, %c0_166, %c0_167], %396 {strides = array<i32>} : memref<1x4x7xf32, #tpu.memory_space<vmem>>, vector<1x4x7xf32>,
    return
  }
  func.func @transform_0(%arg0: i32) -> (i32, i32, i32) {
    %c0_i32 = arith.constant 0 : i32
    %c0_i32_0 = arith.constant 0 : i32
    %c0_i32_1 = arith.constant 0 : i32
    return %arg0, %c0_i32, %c0_i32_0 : i32, i32, i32
  }
  func.func @transform_1(%arg0: i32) -> (i32, i32, i32) {
    %c0_i32 = arith.constant 0 : i32
    %c0_i32_0 = arith.constant 0 : i32
    %c0_i32_1 = arith.constant 0 : i32
    return %arg0, %c0_i32, %c0_i32_0 : i32, i32, i32
  }
  func.func @transform_2(%arg0: i32) -> (i32, i32, i32) {
    %c0_i32 = arith.constant 0 : i32
    %c0_i32_0 = arith.constant 0 : i32
    %c0_i32_1 = arith.constant 0 : i32
    return %arg0, %c0_i32, %c0_i32_0 : i32, i32, i32
  }
  func.func @transform_3(%arg0: i32) -> (i32, i32, i32) {
    %c0_i32 = arith.constant 0 : i32
    %c0_i32_0 = arith.constant 0 : i32
    %c0_i32_1 = arith.constant 0 : i32
    return %arg0, %c0_i32, %c0_i32_0 : i32, i32, i32
  }
  func.func @transform_4(%arg0: i32) -> (i32, i32, i32) {
    %c0_i32 = arith.constant 0 : i32
    %c0_i32_0 = arith.constant 0 : i32
    %c0_i32_1 = arith.constant 0 : i32
    return %arg0, %c0_i32, %c0_i32_0 : i32, i32, i32
  }
  func.func @transform_5(%arg0: i32) -> (i32, i32, i32) {
    %c0_i32 = arith.constant 0 : i32
    %c0_i32_0 = arith.constant 0 : i32
    %c0_i32_1 = arith.constant 0 : i32
    return %arg0, %c0_i32, %c0_i32_0 : i32, i32, i32
  }
  func.func @transform_6(%arg0: i32) -> (i32, i32, i32) {
    %c0_i32 = arith.constant 0 : i32
    %c0_i32_0 = arith.constant 0 : i32
    %c0_i32_1 = arith.constant 0 : i32
    return %arg0, %c0_i32, %c0_i32_0 : i32, i32, i32
  }
  func.func @transform_7(%arg0: i32) -> (i32, i32, i32) {
    %c0_i32 = arith.constant 0 : i32
    %c0_i32_0 = arith.constant 0 : i32
    %c0_i32_1 = arith.constant 0 : i32
    return %arg0, %c0_i32, %c0_i32_0 : i32, i32, i32
  }
  func.func @transform_8(%arg0: i32) -> (i32, i32) {
    %c0_i32 = arith.constant 0 : i32
    %c0_i32_0 = arith.constant 0 : i32
    %c0_i32_1 = arith.constant 0 : i32
    return %c0_i32, %c0_i32_0 : i32, i32
  }
  func.func @transform_9(%arg0: i32) -> (i32, i32) {
    %c0_i32 = arith.constant 0 : i32
    %c0_i32_0 = arith.constant 0 : i32
    %c0_i32_1 = arith.constant 0 : i32
    return %c0_i32, %c0_i32_0 : i32, i32
  }
  func.func @transform_10(%arg0: i32) -> (i32, i32, i32) {
    %c0_i32 = arith.constant 0 : i32
    %c0_i32_0 = arith.constant 0 : i32
    %c0_i32_1 = arith.constant 0 : i32
    return %arg0, %c0_i32, %c0_i32_0 : i32, i32, i32
  }
  func.func @transform_11(%arg0: i32) -> (i32, i32, i32) {
    %c0_i32 = arith.constant 0 : i32
    %c0_i32_0 = arith.constant 0 : i32
    %c0_i32_1 = arith.constant 0 : i32
    return %arg0, %c0_i32, %c0_i32_0 : i32, i32, i32
  }
}

</mosaic_0001>

<llo_original>
// kernel: tpu_custom_call.1
$region0: #{tpu_custom_call.1}
  #allocation0 [shape = 'u32[]', space=smem, size = 0x4, offset = 0x4, fixed_abs, tag = 'smem constant byte address 0x4 - core index']
  #allocation1 [shape = 'u32[72,128]{1,0:T(1,128)}', space=vmem, size = 0x9000, scoped, tag = 'internal scratch']
  #allocation2 [shape = 'f32[4,32,32]{2,1,0:T(8,128)}', space=vmem, size = 0x10000, scoped, tag = 'scratch operand']
  %s0 = inlined_call_operand.hbm [shape: bf16[8,32,32], index: 0, kind: input, shape index: {}]
  %s1 = inlined_call_operand.hbm [shape: bf16[8,32,32], index: 1, kind: input, shape index: {}]
  %s2 = inlined_call_operand.hbm [shape: bf16[8,32,32], index: 2, kind: input, shape index: {}]
  %s3 = inlined_call_operand.hbm [shape: bf16[8,32,32], index: 3, kind: input, shape index: {}]
  %s4 = inlined_call_operand.hbm [shape: bf16[8,32,32], index: 4, kind: input, shape index: {}]
  %s5 = inlined_call_operand.hbm [shape: bf16[8,32,32], index: 5, kind: input, shape index: {}]
  %s6 = inlined_call_operand.hbm [shape: bf16[8,32,32], index: 6, kind: input, shape index: {}]
  %s7 = inlined_call_operand.hbm [shape: bf16[8,32,32], index: 7, kind: input, shape index: {}]
  %s8 = inlined_call_operand.hbm [shape: bf16[32,32], index: 8, kind: input, shape index: {}]
  %s9 = inlined_call_operand.hbm [shape: bf16[32,32], index: 9, kind: input, shape index: {}]
  %s10 = inlined_call_operand.hbm [shape: f32[2,4,7], index: 10, kind: output, shape index: {0}]
  %s11 = inlined_call_operand.hbm [shape: f32[2,4,7], index: 11, kind: output, shape index: {1}]
  %12 = xla_tuple %s10, %s11
  %s13 = sld [smem:[#allocation0]]
  $region121: #{tpu_custom_call.1} parent=0
    _
  %s15 = ssub.s32 1, %s13
  %s16 = scalar_select 0, %s15, %s13
  $region1: #{tpu_custom_call.1} parent=0
    #allocation3 [shape = 'u8[65536]{0}', space=vmem, size = 0x10000, scoped, tag = 'input window, operand 0']
    #allocation4 [shape = 's32[2]{0}', space=sflag, size = 0x8, scoped, tag = 'scoped memory for tpu_custom_call.1']
    #allocation5 [shape = 's32[2]{0}', space=sflag, size = 0x8, scoped, tag = 'scoped memory for tpu_custom_call.1']
    #allocation6 [shape = 'u8[65536]{0}', space=vmem, size = 0x10000, scoped, tag = 'input window, operand 1']
    #allocation7 [shape = 's32[2]{0}', space=sflag, size = 0x8, scoped, tag = 'scoped memory for tpu_custom_call.1']
    #allocation8 [shape = 'u8[65536]{0}', space=vmem, size = 0x10000, scoped, tag = 'input window, operand 2']
    #allocation9 [shape = 'u8[65536]{0}', space=vmem, size = 0x10000, scoped, tag = 'input window, operand 3']
    #allocation10 [shape = 's32[2]{0}', space=sflag, size = 0x8, scoped, tag = 'scoped memory for tpu_custom_call.1']
    #allocation11 [shape = 'u8[65536]{0}', space=vmem, size = 0x10000, scoped, tag = 'input window, operand 4']
    #allocation12 [shape = 'u8[65536]{0}', space=vmem, size = 0x10000, scoped, tag = 'input window, operand 5']
    #allocation13 [shape = 's32[2]{0}', space=sflag, size = 0x8, scoped, tag = 'scoped memory for tpu_custom_call.1']
    #allocation14 [shape = 'u8[65536]{0}', space=vmem, size = 0x10000, scoped, tag = 'input window, operand 6']
    #allocation15 [shape = 'u8[65536]{0}', space=vmem, size = 0x10000, scoped, tag = 'input window, operand 7']
    #allocation16 [shape = 's32[2]{0}', space=sflag, size = 0x8, scoped, tag = 'scoped memory for tpu_custom_call.1']
    #allocation17 [shape = 'u8[8192]{0}', space=vmem, size = 0x2000, scoped, tag = 'input window, operand 8, single buffered']
    #allocation18 [shape = 'u8[8192]{0}', space=vmem, size = 0x2000, scoped, tag = 'input window, operand 9, single buffered']
    #allocation19 [shape = 's32[1]{0}', space=sflag, size = 0x4, scoped, tag = 'scoped memory for tpu_custom_call.1']
    #allocation20 [shape = 'u8[4096]{0}', space=vmem, size = 0x1000, scoped, tag = 'output window, operand 0']
    #allocation21 [shape = 'u8[4096]{0}', space=vmem, size = 0x1000, scoped, tag = 'output window, operand 1']
    #allocation22 [shape = 's32[2]{0}', space=sflag, size = 0x8, scoped, tag = 'scoped memory for tpu_custom_call.1']
    %17 = vsyncpa [#allocation4], 0
    %s18 = scalar_lea.sflag [#allocation4], 1
    %19 = vsyncpa %s18, 0
    %20 = vsyncpa [#allocation7], 0
    %s21 = scalar_lea.sflag [#allocation7], 1
    %22 = vsyncpa %s21, 0
    %23 = vsyncpa [#allocation10], 0
    %s24 = scalar_lea.sflag [#allocation10], 1
    %25 = vsyncpa %s24, 0
    %26 = vsyncpa [#allocation13], 0
    %s27 = scalar_lea.sflag [#allocation13], 1
    %28 = vsyncpa %s27, 0
    %29 = vsyncpa [#allocation16], 0
    %s30 = scalar_lea.sflag [#allocation16], 1
    %31 = vsyncpa %s30, 0
    %32 = vsyncpa [#allocation19], 0
    %33 = vsyncpa [#allocation5], 0
    %s34 = scalar_lea.sflag [#allocation5], 1
    %35 = vsyncpa %s34, 0
    %36 = vsyncpa [#allocation22], 0
    %s37 = scalar_lea.sflag [#allocation22], 1
    %38 = vsyncpa %s37, 0
    loop: start=0, step=1, limit=4
    $region2: #{tpu_custom_call.1} parent=1 // loop_pre_header
      _
    $region3: #{tpu_custom_call.1} parent=1 // loop_header
      %s40 = sphi 0, %s44
      %p41 = scmp.ge.s32.totalorder %s40, 4
      %s50 = sphi 0, %s52
      %s53 = sphi 0, %s50
      %s54 = sphi 0, %s53
      %s70 = sphi 0, %s54
      %s76 = sphi 0, %s78
      %s79 = sphi 0, %s76
      %s80 = sphi 0, %s79
      %s96 = sphi 0, %s80
      %s102 = sphi 0, %s104
      %s105 = sphi 0, %s102
      %s106 = sphi 0, %s105
      %s122 = sphi 0, %s106
      %s128 = sphi 0, %s130
      %s131 = sphi 0, %s128
      %s132 = sphi 0, %s131
      %s148 = sphi 0, %s132
      %s154 = sphi 0, %s156
      %s157 = sphi 0, %s154
      %s158 = sphi 0, %s157
      %s174 = sphi 0, %s158
      %s180 = sphi 0, %s182
      %s183 = sphi 0, %s180
      %s184 = sphi 0, %s183
      %s200 = sphi 0, %s184
      %s206 = sphi 0, %s208
      %s209 = sphi 0, %s206
      %s210 = sphi 0, %s209
      %s226 = sphi 0, %s210
      %s232 = sphi 0, %s234
      %s235 = sphi 0, %s232
      %s236 = sphi 0, %s235
      %s252 = sphi 0, %s236
      %s256 = sphi 0, %s256
      %s258 = sphi 0, %s256
      %s259 = sphi 0, %s258
      %s273 = sphi 0, %s259
      %s277 = sphi 0, %s277
      %s279 = sphi 0, %s277
      %s280 = sphi 0, %s279
      %s294 = sphi 0, %s280
      %s300 = sphi 0, %s302
      %s303 = sphi 0, %s300
      %s304 = sphi 0, %s303
      %s320 = sphi 0, %s304
      %s326 = sphi 0, %s328
      %s329 = sphi 0, %s326
      %s330 = sphi 0, %s329
      %s346 = sphi 0, %s330
    $region4: #{tpu_custom_call.1} parent=1 // loop_header_branch
      %43 = sbr.rel (%p41) target = $region8
    $region5: #{tpu_custom_call.1} parent=1 // loop_body
      %s45 = ssub.s32 %s40, 1
      %s46 = ssub.s32 %s40, 2
      %s47 = sadd.s32 %s40, 1
      %s48 = ssub.s32 %s40, %s47
      %p49 = scmp.eq.s32.totalorder %s48, 0
      %s51 = sadd.s32 %s50, 1
      %s52 = scalar_select %p49, %s50, %s51
      %p55 = pneg %p49
      %p56 = scmp.eq.s32.totalorder %s40, 1
      %p57 = por %p55, %p56
      %p58 = scmp.ne.s32.totalorder %s50, %s53
      %p59 = scmp.eq.s32.totalorder %s40, 0
      %p60 = por %p58, %p59
      %p61 = scmp.ne.s32.totalorder %s50, %s53
      %p62 = scmp.eq.s32.totalorder %s45, 1
      %p63 = por %p61, %p62
      %p64 = scmp.ne.s32.totalorder %s53, %s54
      %p65 = scmp.eq.s32.totalorder %s45, 0
      %p66 = por %p64, %p65
      %p67 = scmp.ne.s32.totalorder %s53, %s54
      %p68 = scmp.eq.s32.totalorder %s46, 1
      %p69 = por %p67, %p68
      %p71 = scmp.ne.s32.totalorder %s54, %s70
      %p72 = scmp.eq.s32.totalorder %s46, 0
      %p73 = por %p71, %p72
      %s74 = ssub.s32 %s40, %s47
      %p75 = scmp.eq.s32.totalorder %s74, 0
      %s77 = sadd.s32 %s76, 1
      %s78 = scalar_select %p75, %s76, %s77
      %p81 = pneg %p75
      %p82 = scmp.eq.s32.totalorder %s40, 1
      %p83 = por %p81, %p82
      %p84 = scmp.ne.s32.totalorder %s76, %s79
      %p85 = scmp.eq.s32.totalorder %s40, 0
      %p86 = por %p84, %p85
      %p87 = scmp.ne.s32.totalorder %s76, %s79
      %p88 = scmp.eq.s32.totalorder %s45, 1
      %p89 = por %p87, %p88
      %p90 = scmp.ne.s32.totalorder %s79, %s80
      %p91 = scmp.eq.s32.totalorder %s45, 0
      %p92 = por %p90, %p91
      %p93 = scmp.ne.s32.totalorder %s79, %s80
      %p94 = scmp.eq.s32.totalorder %s46, 1
      %p95 = por %p93, %p94
      %p97 = scmp.ne.s32.totalorder %s80, %s96
      %p98 = scmp.eq.s32.totalorder %s46, 0
      %p99 = por %p97, %p98
      %s100 = ssub.s32 %s40, %s47
      %p101 = scmp.eq.s32.totalorder %s100, 0
      %s103 = sadd.s32 %s102, 1
      %s104 = scalar_select %p101, %s102, %s103
      %p107 = pneg %p101
      %p108 = scmp.eq.s32.totalorder %s40, 1
      %p109 = por %p107, %p108
      %p110 = scmp.ne.s32.totalorder %s102, %s105
      %p111 = scmp.eq.s32.totalorder %s40, 0
      %p112 = por %p110, %p111
      %p113 = scmp.ne.s32.totalorder %s102, %s105
      %p114 = scmp.eq.s32.totalorder %s45, 1
      %p115 = por %p113, %p114
      %p116 = scmp.ne.s32.totalorder %s105, %s106
      %p117 = scmp.eq.s32.totalorder %s45, 0
      %p118 = por %p116, %p117
      %p119 = scmp.ne.s32.totalorder %s105, %s106
      %p120 = scmp.eq.s32.totalorder %s46, 1
      %p121 = por %p119, %p120
      %p123 = scmp.ne.s32.totalorder %s106, %s122
      %p124 = scmp.eq.s32.totalorder %s46, 0
      %p125 = por %p123, %p124
      %s126 = ssub.s32 %s40, %s47
      %p127 = scmp.eq.s32.totalorder %s126, 0
      %s129 = sadd.s32 %s128, 1
      %s130 = scalar_select %p127, %s128, %s129
      %p133 = pneg %p127
      %p134 = scmp.eq.s32.totalorder %s40, 1
      %p135 = por %p133, %p134
      %p136 = scmp.ne.s32.totalorder %s128, %s131
      %p137 = scmp.eq.s32.totalorder %s40, 0
      %p138 = por %p136, %p137
      %p139 = scmp.ne.s32.totalorder %s128, %s131
      %p140 = scmp.eq.s32.totalorder %s45, 1
      %p141 = por %p139, %p140
      %p142 = scmp.ne.s32.totalorder %s131, %s132
      %p143 = scmp.eq.s32.totalorder %s45, 0
      %p144 = por %p142, %p143
      %p145 = scmp.ne.s32.totalorder %s131, %s132
      %p146 = scmp.eq.s32.totalorder %s46, 1
      %p147 = por %p145, %p146
      %p149 = scmp.ne.s32.totalorder %s132, %s148
      %p150 = scmp.eq.s32.totalorder %s46, 0
      %p151 = por %p149, %p150
      %s152 = ssub.s32 %s40, %s47
      %p153 = scmp.eq.s32.totalorder %s152, 0
      %s155 = sadd.s32 %s154, 1
      %s156 = scalar_select %p153, %s154, %s155
      %p159 = pneg %p153
      %p160 = scmp.eq.s32.totalorder %s40, 1
      %p161 = por %p159, %p160
      %p162 = scmp.ne.s32.totalorder %s154, %s157
      %p163 = scmp.eq.s32.totalorder %s40, 0
      %p164 = por %p162, %p163
      %p165 = scmp.ne.s32.totalorder %s154, %s157
      %p166 = scmp.eq.s32.totalorder %s45, 1
      %p167 = por %p165, %p166
      %p168 = scmp.ne.s32.totalorder %s157, %s158
      %p169 = scmp.eq.s32.totalorder %s45, 0
      %p170 = por %p168, %p169
      %p171 = scmp.ne.s32.totalorder %s157, %s158
      %p172 = scmp.eq.s32.totalorder %s46, 1
      %p173 = por %p171, %p172
      %p175 = scmp.ne.s32.totalorder %s158, %s174
      %p176 = scmp.eq.s32.totalorder %s46, 0
      %p177 = por %p175, %p176
      %s178 = ssub.s32 %s40, %s47
      %p179 = scmp.eq.s32.totalorder %s178, 0
      %s181 = sadd.s32 %s180, 1
      %s182 = scalar_select %p179, %s180, %s181
      %p185 = pneg %p179
      %p186 = scmp.eq.s32.totalorder %s40, 1
      %p187 = por %p185, %p186
      %p188 = scmp.ne.s32.totalorder %s180, %s183
      %p189 = scmp.eq.s32.totalorder %s40, 0
      %p190 = por %p188, %p189
      %p191 = scmp.ne.s32.totalorder %s180, %s183
      %p192 = scmp.eq.s32.totalorder %s45, 1
      %p193 = por %p191, %p192
      %p194 = scmp.ne.s32.totalorder %s183, %s184
      %p195 = scmp.eq.s32.totalorder %s45, 0
      %p196 = por %p194, %p195
      %p197 = scmp.ne.s32.totalorder %s183, %s184
      %p198 = scmp.eq.s32.totalorder %s46, 1
      %p199 = por %p197, %p198
      %p201 = scmp.ne.s32.totalorder %s184, %s200
      %p202 = scmp.eq.s32.totalorder %s46, 0
      %p203 = por %p201, %p202
      %s204 = ssub.s32 %s40, %s47
      %p205 = scmp.eq.s32.totalorder %s204, 0
      %s207 = sadd.s32 %s206, 1
      %s208 = scalar_select %p205, %s206, %s207
      %p211 = pneg %p205
      %p212 = scmp.eq.s32.totalorder %s40, 1
      %p213 = por %p211, %p212
      %p214 = scmp.ne.s32.totalorder %s206, %s209
      %p215 = scmp.eq.s32.totalorder %s40, 0
      %p216 = por %p214, %p215
      %p217 = scmp.ne.s32.totalorder %s206, %s209
      %p218 = scmp.eq.s32.totalorder %s45, 1
      %p219 = por %p217, %p218
      %p220 = scmp.ne.s32.totalorder %s209, %s210
      %p221 = scmp.eq.s32.totalorder %s45, 0
      %p222 = por %p220, %p221
      %p223 = scmp.ne.s32.totalorder %s209, %s210
      %p224 = scmp.eq.s32.totalorder %s46, 1
      %p225 = por %p223, %p224
      %p227 = scmp.ne.s32.totalorder %s210, %s226
      %p228 = scmp.eq.s32.totalorder %s46, 0
      %p229 = por %p227, %p228
      %s230 = ssub.s32 %s40, %s47
      %p231 = scmp.eq.s32.totalorder %s230, 0
      %s233 = sadd.s32 %s232, 1
      %s234 = scalar_select %p231, %s232, %s233
      %p237 = pneg %p231
      %p238 = scmp.eq.s32.totalorder %s40, 1
      %p239 = por %p237, %p238
      %p240 = scmp.ne.s32.totalorder %s232, %s235
      %p241 = scmp.eq.s32.totalorder %s40, 0
      %p242 = por %p240, %p241
      %p243 = scmp.ne.s32.totalorder %s232, %s235
      %p244 = scmp.eq.s32.totalorder %s45, 1
      %p245 = por %p243, %p244
      %p246 = scmp.ne.s32.totalorder %s235, %s236
      %p247 = scmp.eq.s32.totalorder %s45, 0
      %p248 = por %p246, %p247
      %p249 = scmp.ne.s32.totalorder %s235, %s236
      %p250 = scmp.eq.s32.totalorder %s46, 1
      %p251 = por %p249, %p250
      %p253 = scmp.ne.s32.totalorder %s236, %s252
      %p254 = scmp.eq.s32.totalorder %s46, 0
      %p255 = por %p253, %p254
      %s257 = sadd.s32 %s256, 1
      %p260 = scmp.eq.s32.totalorder %s40, 1
      %p261 = scmp.ne.s32.totalorder %s256, %s258
      %p262 = scmp.eq.s32.totalorder %s40, 0
      %p263 = por %p261, %p262
      %p264 = scmp.ne.s32.totalorder %s256, %s258
      %p265 = scmp.eq.s32.totalorder %s45, 1
      %p266 = por %p264, %p265
      %p267 = scmp.ne.s32.totalorder %s258, %s259
      %p268 = scmp.eq.s32.totalorder %s45, 0
      %p269 = por %p267, %p268
      %p270 = scmp.ne.s32.totalorder %s258, %s259
      %p271 = scmp.eq.s32.totalorder %s46, 1
      %p272 = por %p270, %p271
      %p274 = scmp.ne.s32.totalorder %s259, %s273
      %p275 = scmp.eq.s32.totalorder %s46, 0
      %p276 = por %p274, %p275
      %s278 = sadd.s32 %s277, 1
      %p281 = scmp.eq.s32.totalorder %s40, 1
      %p282 = scmp.ne.s32.totalorder %s277, %s279
      %p283 = scmp.eq.s32.totalorder %s40, 0
      %p284 = por %p282, %p283
      %p285 = scmp.ne.s32.totalorder %s277, %s279
      %p286 = scmp.eq.s32.totalorder %s45, 1
      %p287 = por %p285, %p286
      %p288 = scmp.ne.s32.totalorder %s279, %s280
      %p289 = scmp.eq.s32.totalorder %s45, 0
      %p290 = por %p288, %p289
      %p291 = scmp.ne.s32.totalorder %s279, %s280
      %p292 = scmp.eq.s32.totalorder %s46, 1
      %p293 = por %p291, %p292
      %p295 = scmp.ne.s32.totalorder %s280, %s294
      %p296 = scmp.eq.s32.totalorder %s46, 0
      %p297 = por %p295, %p296
      %s298 = ssub.s32 %s40, %s47
      %p299 = scmp.eq.s32.totalorder %s298, 0
      %s301 = sadd.s32 %s300, 1
      %s302 = scalar_select %p299, %s300, %s301
      %p305 = pneg %p299
      %p306 = scmp.eq.s32.totalorder %s40, 1
      %p307 = por %p305, %p306
      %p308 = scmp.ne.s32.totalorder %s300, %s303
      %p309 = scmp.eq.s32.totalorder %s40, 0
      %p310 = por %p308, %p309
      %p311 = scmp.ne.s32.totalorder %s300, %s303
      %p312 = scmp.eq.s32.totalorder %s45, 1
      %p313 = por %p311, %p312
      %p314 = scmp.ne.s32.totalorder %s303, %s304
      %p315 = scmp.eq.s32.totalorder %s45, 0
      %p316 = por %p314, %p315
      %p317 = scmp.ne.s32.totalorder %s303, %s304
      %p318 = scmp.eq.s32.totalorder %s46, 1
      %p319 = por %p317, %p318
      %p321 = scmp.ne.s32.totalorder %s304, %s320
      %p322 = scmp.eq.s32.totalorder %s46, 0
      %p323 = por %p321, %p322
      %s324 = ssub.s32 %s40, %s47
      %p325 = scmp.eq.s32.totalorder %s324, 0
      %s327 = sadd.s32 %s326, 1
      %s328 = scalar_select %p325, %s326, %s327
      %p331 = pneg %p325
      %p332 = scmp.eq.s32.totalorder %s40, 1
      %p333 = por %p331, %p332
      %p334 = scmp.ne.s32.totalorder %s326, %s329
      %p335 = scmp.eq.s32.totalorder %s40, 0
      %p336 = por %p334, %p335
      %p337 = scmp.ne.s32.totalorder %s326, %s329
      %p338 = scmp.eq.s32.totalorder %s45, 1
      %p339 = por %p337, %p338
      %p340 = scmp.ne.s32.totalorder %s329, %s330
      %p341 = scmp.eq.s32.totalorder %s45, 0
      %p342 = por %p340, %p341
      %p343 = scmp.ne.s32.totalorder %s329, %s330
      %p344 = scmp.eq.s32.totalorder %s46, 1
      %p345 = por %p343, %p344
      %p347 = scmp.ne.s32.totalorder %s330, %s346
      %p348 = scmp.eq.s32.totalorder %s46, 0
      %p349 = por %p347, %p348
      %p350 = scmp.le.s32.totalorder 1, %s40
      %p351 = scmp.lt.s32.totalorder %s40, 3
      %p352 = pnand %p350, %p351
      %p353 = pneg %p352
      // Predicated region
      $region9: #{tpu_custom_call.1} parent=5 // pred_check
        _
      $region10: #{tpu_custom_call.1} parent=5 // pred_check_branch
        %355 = sbr.rel (%p352) target = $region12
      $region11: #{tpu_custom_call.1} parent=5 // pred_region
        %s356 = ssub.s32 %s40, 1
        // Predicated region
        $region13: #{tpu_custom_call.1} parent=11 // pred_check
          %p357 = pneg %p269
        $region14: #{tpu_custom_call.1} parent=11 // pred_check_branch
          %359 = sbr.rel (%p357) target = $region16
        $region15: #{tpu_custom_call.1} parent=11 // pred_region
          %361 = vsyncadd [#allocation16], 0
          %s362 = sshll.u32 %s8, 4
          %s363 = int_to_ptr.hbm [resolvable:$true] %s362
          %s364 = sshll.u32 [#allocation17], 4
          %s365 = int_to_ptr.vmem [resolvable:$true] %s364
          %370 = dma.hbm_to_vmem [thread:$0]  %s363, 256, %s365, [#allocation16], 64, 64, 4
        $region16: #{tpu_custom_call.1} parent=11 // pred_fallthru
          _
        // Predicated region
        $region17: #{tpu_custom_call.1} parent=11 // pred_check
          %p371 = pneg %p290
        $region18: #{tpu_custom_call.1} parent=11 // pred_check_branch
          %373 = sbr.rel (%p371) target = $region20
        $region19: #{tpu_custom_call.1} parent=11 // pred_region
          %375 = vsyncadd [#allocation19], 0
          %s376 = sshll.u32 %s9, 4
          %s377 = int_to_ptr.hbm [resolvable:$true] %s376
          %s378 = sshll.u32 [#allocation18], 4
          %s379 = int_to_ptr.vmem [resolvable:$true] %s378
          %384 = dma.hbm_to_vmem [thread:$0]  %s377, 256, %s379, [#allocation19], 64, 64, 4
        $region20: #{tpu_custom_call.1} parent=11 // pred_fallthru
          _
      $region12: #{tpu_custom_call.1} parent=5 // pred_fallthru
        _
      %p385 = scmp.lt.s32.totalorder %s40, 2
      // Predicated region
      $region21: #{tpu_custom_call.1} parent=5 // pred_check
        %p386 = pneg %p385
      $region22: #{tpu_custom_call.1} parent=5 // pred_check_branch
        %388 = sbr.rel (%p386) target = $region24
      $region23: #{tpu_custom_call.1} parent=5 // pred_region
        // Predicated region
        $region25: #{tpu_custom_call.1} parent=23 // pred_check
          %p389 = pneg %p60
        $region26: #{tpu_custom_call.1} parent=23 // pred_check_branch
          %391 = sbr.rel (%p389) target = $region28
        $region27: #{tpu_custom_call.1} parent=23 // pred_region
          %s392 = sand.u32 %s50, 1
          %s393 = scalar_lea.sflag [#allocation4], %s392
          %s394 = sand.u32 %s50, 1
          %s395 = smul.addr %s394, 64
          %s396 = scalar_lea.vmem [#allocation3], %s395
          %s397 = smul.u32 4, %s40
          %399 = vsyncadd %s393, 0
          %s400 = smul.addr %s397, 4
          %s401 = smul.addr %s400, 4
          %s402 = scalar_lea.hbm %s0, %s401
          %s403 = sshll.u32 %s402, 4
          %s404 = int_to_ptr.hbm [resolvable:$true] %s403
          %s405 = sshll.u32 %s396, 4
          %s406 = int_to_ptr.vmem [resolvable:$true] %s405
          %411 = dma.hbm_to_vmem [thread:$0]  %s404, 1024, %s406, %s393, 64, 64, 4
        $region28: #{tpu_custom_call.1} parent=23 // pred_fallthru
          _
        // Predicated region
        $region29: #{tpu_custom_call.1} parent=23 // pred_check
          %p412 = pneg %p86
        $region30: #{tpu_custom_call.1} parent=23 // pred_check_branch
          %414 = sbr.rel (%p412) target = $region32
        $region31: #{tpu_custom_call.1} parent=23 // pred_region
          %s415 = sand.u32 %s40, 1
          %s416 = scalar_lea.sflag [#allocation7], %s415
          %s417 = sand.u32 %s76, 1
          %s418 = smul.addr %s417, 64
          %s419 = scalar_lea.vmem [#allocation6], %s418
          %s420 = smul.u32 4, %s40
          %422 = vsyncadd %s416, 0
          %s423 = smul.addr %s420, 4
          %s424 = smul.addr %s423, 4
          %s425 = scalar_lea.hbm %s1, %s424
          %s426 = sshll.u32 %s425, 4
          %s427 = int_to_ptr.hbm [resolvable:$true] %s426
          %s428 = sshll.u32 %s419, 4
          %s429 = int_to_ptr.vmem [resolvable:$true] %s428
          %434 = dma.hbm_to_vmem [thread:$0]  %s427, 1024, %s429, %s416, 64, 64, 4
        $region32: #{tpu_custom_call.1} parent=23 // pred_fallthru
          _
        // Predicated region
        $region33: #{tpu_custom_call.1} parent=23 // pred_check
          %p435 = pneg %p112
        $region34: #{tpu_custom_call.1} parent=23 // pred_check_branch
          %437 = sbr.rel (%p435) target = $region36
        $region35: #{tpu_custom_call.1} parent=23 // pred_region
          %s438 = sand.u32 %s40, 1
          %s439 = scalar_lea.sflag [#allocation7], %s438
          %s440 = sand.u32 %s102, 1
          %s441 = smul.addr %s440, 64
          %s442 = scalar_lea.vmem [#allocation8], %s441
          %s443 = smul.u32 4, %s40
          %445 = vsyncadd %s439, 0
          %s446 = smul.addr %s443, 4
          %s447 = smul.addr %s446, 4
          %s448 = scalar_lea.hbm %s2, %s447
          %s449 = sshll.u32 %s448, 4
          %s450 = int_to_ptr.hbm [resolvable:$true] %s449
          %s451 = sshll.u32 %s442, 4
          %s452 = int_to_ptr.vmem [resolvable:$true] %s451
          %457 = dma.hbm_to_vmem [thread:$0]  %s450, 1024, %s452, %s439, 64, 64, 4
        $region36: #{tpu_custom_call.1} parent=23 // pred_fallthru
          _
        // Predicated region
        $region37: #{tpu_custom_call.1} parent=23 // pred_check
          %p458 = pneg %p138
        $region38: #{tpu_custom_call.1} parent=23 // pred_check_branch
          %460 = sbr.rel (%p458) target = $region40
        $region39: #{tpu_custom_call.1} parent=23 // pred_region
          %s461 = sand.u32 %s40, 1
          %s462 = scalar_lea.sflag [#allocation10], %s461
          %s463 = sand.u32 %s128, 1
          %s464 = smul.addr %s463, 64
          %s465 = scalar_lea.vmem [#allocation9], %s464
          %s466 = smul.u32 4, %s40
          %468 = vsyncadd %s462, 0
          %s469 = smul.addr %s466, 4
          %s470 = smul.addr %s469, 4
          %s471 = scalar_lea.hbm %s3, %s470
          %s472 = sshll.u32 %s471, 4
          %s473 = int_to_ptr.hbm [resolvable:$true] %s472
          %s474 = sshll.u32 %s465, 4
          %s475 = int_to_ptr.vmem [resolvable:$true] %s474
          %480 = dma.hbm_to_vmem [thread:$0]  %s473, 1024, %s475, %s462, 64, 64, 4
        $region40: #{tpu_custom_call.1} parent=23 // pred_fallthru
          _
        // Predicated region
        $region41: #{tpu_custom_call.1} parent=23 // pred_check
          %p481 = pneg %p164
        $region42: #{tpu_custom_call.1} parent=23 // pred_check_branch
          %483 = sbr.rel (%p481) target = $region44
        $region43: #{tpu_custom_call.1} parent=23 // pred_region
          %s484 = sand.u32 %s40, 1
          %s485 = scalar_lea.sflag [#allocation10], %s484
          %s486 = sand.u32 %s154, 1
          %s487 = smul.addr %s486, 64
          %s488 = scalar_lea.vmem [#allocation11], %s487
          %s489 = smul.u32 4, %s40
          %491 = vsyncadd %s485, 0
          %s492 = smul.addr %s489, 4
          %s493 = smul.addr %s492, 4
          %s494 = scalar_lea.hbm %s4, %s493
          %s495 = sshll.u32 %s494, 4
          %s496 = int_to_ptr.hbm [resolvable:$true] %s495
          %s497 = sshll.u32 %s488, 4
          %s498 = int_to_ptr.vmem [resolvable:$true] %s497
          %503 = dma.hbm_to_vmem [thread:$0]  %s496, 1024, %s498, %s485, 64, 64, 4
        $region44: #{tpu_custom_call.1} parent=23 // pred_fallthru
          _
        // Predicated region
        $region45: #{tpu_custom_call.1} parent=23 // pred_check
          %p504 = pneg %p190
        $region46: #{tpu_custom_call.1} parent=23 // pred_check_branch
          %506 = sbr.rel (%p504) target = $region48
        $region47: #{tpu_custom_call.1} parent=23 // pred_region
          %s507 = sand.u32 %s40, 1
          %s508 = scalar_lea.sflag [#allocation13], %s507
          %s509 = sand.u32 %s180, 1
          %s510 = smul.addr %s509, 64
          %s511 = scalar_lea.vmem [#allocation12], %s510
          %s512 = smul.u32 4, %s40
          %514 = vsyncadd %s508, 0
          %s515 = smul.addr %s512, 4
          %s516 = smul.addr %s515, 4
          %s517 = scalar_lea.hbm %s5, %s516
          %s518 = sshll.u32 %s517, 4
          %s519 = int_to_ptr.hbm [resolvable:$true] %s518
          %s520 = sshll.u32 %s511, 4
          %s521 = int_to_ptr.vmem [resolvable:$true] %s520
          %526 = dma.hbm_to_vmem [thread:$0]  %s519, 1024, %s521, %s508, 64, 64, 4
        $region48: #{tpu_custom_call.1} parent=23 // pred_fallthru
          _
        // Predicated region
        $region49: #{tpu_custom_call.1} parent=23 // pred_check
          %p527 = pneg %p216
        $region50: #{tpu_custom_call.1} parent=23 // pred_check_branch
          %529 = sbr.rel (%p527) target = $region52
        $region51: #{tpu_custom_call.1} parent=23 // pred_region
          %s530 = sand.u32 %s40, 1
          %s531 = scalar_lea.sflag [#allocation13], %s530
          %s532 = sand.u32 %s206, 1
          %s533 = smul.addr %s532, 64
          %s534 = scalar_lea.vmem [#allocation14], %s533
          %s535 = smul.u32 4, %s40
          %537 = vsyncadd %s531, 0
          %s538 = smul.addr %s535, 4
          %s539 = smul.addr %s538, 4
          %s540 = scalar_lea.hbm %s6, %s539
          %s541 = sshll.u32 %s540, 4
          %s542 = int_to_ptr.hbm [resolvable:$true] %s541
          %s543 = sshll.u32 %s534, 4
          %s544 = int_to_ptr.vmem [resolvable:$true] %s543
          %549 = dma.hbm_to_vmem [thread:$0]  %s542, 1024, %s544, %s531, 64, 64, 4
        $region52: #{tpu_custom_call.1} parent=23 // pred_fallthru
          _
        // Predicated region
        $region53: #{tpu_custom_call.1} parent=23 // pred_check
          %p550 = pneg %p242
        $region54: #{tpu_custom_call.1} parent=23 // pred_check_branch
          %552 = sbr.rel (%p550) target = $region56
        $region55: #{tpu_custom_call.1} parent=23 // pred_region
          %s553 = sand.u32 %s40, 1
          %s554 = scalar_lea.sflag [#allocation16], %s553
          %s555 = sand.u32 %s232, 1
          %s556 = smul.addr %s555, 64
          %s557 = scalar_lea.vmem [#allocation15], %s556
          %s558 = smul.u32 4, %s40
          %560 = vsyncadd %s554, 0
          %s561 = smul.addr %s558, 4
          %s562 = smul.addr %s561, 4
          %s563 = scalar_lea.hbm %s7, %s562
          %s564 = sshll.u32 %s563, 4
          %s565 = int_to_ptr.hbm [resolvable:$true] %s564
          %s566 = sshll.u32 %s557, 4
          %s567 = int_to_ptr.vmem [resolvable:$true] %s566
          %572 = dma.hbm_to_vmem [thread:$0]  %s565, 1024, %s567, %s554, 64, 64, 4
        $region56: #{tpu_custom_call.1} parent=23 // pred_fallthru
          _
      $region24: #{tpu_custom_call.1} parent=5 // pred_fallthru
        _
      %p573 = scmp.le.s32.totalorder 1, %s40
      %p574 = scmp.lt.s32.totalorder %s40, 3
      %p575 = pnand %p573, %p574
      %p576 = pneg %p575
      // Predicated region
      $region57: #{tpu_custom_call.1} parent=5 // pred_check
        _
      $region58: #{tpu_custom_call.1} parent=5 // pred_check_branch
        %578 = sbr.rel (%p575) target = $region60
      $region59: #{tpu_custom_call.1} parent=5 // pred_region
        %s579 = ssub.s32 %s40, 1
        %s580 = sand.u32 %s53, 1
        %s581 = scalar_lea.sflag [#allocation4], %s580
        %s582 = sand.u32 %s53, 1
        %s583 = smul.addr %s582, 64
        %s584 = scalar_lea.vmem [#allocation3], %s583
        // Predicated region
        $region61: #{tpu_custom_call.1} parent=59 // pred_check
          %p585 = pneg %p66
        $region62: #{tpu_custom_call.1} parent=59 // pred_check_branch
          %587 = sbr.rel (%p585) target = $region64
        $region63: #{tpu_custom_call.1} parent=59 // pred_region
          %589 = dma.done %s581, 1024
        $region64: #{tpu_custom_call.1} parent=59 // pred_fallthru
          _
        %s590 = sand.u32 %s45, 1
        %s591 = scalar_lea.sflag [#allocation7], %s590
        %s592 = sand.u32 %s79, 1
        %s593 = smul.addr %s592, 64
        %s594 = scalar_lea.vmem [#allocation6], %s593
        // Predicated region
        $region65: #{tpu_custom_call.1} parent=59 // pred_check
          %p595 = pneg %p92
        $region66: #{tpu_custom_call.1} parent=59 // pred_check_branch
          %597 = sbr.rel (%p595) target = $region68
        $region67: #{tpu_custom_call.1} parent=59 // pred_region
          %599 = dma.done %s591, 1024
        $region68: #{tpu_custom_call.1} parent=59 // pred_fallthru
          _
        %s600 = sand.u32 %s45, 1
        %s601 = scalar_lea.sflag [#allocation7], %s600
        %s602 = sand.u32 %s105, 1
        %s603 = smul.addr %s602, 64
        %s604 = scalar_lea.vmem [#allocation8], %s603
        // Predicated region
        $region69: #{tpu_custom_call.1} parent=59 // pred_check
          %p605 = pneg %p118
        $region70: #{tpu_custom_call.1} parent=59 // pred_check_branch
          %607 = sbr.rel (%p605) target = $region72
        $region71: #{tpu_custom_call.1} parent=59 // pred_region
          %609 = dma.done %s601, 1024
        $region72: #{tpu_custom_call.1} parent=59 // pred_fallthru
          _
        %s610 = sand.u32 %s45, 1
        %s611 = scalar_lea.sflag [#allocation10], %s610
        %s612 = sand.u32 %s131, 1
        %s613 = smul.addr %s612, 64
        %s614 = scalar_lea.vmem [#allocation9], %s613
        // Predicated region
        $region73: #{tpu_custom_call.1} parent=59 // pred_check
          %p615 = pneg %p144
        $region74: #{tpu_custom_call.1} parent=59 // pred_check_branch
          %617 = sbr.rel (%p615) target = $region76
        $region75: #{tpu_custom_call.1} parent=59 // pred_region
          %619 = dma.done %s611, 1024
        $region76: #{tpu_custom_call.1} parent=59 // pred_fallthru
          _
        %s620 = sand.u32 %s45, 1
        %s621 = scalar_lea.sflag [#allocation10], %s620
        %s622 = sand.u32 %s157, 1
        %s623 = smul.addr %s622, 64
        %s624 = scalar_lea.vmem [#allocation11], %s623
        // Predicated region
        $region77: #{tpu_custom_call.1} parent=59 // pred_check
          %p625 = pneg %p170
        $region78: #{tpu_custom_call.1} parent=59 // pred_check_branch
          %627 = sbr.rel (%p625) target = $region80
        $region79: #{tpu_custom_call.1} parent=59 // pred_region
          %629 = dma.done %s621, 1024
        $region80: #{tpu_custom_call.1} parent=59 // pred_fallthru
          _
        %s630 = sand.u32 %s45, 1
        %s631 = scalar_lea.sflag [#allocation13], %s630
        %s632 = sand.u32 %s183, 1
        %s633 = smul.addr %s632, 64
        %s634 = scalar_lea.vmem [#allocation12], %s633
        // Predicated region
        $region81: #{tpu_custom_call.1} parent=59 // pred_check
          %p635 = pneg %p196
        $region82: #{tpu_custom_call.1} parent=59 // pred_check_branch
          %637 = sbr.rel (%p635) target = $region84
        $region83: #{tpu_custom_call.1} parent=59 // pred_region
          %639 = dma.done %s631, 1024
        $region84: #{tpu_custom_call.1} parent=59 // pred_fallthru
          _
        %s640 = sand.u32 %s45, 1
        %s641 = scalar_lea.sflag [#allocation13], %s640
        %s642 = sand.u32 %s209, 1
        %s643 = smul.addr %s642, 64
        %s644 = scalar_lea.vmem [#allocation14], %s643
        // Predicated region
        $region85: #{tpu_custom_call.1} parent=59 // pred_check
          %p645 = pneg %p222
        $region86: #{tpu_custom_call.1} parent=59 // pred_check_branch
          %647 = sbr.rel (%p645) target = $region88
        $region87: #{tpu_custom_call.1} parent=59 // pred_region
          %649 = dma.done %s641, 1024
        $region88: #{tpu_custom_call.1} parent=59 // pred_fallthru
          _
        %s650 = sand.u32 %s45, 1
        %s651 = scalar_lea.sflag [#allocation16], %s650
        %s652 = sand.u32 %s235, 1
        %s653 = smul.addr %s652, 64
        %s654 = scalar_lea.vmem [#allocation15], %s653
        // Predicated region
        $region89: #{tpu_custom_call.1} parent=59 // pred_check
          %p655 = pneg %p248
        $region90: #{tpu_custom_call.1} parent=59 // pred_check_branch
          %657 = sbr.rel (%p655) target = $region92
        $region91: #{tpu_custom_call.1} parent=59 // pred_region
          %659 = dma.done %s651, 1024
        $region92: #{tpu_custom_call.1} parent=59 // pred_fallthru
          _
        // Predicated region
        $region93: #{tpu_custom_call.1} parent=59 // pred_check
          %p660 = pneg %p269
        $region94: #{tpu_custom_call.1} parent=59 // pred_check_branch
          %662 = sbr.rel (%p660) target = $region96
        $region95: #{tpu_custom_call.1} parent=59 // pred_region
          %664 = dma.done [#allocation16], 256
        $region96: #{tpu_custom_call.1} parent=59 // pred_fallthru
          _
        // Predicated region
        $region97: #{tpu_custom_call.1} parent=59 // pred_check
          %p665 = pneg %p290
        $region98: #{tpu_custom_call.1} parent=59 // pred_check_branch
          %667 = sbr.rel (%p665) target = $region100
        $region99: #{tpu_custom_call.1} parent=59 // pred_region
          %669 = dma.done [#allocation19], 256
        $region100: #{tpu_custom_call.1} parent=59 // pred_fallthru
          _
        %s670 = sand.u32 %s53, 1
        %s671 = scalar_lea.sflag [#allocation4], %s670
        %s672 = sand.u32 %s53, 1
        %s673 = smul.addr %s672, 64
        %s674 = scalar_lea.vmem [#allocation3], %s673
        %p675 = pneg %p66
        %p676 = pneg %p63
        %s677 = sand.u32 %s45, 1
        %s678 = scalar_lea.sflag [#allocation7], %s677
        %s679 = sand.u32 %s79, 1
        %s680 = smul.addr %s679, 64
        %s681 = scalar_lea.vmem [#allocation6], %s680
        %p682 = pneg %p92
        %p683 = pneg %p89
        %s684 = sand.u32 %s45, 1
        %s685 = scalar_lea.sflag [#allocation7], %s684
        %s686 = sand.u32 %s105, 1
        %s687 = smul.addr %s686, 64
        %s688 = scalar_lea.vmem [#allocation8], %s687
        %p689 = pneg %p118
        %p690 = pneg %p115
        %s691 = sand.u32 %s45, 1
        %s692 = scalar_lea.sflag [#allocation10], %s691
        %s693 = sand.u32 %s131, 1
        %s694 = smul.addr %s693, 64
        %s695 = scalar_lea.vmem [#allocation9], %s694
        %p696 = pneg %p144
        %p697 = pneg %p141
        %s698 = sand.u32 %s45, 1
        %s699 = scalar_lea.sflag [#allocation10], %s698
        %s700 = sand.u32 %s157, 1
        %s701 = smul.addr %s700, 64
        %s702 = scalar_lea.vmem [#allocation11], %s701
        %p703 = pneg %p170
        %p704 = pneg %p167
        %s705 = sand.u32 %s45, 1
        %s706 = scalar_lea.sflag [#allocation13], %s705
        %s707 = sand.u32 %s183, 1
        %s708 = smul.addr %s707, 64
        %s709 = scalar_lea.vmem [#allocation12], %s708
        %p710 = pneg %p196
        %p711 = pneg %p193
        %s712 = sand.u32 %s45, 1
        %s713 = scalar_lea.sflag [#allocation13], %s712
        %s714 = sand.u32 %s209, 1
        %s715 = smul.addr %s714, 64
        %s716 = scalar_lea.vmem [#allocation14], %s715
        %p717 = pneg %p222
        %p718 = pneg %p219
        %s719 = sand.u32 %s45, 1
        %s720 = scalar_lea.sflag [#allocation16], %s719
        %s721 = sand.u32 %s235, 1
        %s722 = smul.addr %s721, 64
        %s723 = scalar_lea.vmem [#allocation15], %s722
        %p724 = pneg %p248
        %p725 = pneg %p245
        %p726 = pneg %p269
        %p727 = pneg %p266
        %p728 = pneg %p290
        %p729 = pneg %p287
        %p730 = pneg %p316
        %p731 = pneg %p313
        %s732 = sand.u32 %s303, 1
        %s733 = scalar_lea.sflag [#allocation5], %s732
        %s734 = sand.u32 %s303, 1
        %s735 = smul.addr %s734, 4
        %s736 = scalar_lea.vmem [#allocation20], %s735
        %p737 = pneg %p342
        %p738 = pneg %p339
        %s739 = sand.u32 %s329, 1
        %s740 = scalar_lea.sflag [#allocation22], %s739
        %s741 = sand.u32 %s329, 1
        %s742 = smul.addr %s741, 4
        %s743 = scalar_lea.vmem [#allocation21], %s742
        %s744 = smul.u32 4, %s45
        %s745 = smul.u32 4, %s45
        %s746 = smul.u32 4, %s45
        %s747 = smul.u32 4, %s45
        %s748 = smul.u32 4, %s45
        %s749 = smul.u32 4, %s45
        %s750 = smul.u32 4, %s45
        %s751 = smul.u32 4, %s45
        %v753 = vld [vmem:[%s584] sm:$0xf]
        %v754 = vld [vmem:[%s584 + $0x4] sm:$0xf]
        %v755 = vld [vmem:[%s584 + $0x8] sm:$0xf]
        %v756 = vld [vmem:[%s584 + $0xc] sm:$0xf]
        %v757 = vld [vmem:[%s584 + $0x10] sm:$0xf]
        %v758 = vld [vmem:[%s584 + $0x14] sm:$0xf]
        %v759 = vld [vmem:[%s584 + $0x18] sm:$0xf]
        %v760 = vld [vmem:[%s584 + $0x1c] sm:$0xf]
        %v761 = vld [vmem:[%s584 + $0x20] sm:$0xf]
        %v762 = vld [vmem:[%s584 + $0x24] sm:$0xf]
        %v763 = vld [vmem:[%s584 + $0x28] sm:$0xf]
        %v764 = vld [vmem:[%s584 + $0x2c] sm:$0xf]
        %v765 = vld [vmem:[%s584 + $0x30] sm:$0xf]
        %v766 = vld [vmem:[%s584 + $0x34] sm:$0xf]
        %v767 = vld [vmem:[%s584 + $0x38] sm:$0xf]
        %v768 = vld [vmem:[%s584 + $0x3c] sm:$0xf]
        %v769 = vunpack.c.l.bf16 %v753
        %v770 = vunpack.c.l.bf16 %v754
        %v771 = vunpack.c.l.bf16 %v755
        %v772 = vunpack.c.l.bf16 %v756
        %v773 = vunpack.c.l.bf16 %v757
        %v774 = vunpack.c.l.bf16 %v758
        %v775 = vunpack.c.l.bf16 %v759
        %v776 = vunpack.c.l.bf16 %v760
        %v777 = vunpack.c.l.bf16 %v761
        %v778 = vunpack.c.l.bf16 %v762
        %v779 = vunpack.c.l.bf16 %v763
        %v780 = vunpack.c.l.bf16 %v764
        %v781 = vunpack.c.l.bf16 %v765
        %v782 = vunpack.c.l.bf16 %v766
        %v783 = vunpack.c.l.bf16 %v767
        %v784 = vunpack.c.l.bf16 %v768
        %v785 = vld [vmem:[#allocation17] sm:$0xf]
        %v786 = vld [vmem:[#allocation17 + $0x4] sm:$0xf]
        %v787 = vld [vmem:[#allocation17 + $0x8] sm:$0xf]
        %v788 = vld [vmem:[#allocation17 + $0xc] sm:$0xf]
        %v789 = vld [vmem:[#allocation18] sm:$0xf]
        %v790 = vld [vmem:[#allocation18 + $0x4] sm:$0xf]
        %v791 = vld [vmem:[#allocation18 + $0x8] sm:$0xf]
        %v792 = vld [vmem:[#allocation18 + $0xc] sm:$0xf]
        %v809 = vunpack.c.l.b16 %v753
        %v810 = vunpack.c.l.b16 %v754
        %v811 = vunpack.c.l.b16 %v755
        %v812 = vunpack.c.l.b16 %v756
        %v813 = vunpack.c.l.b16 %v757
        %v814 = vunpack.c.l.b16 %v758
        %v815 = vunpack.c.l.b16 %v759
        %v816 = vunpack.c.l.b16 %v760
        %v817 = vunpack.c.l.b16 %v761
        %v818 = vunpack.c.l.b16 %v762
        %v819 = vunpack.c.l.b16 %v763
        %v820 = vunpack.c.l.b16 %v764
        %v821 = vunpack.c.l.b16 %v765
        %v822 = vunpack.c.l.b16 %v766
        %v823 = vunpack.c.l.b16 %v767
        %v824 = vunpack.c.l.b16 %v768
        %v825 = vpack.c.b16 %v810, %v809
        %v826 = vpack.c.b16 %v812, %v811
        %v827 = vpack.c.b16 %v814, %v813
        %v828 = vpack.c.b16 %v816, %v815
        %v829 = vpack.c.b16 %v818, %v817
        %v830 = vpack.c.b16 %v820, %v819
        %v831 = vpack.c.b16 %v822, %v821
        %v832 = vpack.c.b16 %v824, %v823
        %v837 = vunpack.c.l.b16 %v789
        %v838 = vunpack.c.l.b16 %v790
        %v839 = vunpack.c.l.b16 %v791
        %v840 = vunpack.c.l.b16 %v792
        %v841 = vpack.c.b16 %v838, %v837
        %v842 = vpack.c.b16 %v840, %v839
        %vm845 = vcmask 261120
        %v847 = vsel %vm845, %v825, 0
        %v850 = vsel %vm845, %v826, 0
        %v853 = vsel %vm845, %v827, 0
        %v856 = vsel %vm845, %v828, 0
        %v859 = vsel %vm845, %v829, 0
        %v862 = vsel %vm845, %v830, 0
        %v865 = vsel %vm845, %v831, 0
        %v868 = vsel %vm845, %v832, 0
        %870 = vmatpush.bf16.msra.mxu0 0
        %871 = vmatpush.bf16.msra.mxu0 0
        %872 = vmatpush.bf16.msra.mxu0 0
        %873 = vmatpush.bf16.msra.mxu0 0
        %874 = vmatpush.bf16.msra.mxu0 0
        %875 = vmatpush.bf16.msra.mxu0 0
        %876 = vmatpush.bf16.msra.mxu0 %v842
        %877 = vmatpush.bf16.msra.mxu0 %v841
        %878 = vmatmul.bf16.gmra.mxu0 %v847
        %v879 = vpop.f32.mrf.mxu0
        %v880 = vadd.f32 0.0, %v879
        %v881 = vpop.f32.mrf.mxu0
        %v882 = vadd.f32 0.0, %v881
        %883 = vmatmul.bf16.gmra.mxu0 %v850
        %v884 = vpop.f32.mrf.mxu0
        %v885 = vadd.f32 0.0, %v884
        %v886 = vpop.f32.mrf.mxu0
        %v887 = vadd.f32 0.0, %v886
        %888 = vmatmul.bf16.gmra.mxu0 %v853
        %v889 = vpop.f32.mrf.mxu0
        %v890 = vadd.f32 0.0, %v889
        %v891 = vpop.f32.mrf.mxu0
        %v892 = vadd.f32 0.0, %v891
        %893 = vmatmul.bf16.gmra.mxu0 %v856
        %v894 = vpop.f32.mrf.mxu0
        %v895 = vadd.f32 0.0, %v894
        %v896 = vpop.f32.mrf.mxu0
        %v897 = vadd.f32 0.0, %v896
        %898 = vmatmul.bf16.gmra.mxu0 %v859
        %v899 = vpop.f32.mrf.mxu0
        %v900 = vadd.f32 0.0, %v899
        %v901 = vpop.f32.mrf.mxu0
        %v902 = vadd.f32 0.0, %v901
        %903 = vmatmul.bf16.gmra.mxu0 %v862
        %v904 = vpop.f32.mrf.mxu0
        %v905 = vadd.f32 0.0, %v904
        %v906 = vpop.f32.mrf.mxu0
        %v907 = vadd.f32 0.0, %v906
        %908 = vmatmul.bf16.gmra.mxu0 %v865
        %v909 = vpop.f32.mrf.mxu0
        %v910 = vadd.f32 0.0, %v909
        %v911 = vpop.f32.mrf.mxu0
        %v912 = vadd.f32 0.0, %v911
        %913 = vmatmul.bf16.gmra.mxu0 %v868
        %v914 = vpop.f32.mrf.mxu0
        %v915 = vadd.f32 0.0, %v914
        %v916 = vpop.f32.mrf.mxu0
        %v917 = vadd.f32 0.0, %v916
        %918 = vdwg.mxu0
        %v919 = vpack.c.bf16 %v880, %v880
        %v920 = vpack.c.bf16 %v882, %v882
        %v921 = vpack.c.bf16 %v885, %v885
        %v922 = vpack.c.bf16 %v887, %v887
        %v923 = vpack.c.bf16 %v890, %v890
        %v924 = vpack.c.bf16 %v892, %v892
        %v925 = vpack.c.bf16 %v895, %v895
        %v926 = vpack.c.bf16 %v897, %v897
        %v927 = vpack.c.bf16 %v900, %v900
        %v928 = vpack.c.bf16 %v902, %v902
        %v929 = vpack.c.bf16 %v905, %v905
        %v930 = vpack.c.bf16 %v907, %v907
        %v931 = vpack.c.bf16 %v910, %v910
        %v932 = vpack.c.bf16 %v912, %v912
        %v933 = vpack.c.bf16 %v915, %v915
        %v934 = vpack.c.bf16 %v917, %v917
        %v939 = vunpack.c.l.b16 %v785
        %v940 = vunpack.c.l.b16 %v786
        %v941 = vunpack.c.l.b16 %v787
        %v942 = vunpack.c.l.b16 %v788
        %v943 = vpack.c.b16 %v940, %v939
        %v944 = vpack.c.b16 %v942, %v941
        %v949 = vunpack.c.l.b16 %v919
        %v950 = vunpack.c.l.b16 %v920
        %v951 = vunpack.c.l.b16 %v921
        %v952 = vunpack.c.l.b16 %v922
        %v953 = vpack.c.b16 %v950, %v949
        %v954 = vpack.c.b16 %v952, %v951
        %v958 = vsel %vm845, %v943, 0
        %v961 = vsel %vm845, %v944, 0
        %963 = vmatpush.bf16.msra.mxu0 0
        %964 = vmatpush.bf16.msra.mxu0 0
        %965 = vmatpush.bf16.msra.mxu0 0
        %966 = vmatpush.bf16.msra.mxu0 0
        %967 = vmatpush.bf16.msra.mxu0 0
        %968 = vmatpush.bf16.msra.mxu0 0
        %969 = vmatpush.bf16.msra.mxu0 %v954
        %970 = vmatpush.bf16.msra.mxu0 %v953
        %971 = vmatmul.bf16.gmra.mxu0 %v958
        %v972 = vpop.f32.mrf.mxu0
        %v973 = vadd.f32 0.0, %v972
        %v974 = vpop.f32.mrf.mxu0
        %v975 = vadd.f32 0.0, %v974
        %976 = vmatmul.bf16.gmra.mxu0 %v961
        %v977 = vpop.f32.mrf.mxu0
        %v978 = vadd.f32 0.0, %v977
        %v979 = vpop.f32.mrf.mxu0
        %v980 = vadd.f32 0.0, %v979
        %981 = vdwg.mxu0
        %v982 = vmul.f32 %v973, 0.0010405828
        %v983 = vmul.f32 %v975, 0.0010405828
        %v984 = vmul.f32 %v978, 0.0010405828
        %v985 = vmul.f32 %v980, 0.0010405828
        %v986 = vsub.f32 %v982, %v769
        %v987 = vsub.f32 %v983, %v770
        %v988 = vsub.f32 %v984, %v771
        %v989 = vsub.f32 %v985, %v772
        %v990 = vand.u32 2147483647, %v986
        %v991 = vand.u32 2147483647, %v987
        %v992 = vand.u32 2147483647, %v988
        %v993 = vand.u32 2147483647, %v989
        %v994 = vmul.f32 %v990, 5.0
        %v995 = vmul.f32 %v991, 5.0
        %v996 = vmul.f32 %v992, 5.0
        %v997 = vmul.f32 %v993, 5.0
        %v998 = vadd.f32 %v994, 1.0
        %v999 = vadd.f32 %v995, 1.0
        %v1000 = vadd.f32 %v996, 1.0
        %v1001 = vadd.f32 %v997, 1.0
        %1002 = vst.msk [vmem:[#allocation2] sm:$0xff] %vm845, %v998
        %1003 = vst.msk [vmem:[#allocation2 + $0x8] sm:$0xff] %vm845, %v999
        %1004 = vst.msk [vmem:[#allocation2 + $0x10] sm:$0xff] %vm845, %v1000
        %1005 = vst.msk [vmem:[#allocation2 + $0x18] sm:$0xff] %vm845, %v1001
        %v1010 = vunpack.c.l.b16 %v923
        %v1011 = vunpack.c.l.b16 %v924
        %v1012 = vunpack.c.l.b16 %v925
        %v1013 = vunpack.c.l.b16 %v926
        %v1014 = vpack.c.b16 %v1011, %v1010
        %v1015 = vpack.c.b16 %v1013, %v1012
        %1018 = vmatpush.bf16.msra.mxu0 0
        %1019 = vmatpush.bf16.msra.mxu0 0
        %1020 = vmatpush.bf16.msra.mxu0 0
        %1021 = vmatpush.bf16.msra.mxu0 0
        %1022 = vmatpush.bf16.msra.mxu0 0
        %1023 = vmatpush.bf16.msra.mxu0 0
        %1024 = vmatpush.bf16.msra.mxu0 %v1015
        %1025 = vmatpush.bf16.msra.mxu0 %v1014
        %1026 = vmatmul.bf16.gmra.mxu0 %v958
        %v1027 = vpop.f32.mrf.mxu0
        %v1028 = vadd.f32 0.0, %v1027
        %v1029 = vpop.f32.mrf.mxu0
        %v1030 = vadd.f32 0.0, %v1029
        %1031 = vmatmul.bf16.gmra.mxu0 %v961
        %v1032 = vpop.f32.mrf.mxu0
        %v1033 = vadd.f32 0.0, %v1032
        %v1034 = vpop.f32.mrf.mxu0
        %v1035 = vadd.f32 0.0, %v1034
        %1036 = vdwg.mxu0
        %v1037 = vmul.f32 %v1028, 0.0010405828
        %v1038 = vmul.f32 %v1030, 0.0010405828
        %v1039 = vmul.f32 %v1033, 0.0010405828
        %v1040 = vmul.f32 %v1035, 0.0010405828
        %v1041 = vsub.f32 %v1037, %v773
        %v1042 = vsub.f32 %v1038, %v774
        %v1043 = vsub.f32 %v1039, %v775
        %v1044 = vsub.f32 %v1040, %v776
        %v1045 = vand.u32 2147483647, %v1041
        %v1046 = vand.u32 2147483647, %v1042
        %v1047 = vand.u32 2147483647, %v1043
        %v1048 = vand.u32 2147483647, %v1044
        %v1049 = vmul.f32 %v1045, 5.0
        %v1050 = vmul.f32 %v1046, 5.0
        %v1051 = vmul.f32 %v1047, 5.0
        %v1052 = vmul.f32 %v1048, 5.0
        %v1053 = vadd.f32 %v1049, 1.0
        %v1054 = vadd.f32 %v1050, 1.0
        %v1055 = vadd.f32 %v1051, 1.0
        %v1056 = vadd.f32 %v1052, 1.0
        %s1057 = scalar_lea.vmem [#allocation2], 32
        %1058 = vst.msk [vmem:[%s1057] sm:$0xff] %vm845, %v1053
        %1059 = vst.msk [vmem:[%s1057 + $0x8] sm:$0xff] %vm845, %v1054
        %1060 = vst.msk [vmem:[%s1057 + $0x10] sm:$0xff] %vm845, %v1055
        %1061 = vst.msk [vmem:[%s1057 + $0x18] sm:$0xff] %vm845, %v1056
        %v1066 = vunpack.c.l.b16 %v927
        %v1067 = vunpack.c.l.b16 %v928
        %v1068 = vunpack.c.l.b16 %v929
        %v1069 = vunpack.c.l.b16 %v930
        %v1070 = vpack.c.b16 %v1067, %v1066
        %v1071 = vpack.c.b16 %v1069, %v1068
        %1074 = vmatpush.bf16.msra.mxu0 0
        %1075 = vmatpush.bf16.msra.mxu0 0
        %1076 = vmatpush.bf16.msra.mxu0 0
        %1077 = vmatpush.bf16.msra.mxu0 0
        %1078 = vmatpush.bf16.msra.mxu0 0
        %1079 = vmatpush.bf16.msra.mxu0 0
        %1080 = vmatpush.bf16.msra.mxu0 %v1071
        %1081 = vmatpush.bf16.msra.mxu0 %v1070
        %1082 = vmatmul.bf16.gmra.mxu0 %v958
        %v1083 = vpop.f32.mrf.mxu0
        %v1084 = vadd.f32 0.0, %v1083
        %v1085 = vpop.f32.mrf.mxu0
        %v1086 = vadd.f32 0.0, %v1085
        %1087 = vmatmul.bf16.gmra.mxu0 %v961
        %v1088 = vpop.f32.mrf.mxu0
        %v1089 = vadd.f32 0.0, %v1088
        %v1090 = vpop.f32.mrf.mxu0
        %v1091 = vadd.f32 0.0, %v1090
        %1092 = vdwg.mxu0
        %v1093 = vmul.f32 %v1084, 0.0010405828
        %v1094 = vmul.f32 %v1086, 0.0010405828
        %v1095 = vmul.f32 %v1089, 0.0010405828
        %v1096 = vmul.f32 %v1091, 0.0010405828
        %v1097 = vsub.f32 %v1093, %v777
        %v1098 = vsub.f32 %v1094, %v778
        %v1099 = vsub.f32 %v1095, %v779
        %v1100 = vsub.f32 %v1096, %v780
        %v1101 = vand.u32 2147483647, %v1097
        %v1102 = vand.u32 2147483647, %v1098
        %v1103 = vand.u32 2147483647, %v1099
        %v1104 = vand.u32 2147483647, %v1100
        %v1105 = vmul.f32 %v1101, 5.0
        %v1106 = vmul.f32 %v1102, 5.0
        %v1107 = vmul.f32 %v1103, 5.0
        %v1108 = vmul.f32 %v1104, 5.0
        %v1109 = vadd.f32 %v1105, 1.0
        %v1110 = vadd.f32 %v1106, 1.0
        %v1111 = vadd.f32 %v1107, 1.0
        %v1112 = vadd.f32 %v1108, 1.0
        %s1113 = scalar_lea.vmem [#allocation2], 64
        %1114 = vst.msk [vmem:[%s1113] sm:$0xff] %vm845, %v1109
        %1115 = vst.msk [vmem:[%s1113 + $0x8] sm:$0xff] %vm845, %v1110
        %1116 = vst.msk [vmem:[%s1113 + $0x10] sm:$0xff] %vm845, %v1111
        %1117 = vst.msk [vmem:[%s1113 + $0x18] sm:$0xff] %vm845, %v1112
        %v1122 = vunpack.c.l.b16 %v931
        %v1123 = vunpack.c.l.b16 %v932
        %v1124 = vunpack.c.l.b16 %v933
        %v1125 = vunpack.c.l.b16 %v934
        %v1126 = vpack.c.b16 %v1123, %v1122
        %v1127 = vpack.c.b16 %v1125, %v1124
        %1130 = vmatpush.bf16.msra.mxu0 0
        %1131 = vmatpush.bf16.msra.mxu0 0
        %1132 = vmatpush.bf16.msra.mxu0 0
        %1133 = vmatpush.bf16.msra.mxu0 0
        %1134 = vmatpush.bf16.msra.mxu0 0
        %1135 = vmatpush.bf16.msra.mxu0 0
        %1136 = vmatpush.bf16.msra.mxu0 %v1127
        %1137 = vmatpush.bf16.msra.mxu0 %v1126
        %1138 = vmatmul.bf16.gmra.mxu0 %v958
        %v1139 = vpop.f32.mrf.mxu0
        %v1140 = vadd.f32 0.0, %v1139
        %v1141 = vpop.f32.mrf.mxu0
        %v1142 = vadd.f32 0.0, %v1141
        %1143 = vmatmul.bf16.gmra.mxu0 %v961
        %v1144 = vpop.f32.mrf.mxu0
        %v1145 = vadd.f32 0.0, %v1144
        %v1146 = vpop.f32.mrf.mxu0
        %v1147 = vadd.f32 0.0, %v1146
        %1148 = vdwg.mxu0
        %v1149 = vmul.f32 %v1140, 0.0010405828
        %v1150 = vmul.f32 %v1142, 0.0010405828
        %v1151 = vmul.f32 %v1145, 0.0010405828
        %v1152 = vmul.f32 %v1147, 0.0010405828
        %v1153 = vsub.f32 %v1149, %v781
        %v1154 = vsub.f32 %v1150, %v782
        %v1155 = vsub.f32 %v1151, %v783
        %v1156 = vsub.f32 %v1152, %v784
        %v1157 = vand.u32 2147483647, %v1153
        %v1158 = vand.u32 2147483647, %v1154
        %v1159 = vand.u32 2147483647, %v1155
        %v1160 = vand.u32 2147483647, %v1156
        %v1161 = vmul.f32 %v1157, 5.0
        %v1162 = vmul.f32 %v1158, 5.0
        %v1163 = vmul.f32 %v1159, 5.0
        %v1164 = vmul.f32 %v1160, 5.0
        %v1165 = vadd.f32 %v1161, 1.0
        %v1166 = vadd.f32 %v1162, 1.0
        %v1167 = vadd.f32 %v1163, 1.0
        %v1168 = vadd.f32 %v1164, 1.0
        %s1169 = scalar_lea.vmem [#allocation2], 96
        %1170 = vst.msk [vmem:[%s1169] sm:$0xff] %vm845, %v1165
        %1171 = vst.msk [vmem:[%s1169 + $0x8] sm:$0xff] %vm845, %v1166
        %1172 = vst.msk [vmem:[%s1169 + $0x10] sm:$0xff] %vm845, %v1167
        %1173 = vst.msk [vmem:[%s1169 + $0x18] sm:$0xff] %vm845, %v1168
        %v1174 = vld [vmem:[#allocation2] sm:$0xff]
        %v1175 = vld [vmem:[#allocation2 + $0x8] sm:$0xff]
        %v1176 = vld [vmem:[#allocation2 + $0x10] sm:$0xff]
        %v1177 = vld [vmem:[#allocation2 + $0x18] sm:$0xff]
        %v1178 = vld [vmem:[#allocation2 + $0x20] sm:$0xff]
        %v1179 = vld [vmem:[#allocation2 + $0x28] sm:$0xff]
        %v1180 = vld [vmem:[#allocation2 + $0x30] sm:$0xff]
        %v1181 = vld [vmem:[#allocation2 + $0x38] sm:$0xff]
        %v1182 = vld [vmem:[#allocation2 + $0x40] sm:$0xff]
        %v1183 = vld [vmem:[#allocation2 + $0x48] sm:$0xff]
        %v1184 = vld [vmem:[#allocation2 + $0x50] sm:$0xff]
        %v1185 = vld [vmem:[#allocation2 + $0x58] sm:$0xff]
        %v1186 = vld [vmem:[#allocation2 + $0x60] sm:$0xff]
        %v1187 = vld [vmem:[#allocation2 + $0x68] sm:$0xff]
        %v1188 = vld [vmem:[#allocation2 + $0x70] sm:$0xff]
        %v1189 = vld [vmem:[#allocation2 + $0x78] sm:$0xff]
        %v1190 = vmul.f32 %v769, %v1174
        %v1191 = vmul.f32 %v770, %v1175
        %v1192 = vmul.f32 %v771, %v1176
        %v1193 = vmul.f32 %v772, %v1177
        %v1194 = vmul.f32 %v773, %v1178
        %v1195 = vmul.f32 %v774, %v1179
        %v1196 = vmul.f32 %v775, %v1180
        %v1197 = vmul.f32 %v776, %v1181
        %v1198 = vmul.f32 %v777, %v1182
        %v1199 = vmul.f32 %v778, %v1183
        %v1200 = vmul.f32 %v779, %v1184
        %v1201 = vmul.f32 %v780, %v1185
        %v1202 = vmul.f32 %v781, %v1186
        %v1203 = vmul.f32 %v782, %v1187
        %v1204 = vmul.f32 %v783, %v1188
        %v1205 = vmul.f32 %v784, %v1189
        %v1206 = vsel %vm845, %v1190, 0.0
        %v1207 = vsel %vm845, %v1191, 0.0
        %v1208 = vadd.f32 %v1206, %v1207
        %v1209 = vsel %vm845, %v1192, 0.0
        %v1210 = vadd.f32 %v1208, %v1209
        %v1211 = vsel %vm845, %v1193, 0.0
        %v1212 = vadd.f32 %v1210, %v1211
        %v1213 = vrot.slane %v1212, 4
        %v1214 = vadd.f32 %v1212, %v1213
        %v1215 = vrot.slane %v1214, 2
        %v1216 = vadd.f32 %v1214, %v1215
        %v1217 = vrot.slane %v1216, 1
        %v1218 = vadd.f32 %v1216, %v1217
        %v1219 = vsel %vm845, %v1194, 0.0
        %v1220 = vsel %vm845, %v1195, 0.0
        %v1221 = vadd.f32 %v1219, %v1220
        %v1222 = vsel %vm845, %v1196, 0.0
        %v1223 = vadd.f32 %v1221, %v1222
        %v1224 = vsel %vm845, %v1197, 0.0
        %v1225 = vadd.f32 %v1223, %v1224
        %v1226 = vrot.slane %v1225, 4
        %v1227 = vadd.f32 %v1225, %v1226
        %v1228 = vrot.slane %v1227, 2
        %v1229 = vadd.f32 %v1227, %v1228
        %v1230 = vrot.slane %v1229, 1
        %v1231 = vadd.f32 %v1229, %v1230
        %v1232 = vsel %vm845, %v1198, 0.0
        %v1233 = vsel %vm845, %v1199, 0.0
        %v1234 = vadd.f32 %v1232, %v1233
        %v1235 = vsel %vm845, %v1200, 0.0
        %v1236 = vadd.f32 %v1234, %v1235
        %v1237 = vsel %vm845, %v1201, 0.0
        %v1238 = vadd.f32 %v1236, %v1237
        %v1239 = vrot.slane %v1238, 4
        %v1240 = vadd.f32 %v1238, %v1239
        %v1241 = vrot.slane %v1240, 2
        %v1242 = vadd.f32 %v1240, %v1241
        %v1243 = vrot.slane %v1242, 1
        %v1244 = vadd.f32 %v1242, %v1243
        %v1245 = vsel %vm845, %v1202, 0.0
        %v1246 = vsel %vm845, %v1203, 0.0
        %v1247 = vadd.f32 %v1245, %v1246
        %v1248 = vsel %vm845, %v1204, 0.0
        %v1249 = vadd.f32 %v1247, %v1248
        %v1250 = vsel %vm845, %v1205, 0.0
        %v1251 = vadd.f32 %v1249, %v1250
        %v1252 = vrot.slane %v1251, 4
        %v1253 = vadd.f32 %v1251, %v1252
        %v1254 = vrot.slane %v1253, 2
        %v1255 = vadd.f32 %v1253, %v1254
        %v1256 = vrot.slane %v1255, 1
        %v1257 = vadd.f32 %v1255, %v1256
        %vm1262 = vcmask 1041409
        %v1263 = vsel %vm1262, %v1231, %v1218
        %vm1264 = vcmask 1042434
        %v1265 = vsel %vm1264, %v1244, %v1263
        %vm1266 = vcmask 1043459
        %v1267 = vsel %vm1266, %v1257, %v1265
        %vm1269 = vcmask 257024
        %v1270 = vsel %vm1269, %v1267, 0.0
        %1271 = vadd.xlane.f32.xlu0 %v1270
        %v1272 = vpop.xlane.xlu0 %1271
        %v1273 = vld [vmem:[%s594] sm:$0xf]
        %v1274 = vld [vmem:[%s594 + $0x4] sm:$0xf]
        %v1275 = vld [vmem:[%s594 + $0x8] sm:$0xf]
        %v1276 = vld [vmem:[%s594 + $0xc] sm:$0xf]
        %v1277 = vld [vmem:[%s594 + $0x10] sm:$0xf]
        %v1278 = vld [vmem:[%s594 + $0x14] sm:$0xf]
        %v1279 = vld [vmem:[%s594 + $0x18] sm:$0xf]
        %v1280 = vld [vmem:[%s594 + $0x1c] sm:$0xf]
        %v1281 = vld [vmem:[%s594 + $0x20] sm:$0xf]
        %v1282 = vld [vmem:[%s594 + $0x24] sm:$0xf]
        %v1283 = vld [vmem:[%s594 + $0x28] sm:$0xf]
        %v1284 = vld [vmem:[%s594 + $0x2c] sm:$0xf]
        %v1285 = vld [vmem:[%s594 + $0x30] sm:$0xf]
        %v1286 = vld [vmem:[%s594 + $0x34] sm:$0xf]
        %v1287 = vld [vmem:[%s594 + $0x38] sm:$0xf]
        %v1288 = vld [vmem:[%s594 + $0x3c] sm:$0xf]
        %v1289 = vunpack.c.l.bf16 %v1273
        %v1290 = vunpack.c.l.bf16 %v1274
        %v1291 = vunpack.c.l.bf16 %v1275
        %v1292 = vunpack.c.l.bf16 %v1276
        %v1293 = vunpack.c.l.bf16 %v1277
        %v1294 = vunpack.c.l.bf16 %v1278
        %v1295 = vunpack.c.l.bf16 %v1279
        %v1296 = vunpack.c.l.bf16 %v1280
        %v1297 = vunpack.c.l.bf16 %v1281
        %v1298 = vunpack.c.l.bf16 %v1282
        %v1299 = vunpack.c.l.bf16 %v1283
        %v1300 = vunpack.c.l.bf16 %v1284
        %v1301 = vunpack.c.l.bf16 %v1285
        %v1302 = vunpack.c.l.bf16 %v1286
        %v1303 = vunpack.c.l.bf16 %v1287
        %v1304 = vunpack.c.l.bf16 %v1288
        %v1305 = vand.u32 2147483647, %v1289
        %v1306 = vand.u32 2147483647, %v1290
        %v1307 = vand.u32 2147483647, %v1291
        %v1308 = vand.u32 2147483647, %v1292
        %v1309 = vand.u32 2147483647, %v1293
        %v1310 = vand.u32 2147483647, %v1294
        %v1311 = vand.u32 2147483647, %v1295
        %v1312 = vand.u32 2147483647, %v1296
        %v1313 = vand.u32 2147483647, %v1297
        %v1314 = vand.u32 2147483647, %v1298
        %v1315 = vand.u32 2147483647, %v1299
        %v1316 = vand.u32 2147483647, %v1300
        %v1317 = vand.u32 2147483647, %v1301
        %v1318 = vand.u32 2147483647, %v1302
        %v1319 = vand.u32 2147483647, %v1303
        %v1320 = vand.u32 2147483647, %v1304
        %v1321 = vsub.f32 0.0, %v1305
        %v1322 = vsub.f32 0.0, %v1306
        %v1323 = vsub.f32 0.0, %v1307
        %v1324 = vsub.f32 0.0, %v1308
        %v1325 = vsub.f32 0.0, %v1309
        %v1326 = vsub.f32 0.0, %v1310
        %v1327 = vsub.f32 0.0, %v1311
        %v1328 = vsub.f32 0.0, %v1312
        %v1329 = vsub.f32 0.0, %v1313
        %v1330 = vsub.f32 0.0, %v1314
        %v1331 = vsub.f32 0.0, %v1315
        %v1332 = vsub.f32 0.0, %v1316
        %v1333 = vsub.f32 0.0, %v1317
        %v1334 = vsub.f32 0.0, %v1318
        %v1335 = vsub.f32 0.0, %v1319
        %v1336 = vsub.f32 0.0, %v1320
        %v1337 = vmul.f32 %v1321, 1.442695
        %v1338 = vpow.pop %v1337
        %v1339 = vmul.f32 %v1322, 1.442695
        %v1340 = vpow.pop %v1339
        %v1341 = vmul.f32 %v1323, 1.442695
        %v1342 = vpow.pop %v1341
        %v1343 = vmul.f32 %v1324, 1.442695
        %v1344 = vpow.pop %v1343
        %v1345 = vmul.f32 %v1325, 1.442695
        %v1346 = vpow.pop %v1345
        %v1347 = vmul.f32 %v1326, 1.442695
        %v1348 = vpow.pop %v1347
        %v1349 = vmul.f32 %v1327, 1.442695
        %v1350 = vpow.pop %v1349
        %v1351 = vmul.f32 %v1328, 1.442695
        %v1352 = vpow.pop %v1351
        %v1353 = vmul.f32 %v1329, 1.442695
        %v1354 = vpow.pop %v1353
        %v1355 = vmul.f32 %v1330, 1.442695
        %v1356 = vpow.pop %v1355
        %v1357 = vmul.f32 %v1331, 1.442695
        %v1358 = vpow.pop %v1357
        %v1359 = vmul.f32 %v1332, 1.442695
        %v1360 = vpow.pop %v1359
        %v1361 = vmul.f32 %v1333, 1.442695
        %v1362 = vpow.pop %v1361
        %v1363 = vmul.f32 %v1334, 1.442695
        %v1364 = vpow.pop %v1363
        %v1365 = vmul.f32 %v1335, 1.442695
        %v1366 = vpow.pop %v1365
        %v1367 = vmul.f32 %v1336, 1.442695
        %v1368 = vpow.pop %v1367
        %v1369 = vadd.f32 %v1338, 1.0
        %v1370 = vadd.f32 %v1340, 1.0
        %v1371 = vadd.f32 %v1342, 1.0
        %v1372 = vadd.f32 %v1344, 1.0
        %v1373 = vadd.f32 %v1346, 1.0
        %v1374 = vadd.f32 %v1348, 1.0
        %v1375 = vadd.f32 %v1350, 1.0
        %v1376 = vadd.f32 %v1352, 1.0
        %v1377 = vadd.f32 %v1354, 1.0
        %v1378 = vadd.f32 %v1356, 1.0
        %v1379 = vadd.f32 %v1358, 1.0
        %v1380 = vadd.f32 %v1360, 1.0
        %v1381 = vadd.f32 %v1362, 1.0
        %v1382 = vadd.f32 %v1364, 1.0
        %v1383 = vadd.f32 %v1366, 1.0
        %v1384 = vadd.f32 %v1368, 1.0
        %v1385 = vmax.f32 %v1289, 0.0
        %v1386 = vmax.f32 %v1290, 0.0
        %v1387 = vmax.f32 %v1291, 0.0
        %v1388 = vmax.f32 %v1292, 0.0
        %v1389 = vmax.f32 %v1293, 0.0
        %v1390 = vmax.f32 %v1294, 0.0
        %v1391 = vmax.f32 %v1295, 0.0
        %v1392 = vmax.f32 %v1296, 0.0
        %v1393 = vmax.f32 %v1297, 0.0
        %v1394 = vmax.f32 %v1298, 0.0
        %v1395 = vmax.f32 %v1299, 0.0
        %v1396 = vmax.f32 %v1300, 0.0
        %v1397 = vmax.f32 %v1301, 0.0
        %v1398 = vmax.f32 %v1302, 0.0
        %v1399 = vmax.f32 %v1303, 0.0
        %v1400 = vmax.f32 %v1304, 0.0
        %v1401 = vmul.f32 %v1289, %v769
        %v1402 = vmul.f32 %v1290, %v770
        %v1403 = vmul.f32 %v1291, %v771
        %v1404 = vmul.f32 %v1292, %v772
        %v1405 = vmul.f32 %v1293, %v773
        %v1406 = vmul.f32 %v1294, %v774
        %v1407 = vmul.f32 %v1295, %v775
        %v1408 = vmul.f32 %v1296, %v776
        %v1409 = vmul.f32 %v1297, %v777
        %v1410 = vmul.f32 %v1298, %v778
        %v1411 = vmul.f32 %v1299, %v779
        %v1412 = vmul.f32 %v1300, %v780
        %v1413 = vmul.f32 %v1301, %v781
        %v1414 = vmul.f32 %v1302, %v782
        %v1415 = vmul.f32 %v1303, %v783
        %v1416 = vmul.f32 %v1304, %v784
        %v1417 = vsub.f32 %v1385, %v1401
        %v1418 = vsub.f32 %v1386, %v1402
        %v1419 = vsub.f32 %v1387, %v1403
        %v1420 = vsub.f32 %v1388, %v1404
        %v1421 = vsub.f32 %v1389, %v1405
        %v1422 = vsub.f32 %v1390, %v1406
        %v1423 = vsub.f32 %v1391, %v1407
        %v1424 = vsub.f32 %v1392, %v1408
        %v1425 = vsub.f32 %v1393, %v1409
        %v1426 = vsub.f32 %v1394, %v1410
        %v1427 = vsub.f32 %v1395, %v1411
        %v1428 = vsub.f32 %v1396, %v1412
        %v1429 = vsub.f32 %v1397, %v1413
        %v1430 = vsub.f32 %v1398, %v1414
        %v1431 = vsub.f32 %v1399, %v1415
        %v1432 = vsub.f32 %v1400, %v1416
        %v1433 = vlog2.pop %v1369
        %v1434 = vmul.f32 %v1433, 0.6931472
        %v1435 = vlog2.pop %v1370
        %v1436 = vmul.f32 %v1435, 0.6931472
        %v1437 = vlog2.pop %v1371
        %v1438 = vmul.f32 %v1437, 0.6931472
        %v1439 = vlog2.pop %v1372
        %v1440 = vmul.f32 %v1439, 0.6931472
        %v1441 = vlog2.pop %v1373
        %v1442 = vmul.f32 %v1441, 0.6931472
        %v1443 = vlog2.pop %v1374
        %v1444 = vmul.f32 %v1443, 0.6931472
        %v1445 = vlog2.pop %v1375
        %v1446 = vmul.f32 %v1445, 0.6931472
        %v1447 = vlog2.pop %v1376
        %v1448 = vmul.f32 %v1447, 0.6931472
        %v1449 = vlog2.pop %v1377
        %v1450 = vmul.f32 %v1449, 0.6931472
        %v1451 = vlog2.pop %v1378
        %v1452 = vmul.f32 %v1451, 0.6931472
        %v1453 = vlog2.pop %v1379
        %v1454 = vmul.f32 %v1453, 0.6931472
        %v1455 = vlog2.pop %v1380
        %v1456 = vmul.f32 %v1455, 0.6931472
        %v1457 = vlog2.pop %v1381
        %v1458 = vmul.f32 %v1457, 0.6931472
        %v1459 = vlog2.pop %v1382
        %v1460 = vmul.f32 %v1459, 0.6931472
        %v1461 = vlog2.pop %v1383
        %v1462 = vmul.f32 %v1461, 0.6931472
        %v1463 = vlog2.pop %v1384
        %v1464 = vmul.f32 %v1463, 0.6931472
        %v1465 = vadd.f32 %v1417, %v1434
        %v1466 = vadd.f32 %v1418, %v1436
        %v1467 = vadd.f32 %v1419, %v1438
        %v1468 = vadd.f32 %v1420, %v1440
        %v1469 = vadd.f32 %v1421, %v1442
        %v1470 = vadd.f32 %v1422, %v1444
        %v1471 = vadd.f32 %v1423, %v1446
        %v1472 = vadd.f32 %v1424, %v1448
        %v1473 = vadd.f32 %v1425, %v1450
        %v1474 = vadd.f32 %v1426, %v1452
        %v1475 = vadd.f32 %v1427, %v1454
        %v1476 = vadd.f32 %v1428, %v1456
        %v1477 = vadd.f32 %v1429, %v1458
        %v1478 = vadd.f32 %v1430, %v1460
        %v1479 = vadd.f32 %v1431, %v1462
        %v1480 = vadd.f32 %v1432, %v1464
        %v1481 = vsel %vm845, %v1465, 0.0
        %v1482 = vsel %vm845, %v1466, 0.0
        %v1483 = vadd.f32 %v1481, %v1482
        %v1484 = vsel %vm845, %v1467, 0.0
        %v1485 = vadd.f32 %v1483, %v1484
        %v1486 = vsel %vm845, %v1468, 0.0
        %v1487 = vadd.f32 %v1485, %v1486
        %v1488 = vrot.slane %v1487, 4
        %v1489 = vadd.f32 %v1487, %v1488
        %v1490 = vrot.slane %v1489, 2
        %v1491 = vadd.f32 %v1489, %v1490
        %v1492 = vrot.slane %v1491, 1
        %v1493 = vadd.f32 %v1491, %v1492
        %v1494 = vsel %vm845, %v1469, 0.0
        %v1495 = vsel %vm845, %v1470, 0.0
        %v1496 = vadd.f32 %v1494, %v1495
        %v1497 = vsel %vm845, %v1471, 0.0
        %v1498 = vadd.f32 %v1496, %v1497
        %v1499 = vsel %vm845, %v1472, 0.0
        %v1500 = vadd.f32 %v1498, %v1499
        %v1501 = vrot.slane %v1500, 4
        %v1502 = vadd.f32 %v1500, %v1501
        %v1503 = vrot.slane %v1502, 2
        %v1504 = vadd.f32 %v1502, %v1503
        %v1505 = vrot.slane %v1504, 1
        %v1506 = vadd.f32 %v1504, %v1505
        %v1507 = vsel %vm845, %v1473, 0.0
        %v1508 = vsel %vm845, %v1474, 0.0
        %v1509 = vadd.f32 %v1507, %v1508
        %v1510 = vsel %vm845, %v1475, 0.0
        %v1511 = vadd.f32 %v1509, %v1510
        %v1512 = vsel %vm845, %v1476, 0.0
        %v1513 = vadd.f32 %v1511, %v1512
        %v1514 = vrot.slane %v1513, 4
        %v1515 = vadd.f32 %v1513, %v1514
        %v1516 = vrot.slane %v1515, 2
        %v1517 = vadd.f32 %v1515, %v1516
        %v1518 = vrot.slane %v1517, 1
        %v1519 = vadd.f32 %v1517, %v1518
        %v1520 = vsel %vm845, %v1477, 0.0
        %v1521 = vsel %vm845, %v1478, 0.0
        %v1522 = vadd.f32 %v1520, %v1521
        %v1523 = vsel %vm845, %v1479, 0.0
        %v1524 = vadd.f32 %v1522, %v1523
        %v1525 = vsel %vm845, %v1480, 0.0
        %v1526 = vadd.f32 %v1524, %v1525
        %v1527 = vrot.slane %v1526, 4
        %v1528 = vadd.f32 %v1526, %v1527
        %v1529 = vrot.slane %v1528, 2
        %v1530 = vadd.f32 %v1528, %v1529
        %v1531 = vrot.slane %v1530, 1
        %v1532 = vadd.f32 %v1530, %v1531
        %v1537 = vsel %vm1262, %v1506, %v1493
        %v1538 = vsel %vm1264, %v1519, %v1537
        %v1539 = vsel %vm1266, %v1532, %v1538
        %v1541 = vsel %vm1269, %v1539, 0.0
        %1542 = vadd.xlane.f32.xlu0 %v1541
        %v1543 = vpop.xlane.xlu0 %1542
        %v1544 = vmul.f32 %v1543, 0.0009765625
        %v1545 = vrcp.pop %v1369
        %v1546 = vrcp.pop %v1370
        %v1547 = vrcp.pop %v1371
        %v1548 = vrcp.pop %v1372
        %v1549 = vrcp.pop %v1373
        %v1550 = vrcp.pop %v1374
        %v1551 = vrcp.pop %v1375
        %v1552 = vrcp.pop %v1376
        %v1553 = vrcp.pop %v1377
        %v1554 = vrcp.pop %v1378
        %v1555 = vrcp.pop %v1379
        %v1556 = vrcp.pop %v1380
        %v1557 = vrcp.pop %v1381
        %v1558 = vrcp.pop %v1382
        %v1559 = vrcp.pop %v1383
        %v1560 = vrcp.pop %v1384
        %v1561 = vmul.f32 %v1369, %v1545
        %v1562 = vmul.f32 %v1370, %v1546
        %v1563 = vmul.f32 %v1371, %v1547
        %v1564 = vmul.f32 %v1372, %v1548
        %v1565 = vmul.f32 %v1373, %v1549
        %v1566 = vmul.f32 %v1374, %v1550
        %v1567 = vmul.f32 %v1375, %v1551
        %v1568 = vmul.f32 %v1376, %v1552
        %v1569 = vmul.f32 %v1377, %v1553
        %v1570 = vmul.f32 %v1378, %v1554
        %v1571 = vmul.f32 %v1379, %v1555
        %v1572 = vmul.f32 %v1380, %v1556
        %v1573 = vmul.f32 %v1381, %v1557
        %v1574 = vmul.f32 %v1382, %v1558
        %v1575 = vmul.f32 %v1383, %v1559
        %v1576 = vmul.f32 %v1384, %v1560
        %v1577 = vsub.f32 2.0, %v1561
        %v1578 = vsub.f32 2.0, %v1562
        %v1579 = vsub.f32 2.0, %v1563
        %v1580 = vsub.f32 2.0, %v1564
        %v1581 = vsub.f32 2.0, %v1565
        %v1582 = vsub.f32 2.0, %v1566
        %v1583 = vsub.f32 2.0, %v1567
        %v1584 = vsub.f32 2.0, %v1568
        %v1585 = vsub.f32 2.0, %v1569
        %v1586 = vsub.f32 2.0, %v1570
        %v1587 = vsub.f32 2.0, %v1571
        %v1588 = vsub.f32 2.0, %v1572
        %v1589 = vsub.f32 2.0, %v1573
        %v1590 = vsub.f32 2.0, %v1574
        %v1591 = vsub.f32 2.0, %v1575
        %v1592 = vsub.f32 2.0, %v1576
        %v1593 = vmul.f32 %v1545, %v1577
        %v1594 = vmul.f32 %v1546, %v1578
        %v1595 = vmul.f32 %v1547, %v1579
        %v1596 = vmul.f32 %v1548, %v1580
        %v1597 = vmul.f32 %v1549, %v1581
        %v1598 = vmul.f32 %v1550, %v1582
        %v1599 = vmul.f32 %v1551, %v1583
        %v1600 = vmul.f32 %v1552, %v1584
        %v1601 = vmul.f32 %v1553, %v1585
        %v1602 = vmul.f32 %v1554, %v1586
        %v1603 = vmul.f32 %v1555, %v1587
        %v1604 = vmul.f32 %v1556, %v1588
        %v1605 = vmul.f32 %v1557, %v1589
        %v1606 = vmul.f32 %v1558, %v1590
        %v1607 = vmul.f32 %v1559, %v1591
        %v1608 = vmul.f32 %v1560, %v1592
        %vm1609 = vcmp.ge.f32.partialorder %v1289, 0.0
        %vm1610 = vcmp.ge.f32.partialorder %v1290, 0.0
        %vm1611 = vcmp.ge.f32.partialorder %v1291, 0.0
        %vm1612 = vcmp.ge.f32.partialorder %v1292, 0.0
        %vm1613 = vcmp.ge.f32.partialorder %v1293, 0.0
        %vm1614 = vcmp.ge.f32.partialorder %v1294, 0.0
        %vm1615 = vcmp.ge.f32.partialorder %v1295, 0.0
        %vm1616 = vcmp.ge.f32.partialorder %v1296, 0.0
        %vm1617 = vcmp.ge.f32.partialorder %v1297, 0.0
        %vm1618 = vcmp.ge.f32.partialorder %v1298, 0.0
        %vm1619 = vcmp.ge.f32.partialorder %v1299, 0.0
        %vm1620 = vcmp.ge.f32.partialorder %v1300, 0.0
        %vm1621 = vcmp.ge.f32.partialorder %v1301, 0.0
        %vm1622 = vcmp.ge.f32.partialorder %v1302, 0.0
        %vm1623 = vcmp.ge.f32.partialorder %v1303, 0.0
        %vm1624 = vcmp.ge.f32.partialorder %v1304, 0.0
        %v1625 = vmul.f32 %v1338, %v1593
        %v1626 = vmul.f32 %v1340, %v1594
        %v1627 = vmul.f32 %v1342, %v1595
        %v1628 = vmul.f32 %v1344, %v1596
        %v1629 = vmul.f32 %v1346, %v1597
        %v1630 = vmul.f32 %v1348, %v1598
        %v1631 = vmul.f32 %v1350, %v1599
        %v1632 = vmul.f32 %v1352, %v1600
        %v1633 = vmul.f32 %v1354, %v1601
        %v1634 = vmul.f32 %v1356, %v1602
        %v1635 = vmul.f32 %v1358, %v1603
        %v1636 = vmul.f32 %v1360, %v1604
        %v1637 = vmul.f32 %v1362, %v1605
        %v1638 = vmul.f32 %v1364, %v1606
        %v1639 = vmul.f32 %v1366, %v1607
        %v1640 = vmul.f32 %v1368, %v1608
        %v1641 = vsel %vm1609, %v1593, %v1625
        %v1642 = vsel %vm1610, %v1594, %v1626
        %v1643 = vsel %vm1611, %v1595, %v1627
        %v1644 = vsel %vm1612, %v1596, %v1628
        %v1645 = vsel %vm1613, %v1597, %v1629
        %v1646 = vsel %vm1614, %v1598, %v1630
        %v1647 = vsel %vm1615, %v1599, %v1631
        %v1648 = vsel %vm1616, %v1600, %v1632
        %v1649 = vsel %vm1617, %v1601, %v1633
        %v1650 = vsel %vm1618, %v1602, %v1634
        %v1651 = vsel %vm1619, %v1603, %v1635
        %v1652 = vsel %vm1620, %v1604, %v1636
        %v1653 = vsel %vm1621, %v1605, %v1637
        %v1654 = vsel %vm1622, %v1606, %v1638
        %v1655 = vsel %vm1623, %v1607, %v1639
        %v1656 = vsel %vm1624, %v1608, %v1640
        %v1657 = vmul.f32 %v1641, %v1190
        %v1658 = vmul.f32 %v1642, %v1191
        %v1659 = vmul.f32 %v1643, %v1192
        %v1660 = vmul.f32 %v1644, %v1193
        %v1661 = vmul.f32 %v1645, %v1194
        %v1662 = vmul.f32 %v1646, %v1195
        %v1663 = vmul.f32 %v1647, %v1196
        %v1664 = vmul.f32 %v1648, %v1197
        %v1665 = vmul.f32 %v1649, %v1198
        %v1666 = vmul.f32 %v1650, %v1199
        %v1667 = vmul.f32 %v1651, %v1200
        %v1668 = vmul.f32 %v1652, %v1201
        %v1669 = vmul.f32 %v1653, %v1202
        %v1670 = vmul.f32 %v1654, %v1203
        %v1671 = vmul.f32 %v1655, %v1204
        %v1672 = vmul.f32 %v1656, %v1205
        %v1673 = vsel %vm845, %v1657, 0.0
        %v1674 = vsel %vm845, %v1658, 0.0
        %v1675 = vadd.f32 %v1673, %v1674
        %v1676 = vsel %vm845, %v1659, 0.0
        %v1677 = vadd.f32 %v1675, %v1676
        %v1678 = vsel %vm845, %v1660, 0.0
        %v1679 = vadd.f32 %v1677, %v1678
        %v1680 = vrot.slane %v1679, 4
        %v1681 = vadd.f32 %v1679, %v1680
        %v1682 = vrot.slane %v1681, 2
        %v1683 = vadd.f32 %v1681, %v1682
        %v1684 = vrot.slane %v1683, 1
        %v1685 = vadd.f32 %v1683, %v1684
        %v1686 = vsel %vm845, %v1661, 0.0
        %v1687 = vsel %vm845, %v1662, 0.0
        %v1688 = vadd.f32 %v1686, %v1687
        %v1689 = vsel %vm845, %v1663, 0.0
        %v1690 = vadd.f32 %v1688, %v1689
        %v1691 = vsel %vm845, %v1664, 0.0
        %v1692 = vadd.f32 %v1690, %v1691
        %v1693 = vrot.slane %v1692, 4
        %v1694 = vadd.f32 %v1692, %v1693
        %v1695 = vrot.slane %v1694, 2
        %v1696 = vadd.f32 %v1694, %v1695
        %v1697 = vrot.slane %v1696, 1
        %v1698 = vadd.f32 %v1696, %v1697
        %v1699 = vsel %vm845, %v1665, 0.0
        %v1700 = vsel %vm845, %v1666, 0.0
        %v1701 = vadd.f32 %v1699, %v1700
        %v1702 = vsel %vm845, %v1667, 0.0
        %v1703 = vadd.f32 %v1701, %v1702
        %v1704 = vsel %vm845, %v1668, 0.0
        %v1705 = vadd.f32 %v1703, %v1704
        %v1706 = vrot.slane %v1705, 4
        %v1707 = vadd.f32 %v1705, %v1706
        %v1708 = vrot.slane %v1707, 2
        %v1709 = vadd.f32 %v1707, %v1708
        %v1710 = vrot.slane %v1709, 1
        %v1711 = vadd.f32 %v1709, %v1710
        %v1712 = vsel %vm845, %v1669, 0.0
        %v1713 = vsel %vm845, %v1670, 0.0
        %v1714 = vadd.f32 %v1712, %v1713
        %v1715 = vsel %vm845, %v1671, 0.0
        %v1716 = vadd.f32 %v1714, %v1715
        %v1717 = vsel %vm845, %v1672, 0.0
        %v1718 = vadd.f32 %v1716, %v1717
        %v1719 = vrot.slane %v1718, 4
        %v1720 = vadd.f32 %v1718, %v1719
        %v1721 = vrot.slane %v1720, 2
        %v1722 = vadd.f32 %v1720, %v1721
        %v1723 = vrot.slane %v1722, 1
        %v1724 = vadd.f32 %v1722, %v1723
        %v1729 = vsel %vm1262, %v1698, %v1685
        %v1730 = vsel %vm1264, %v1711, %v1729
        %v1731 = vsel %vm1266, %v1724, %v1730
        %v1733 = vsel %vm1269, %v1731, 0.0
        %1734 = vadd.xlane.f32.xlu0 %v1733
        %v1735 = vpop.xlane.xlu0 %1734
        %v1736 = vmul.f32 %v1641, %v1174
        %v1737 = vmul.f32 %v1642, %v1175
        %v1738 = vmul.f32 %v1643, %v1176
        %v1739 = vmul.f32 %v1644, %v1177
        %v1740 = vmul.f32 %v1645, %v1178
        %v1741 = vmul.f32 %v1646, %v1179
        %v1742 = vmul.f32 %v1647, %v1180
        %v1743 = vmul.f32 %v1648, %v1181
        %v1744 = vmul.f32 %v1649, %v1182
        %v1745 = vmul.f32 %v1650, %v1183
        %v1746 = vmul.f32 %v1651, %v1184
        %v1747 = vmul.f32 %v1652, %v1185
        %v1748 = vmul.f32 %v1653, %v1186
        %v1749 = vmul.f32 %v1654, %v1187
        %v1750 = vmul.f32 %v1655, %v1188
        %v1751 = vmul.f32 %v1656, %v1189
        %v1752 = vsel %vm845, %v1736, 0.0
        %v1753 = vsel %vm845, %v1737, 0.0
        %v1754 = vadd.f32 %v1752, %v1753
        %v1755 = vsel %vm845, %v1738, 0.0
        %v1756 = vadd.f32 %v1754, %v1755
        %v1757 = vsel %vm845, %v1739, 0.0
        %v1758 = vadd.f32 %v1756, %v1757
        %v1759 = vrot.slane %v1758, 4
        %v1760 = vadd.f32 %v1758, %v1759
        %v1761 = vrot.slane %v1760, 2
        %v1762 = vadd.f32 %v1760, %v1761
        %v1763 = vrot.slane %v1762, 1
        %v1764 = vadd.f32 %v1762, %v1763
        %v1765 = vsel %vm845, %v1740, 0.0
        %v1766 = vsel %vm845, %v1741, 0.0
        %v1767 = vadd.f32 %v1765, %v1766
        %v1768 = vsel %vm845, %v1742, 0.0
        %v1769 = vadd.f32 %v1767, %v1768
        %v1770 = vsel %vm845, %v1743, 0.0
        %v1771 = vadd.f32 %v1769, %v1770
        %v1772 = vrot.slane %v1771, 4
        %v1773 = vadd.f32 %v1771, %v1772
        %v1774 = vrot.slane %v1773, 2
        %v1775 = vadd.f32 %v1773, %v1774
        %v1776 = vrot.slane %v1775, 1
        %v1777 = vadd.f32 %v1775, %v1776
        %v1778 = vsel %vm845, %v1744, 0.0
        %v1779 = vsel %vm845, %v1745, 0.0
        %v1780 = vadd.f32 %v1778, %v1779
        %v1781 = vsel %vm845, %v1746, 0.0
        %v1782 = vadd.f32 %v1780, %v1781
        %v1783 = vsel %vm845, %v1747, 0.0
        %v1784 = vadd.f32 %v1782, %v1783
        %v1785 = vrot.slane %v1784, 4
        %v1786 = vadd.f32 %v1784, %v1785
        %v1787 = vrot.slane %v1786, 2
        %v1788 = vadd.f32 %v1786, %v1787
        %v1789 = vrot.slane %v1788, 1
        %v1790 = vadd.f32 %v1788, %v1789
        %v1791 = vsel %vm845, %v1748, 0.0
        %v1792 = vsel %vm845, %v1749, 0.0
        %v1793 = vadd.f32 %v1791, %v1792
        %v1794 = vsel %vm845, %v1750, 0.0
        %v1795 = vadd.f32 %v1793, %v1794
        %v1796 = vsel %vm845, %v1751, 0.0
        %v1797 = vadd.f32 %v1795, %v1796
        %v1798 = vrot.slane %v1797, 4
        %v1799 = vadd.f32 %v1797, %v1798
        %v1800 = vrot.slane %v1799, 2
        %v1801 = vadd.f32 %v1799, %v1800
        %v1802 = vrot.slane %v1801, 1
        %v1803 = vadd.f32 %v1801, %v1802
        %v1808 = vsel %vm1262, %v1777, %v1764
        %v1809 = vsel %vm1264, %v1790, %v1808
        %v1810 = vsel %vm1266, %v1803, %v1809
        %v1812 = vsel %vm1269, %v1810, 0.0
        %1813 = vadd.xlane.f32.xlu0 %v1812
        %v1814 = vpop.xlane.xlu0 %1813
        %v1815 = vadd.f32 %v1814, %v1272
        %v1816 = vadd.f32 %v1735, 1.0
        %v1817 = vsub.f32 %v1815, %v1735
        %v1818 = vadd.f32 %v1817, 1.0
        %v1819 = vrcp.pop %v1818
        %v1820 = vmul.f32 %v1818, %v1819
        %v1821 = vsub.f32 1.0, %v1820
        %v1822 = vmul.f32 %v1819, %v1821
        %v1823 = vadd.f32 %v1819, %v1822
        %vm1824 = vweird.f32 %v1818
        %vm1825 = vweird.f32 %v1819
        %vm1826 = vmor %vm1824, %vm1825
        %v1827 = vsel %vm1826, %v1819, %v1823
        %v1828 = vand.u32 2147483647, %v1818
        %vm1829 = vcmp.eq.f32.partialorder %v1828, 8.507059e+37
        %v1830 = vand.u32 %v1818, 2147483648
        %v1831 = vor.u32 1.1754944e-38, %v1830
        %v1832 = vsel %vm1829, %v1831, %v1827
        %v1833 = vmul.f32 %v1816, %v1832
        %v1834 = vsub.f32 1.0, %v1833
        %v1835 = vld [vmem:[%s604] sm:$0xf]
        %v1836 = vld [vmem:[%s604 + $0x4] sm:$0xf]
        %v1837 = vld [vmem:[%s604 + $0x8] sm:$0xf]
        %v1838 = vld [vmem:[%s604 + $0xc] sm:$0xf]
        %v1839 = vld [vmem:[%s604 + $0x10] sm:$0xf]
        %v1840 = vld [vmem:[%s604 + $0x14] sm:$0xf]
        %v1841 = vld [vmem:[%s604 + $0x18] sm:$0xf]
        %v1842 = vld [vmem:[%s604 + $0x1c] sm:$0xf]
        %v1843 = vld [vmem:[%s604 + $0x20] sm:$0xf]
        %v1844 = vld [vmem:[%s604 + $0x24] sm:$0xf]
        %v1845 = vld [vmem:[%s604 + $0x28] sm:$0xf]
        %v1846 = vld [vmem:[%s604 + $0x2c] sm:$0xf]
        %v1847 = vld [vmem:[%s604 + $0x30] sm:$0xf]
        %v1848 = vld [vmem:[%s604 + $0x34] sm:$0xf]
        %v1849 = vld [vmem:[%s604 + $0x38] sm:$0xf]
        %v1850 = vld [vmem:[%s604 + $0x3c] sm:$0xf]
        %v1851 = vunpack.c.l.bf16 %v1835
        %v1852 = vunpack.c.l.bf16 %v1836
        %v1853 = vunpack.c.l.bf16 %v1837
        %v1854 = vunpack.c.l.bf16 %v1838
        %v1855 = vunpack.c.l.bf16 %v1839
        %v1856 = vunpack.c.l.bf16 %v1840
        %v1857 = vunpack.c.l.bf16 %v1841
        %v1858 = vunpack.c.l.bf16 %v1842
        %v1859 = vunpack.c.l.bf16 %v1843
        %v1860 = vunpack.c.l.bf16 %v1844
        %v1861 = vunpack.c.l.bf16 %v1845
        %v1862 = vunpack.c.l.bf16 %v1846
        %v1863 = vunpack.c.l.bf16 %v1847
        %v1864 = vunpack.c.l.bf16 %v1848
        %v1865 = vunpack.c.l.bf16 %v1849
        %v1866 = vunpack.c.l.bf16 %v1850
        %v1867 = vand.u32 2147483647, %v1851
        %v1868 = vand.u32 2147483647, %v1852
        %v1869 = vand.u32 2147483647, %v1853
        %v1870 = vand.u32 2147483647, %v1854
        %v1871 = vand.u32 2147483647, %v1855
        %v1872 = vand.u32 2147483647, %v1856
        %v1873 = vand.u32 2147483647, %v1857
        %v1874 = vand.u32 2147483647, %v1858
        %v1875 = vand.u32 2147483647, %v1859
        %v1876 = vand.u32 2147483647, %v1860
        %v1877 = vand.u32 2147483647, %v1861
        %v1878 = vand.u32 2147483647, %v1862
        %v1879 = vand.u32 2147483647, %v1863
        %v1880 = vand.u32 2147483647, %v1864
        %v1881 = vand.u32 2147483647, %v1865
        %v1882 = vand.u32 2147483647, %v1866
        %v1883 = vsub.f32 0.0, %v1867
        %v1884 = vsub.f32 0.0, %v1868
        %v1885 = vsub.f32 0.0, %v1869
        %v1886 = vsub.f32 0.0, %v1870
        %v1887 = vsub.f32 0.0, %v1871
        %v1888 = vsub.f32 0.0, %v1872
        %v1889 = vsub.f32 0.0, %v1873
        %v1890 = vsub.f32 0.0, %v1874
        %v1891 = vsub.f32 0.0, %v1875
        %v1892 = vsub.f32 0.0, %v1876
        %v1893 = vsub.f32 0.0, %v1877
        %v1894 = vsub.f32 0.0, %v1878
        %v1895 = vsub.f32 0.0, %v1879
        %v1896 = vsub.f32 0.0, %v1880
        %v1897 = vsub.f32 0.0, %v1881
        %v1898 = vsub.f32 0.0, %v1882
        %v1899 = vmul.f32 %v1883, 1.442695
        %v1900 = vpow.pop %v1899
        %v1901 = vmul.f32 %v1884, 1.442695
        %v1902 = vpow.pop %v1901
        %v1903 = vmul.f32 %v1885, 1.442695
        %v1904 = vpow.pop %v1903
        %v1905 = vmul.f32 %v1886, 1.442695
        %v1906 = vpow.pop %v1905
        %v1907 = vmul.f32 %v1887, 1.442695
        %v1908 = vpow.pop %v1907
        %v1909 = vmul.f32 %v1888, 1.442695
        %v1910 = vpow.pop %v1909
        %v1911 = vmul.f32 %v1889, 1.442695
        %v1912 = vpow.pop %v1911
        %v1913 = vmul.f32 %v1890, 1.442695
        %v1914 = vpow.pop %v1913
        %v1915 = vmul.f32 %v1891, 1.442695
        %v1916 = vpow.pop %v1915
        %v1917 = vmul.f32 %v1892, 1.442695
        %v1918 = vpow.pop %v1917
        %v1919 = vmul.f32 %v1893, 1.442695
        %v1920 = vpow.pop %v1919
        %v1921 = vmul.f32 %v1894, 1.442695
        %v1922 = vpow.pop %v1921
        %v1923 = vmul.f32 %v1895, 1.442695
        %v1924 = vpow.pop %v1923
        %v1925 = vmul.f32 %v1896, 1.442695
        %v1926 = vpow.pop %v1925
        %v1927 = vmul.f32 %v1897, 1.442695
        %v1928 = vpow.pop %v1927
        %v1929 = vmul.f32 %v1898, 1.442695
        %v1930 = vpow.pop %v1929
        %v1931 = vadd.f32 %v1900, 1.0
        %v1932 = vadd.f32 %v1902, 1.0
        %v1933 = vadd.f32 %v1904, 1.0
        %v1934 = vadd.f32 %v1906, 1.0
        %v1935 = vadd.f32 %v1908, 1.0
        %v1936 = vadd.f32 %v1910, 1.0
        %v1937 = vadd.f32 %v1912, 1.0
        %v1938 = vadd.f32 %v1914, 1.0
        %v1939 = vadd.f32 %v1916, 1.0
        %v1940 = vadd.f32 %v1918, 1.0
        %v1941 = vadd.f32 %v1920, 1.0
        %v1942 = vadd.f32 %v1922, 1.0
        %v1943 = vadd.f32 %v1924, 1.0
        %v1944 = vadd.f32 %v1926, 1.0
        %v1945 = vadd.f32 %v1928, 1.0
        %v1946 = vadd.f32 %v1930, 1.0
        %v1947 = vmax.f32 %v1851, 0.0
        %v1948 = vmax.f32 %v1852, 0.0
        %v1949 = vmax.f32 %v1853, 0.0
        %v1950 = vmax.f32 %v1854, 0.0
        %v1951 = vmax.f32 %v1855, 0.0
        %v1952 = vmax.f32 %v1856, 0.0
        %v1953 = vmax.f32 %v1857, 0.0
        %v1954 = vmax.f32 %v1858, 0.0
        %v1955 = vmax.f32 %v1859, 0.0
        %v1956 = vmax.f32 %v1860, 0.0
        %v1957 = vmax.f32 %v1861, 0.0
        %v1958 = vmax.f32 %v1862, 0.0
        %v1959 = vmax.f32 %v1863, 0.0
        %v1960 = vmax.f32 %v1864, 0.0
        %v1961 = vmax.f32 %v1865, 0.0
        %v1962 = vmax.f32 %v1866, 0.0
        %v1963 = vmul.f32 %v1851, %v769
        %v1964 = vmul.f32 %v1852, %v770
        %v1965 = vmul.f32 %v1853, %v771
        %v1966 = vmul.f32 %v1854, %v772
        %v1967 = vmul.f32 %v1855, %v773
        %v1968 = vmul.f32 %v1856, %v774
        %v1969 = vmul.f32 %v1857, %v775
        %v1970 = vmul.f32 %v1858, %v776
        %v1971 = vmul.f32 %v1859, %v777
        %v1972 = vmul.f32 %v1860, %v778
        %v1973 = vmul.f32 %v1861, %v779
        %v1974 = vmul.f32 %v1862, %v780
        %v1975 = vmul.f32 %v1863, %v781
        %v1976 = vmul.f32 %v1864, %v782
        %v1977 = vmul.f32 %v1865, %v783
        %v1978 = vmul.f32 %v1866, %v784
        %v1979 = vsub.f32 %v1947, %v1963
        %v1980 = vsub.f32 %v1948, %v1964
        %v1981 = vsub.f32 %v1949, %v1965
        %v1982 = vsub.f32 %v1950, %v1966
        %v1983 = vsub.f32 %v1951, %v1967
        %v1984 = vsub.f32 %v1952, %v1968
        %v1985 = vsub.f32 %v1953, %v1969
        %v1986 = vsub.f32 %v1954, %v1970
        %v1987 = vsub.f32 %v1955, %v1971
        %v1988 = vsub.f32 %v1956, %v1972
        %v1989 = vsub.f32 %v1957, %v1973
        %v1990 = vsub.f32 %v1958, %v1974
        %v1991 = vsub.f32 %v1959, %v1975
        %v1992 = vsub.f32 %v1960, %v1976
        %v1993 = vsub.f32 %v1961, %v1977
        %v1994 = vsub.f32 %v1962, %v1978
        %v1995 = vlog2.pop %v1931
        %v1996 = vmul.f32 %v1995, 0.6931472
        %v1997 = vlog2.pop %v1932
        %v1998 = vmul.f32 %v1997, 0.6931472
        %v1999 = vlog2.pop %v1933
        %v2000 = vmul.f32 %v1999, 0.6931472
        %v2001 = vlog2.pop %v1934
        %v2002 = vmul.f32 %v2001, 0.6931472
        %v2003 = vlog2.pop %v1935
        %v2004 = vmul.f32 %v2003, 0.6931472
        %v2005 = vlog2.pop %v1936
        %v2006 = vmul.f32 %v2005, 0.6931472
        %v2007 = vlog2.pop %v1937
        %v2008 = vmul.f32 %v2007, 0.6931472
        %v2009 = vlog2.pop %v1938
        %v2010 = vmul.f32 %v2009, 0.6931472
        %v2011 = vlog2.pop %v1939
        %v2012 = vmul.f32 %v2011, 0.6931472
        %v2013 = vlog2.pop %v1940
        %v2014 = vmul.f32 %v2013, 0.6931472
        %v2015 = vlog2.pop %v1941
        %v2016 = vmul.f32 %v2015, 0.6931472
        %v2017 = vlog2.pop %v1942
        %v2018 = vmul.f32 %v2017, 0.6931472
        %v2019 = vlog2.pop %v1943
        %v2020 = vmul.f32 %v2019, 0.6931472
        %v2021 = vlog2.pop %v1944
        %v2022 = vmul.f32 %v2021, 0.6931472
        %v2023 = vlog2.pop %v1945
        %v2024 = vmul.f32 %v2023, 0.6931472
        %v2025 = vlog2.pop %v1946
        %v2026 = vmul.f32 %v2025, 0.6931472
        %v2027 = vadd.f32 %v1979, %v1996
        %v2028 = vadd.f32 %v1980, %v1998
        %v2029 = vadd.f32 %v1981, %v2000
        %v2030 = vadd.f32 %v1982, %v2002
        %v2031 = vadd.f32 %v1983, %v2004
        %v2032 = vadd.f32 %v1984, %v2006
        %v2033 = vadd.f32 %v1985, %v2008
        %v2034 = vadd.f32 %v1986, %v2010
        %v2035 = vadd.f32 %v1987, %v2012
        %v2036 = vadd.f32 %v1988, %v2014
        %v2037 = vadd.f32 %v1989, %v2016
        %v2038 = vadd.f32 %v1990, %v2018
        %v2039 = vadd.f32 %v1991, %v2020
        %v2040 = vadd.f32 %v1992, %v2022
        %v2041 = vadd.f32 %v1993, %v2024
        %v2042 = vadd.f32 %v1994, %v2026
        %v2043 = vsel %vm845, %v2027, 0.0
        %v2044 = vsel %vm845, %v2028, 0.0
        %v2045 = vadd.f32 %v2043, %v2044
        %v2046 = vsel %vm845, %v2029, 0.0
        %v2047 = vadd.f32 %v2045, %v2046
        %v2048 = vsel %vm845, %v2030, 0.0
        %v2049 = vadd.f32 %v2047, %v2048
        %v2050 = vrot.slane %v2049, 4
        %v2051 = vadd.f32 %v2049, %v2050
        %v2052 = vrot.slane %v2051, 2
        %v2053 = vadd.f32 %v2051, %v2052
        %v2054 = vrot.slane %v2053, 1
        %v2055 = vadd.f32 %v2053, %v2054
        %v2056 = vsel %vm845, %v2031, 0.0
        %v2057 = vsel %vm845, %v2032, 0.0
        %v2058 = vadd.f32 %v2056, %v2057
        %v2059 = vsel %vm845, %v2033, 0.0
        %v2060 = vadd.f32 %v2058, %v2059
        %v2061 = vsel %vm845, %v2034, 0.0
        %v2062 = vadd.f32 %v2060, %v2061
        %v2063 = vrot.slane %v2062, 4
        %v2064 = vadd.f32 %v2062, %v2063
        %v2065 = vrot.slane %v2064, 2
        %v2066 = vadd.f32 %v2064, %v2065
        %v2067 = vrot.slane %v2066, 1
        %v2068 = vadd.f32 %v2066, %v2067
        %v2069 = vsel %vm845, %v2035, 0.0
        %v2070 = vsel %vm845, %v2036, 0.0
        %v2071 = vadd.f32 %v2069, %v2070
        %v2072 = vsel %vm845, %v2037, 0.0
        %v2073 = vadd.f32 %v2071, %v2072
        %v2074 = vsel %vm845, %v2038, 0.0
        %v2075 = vadd.f32 %v2073, %v2074
        %v2076 = vrot.slane %v2075, 4
        %v2077 = vadd.f32 %v2075, %v2076
        %v2078 = vrot.slane %v2077, 2
        %v2079 = vadd.f32 %v2077, %v2078
        %v2080 = vrot.slane %v2079, 1
        %v2081 = vadd.f32 %v2079, %v2080
        %v2082 = vsel %vm845, %v2039, 0.0
        %v2083 = vsel %vm845, %v2040, 0.0
        %v2084 = vadd.f32 %v2082, %v2083
        %v2085 = vsel %vm845, %v2041, 0.0
        %v2086 = vadd.f32 %v2084, %v2085
        %v2087 = vsel %vm845, %v2042, 0.0
        %v2088 = vadd.f32 %v2086, %v2087
        %v2089 = vrot.slane %v2088, 4
        %v2090 = vadd.f32 %v2088, %v2089
        %v2091 = vrot.slane %v2090, 2
        %v2092 = vadd.f32 %v2090, %v2091
        %v2093 = vrot.slane %v2092, 1
        %v2094 = vadd.f32 %v2092, %v2093
        %v2099 = vsel %vm1262, %v2068, %v2055
        %v2100 = vsel %vm1264, %v2081, %v2099
        %v2101 = vsel %vm1266, %v2094, %v2100
        %v2103 = vsel %vm1269, %v2101, 0.0
        %2104 = vadd.xlane.f32.xlu0 %v2103
        %v2105 = vpop.xlane.xlu0 %2104
        %v2106 = vmul.f32 %v2105, 0.0009765625
        %v2107 = vrcp.pop %v1931
        %v2108 = vrcp.pop %v1932
        %v2109 = vrcp.pop %v1933
        %v2110 = vrcp.pop %v1934
        %v2111 = vrcp.pop %v1935
        %v2112 = vrcp.pop %v1936
        %v2113 = vrcp.pop %v1937
        %v2114 = vrcp.pop %v1938
        %v2115 = vrcp.pop %v1939
        %v2116 = vrcp.pop %v1940
        %v2117 = vrcp.pop %v1941
        %v2118 = vrcp.pop %v1942
        %v2119 = vrcp.pop %v1943
        %v2120 = vrcp.pop %v1944
        %v2121 = vrcp.pop %v1945
        %v2122 = vrcp.pop %v1946
        %v2123 = vmul.f32 %v1931, %v2107
        %v2124 = vmul.f32 %v1932, %v2108
        %v2125 = vmul.f32 %v1933, %v2109
        %v2126 = vmul.f32 %v1934, %v2110
        %v2127 = vmul.f32 %v1935, %v2111
        %v2128 = vmul.f32 %v1936, %v2112
        %v2129 = vmul.f32 %v1937, %v2113
        %v2130 = vmul.f32 %v1938, %v2114
        %v2131 = vmul.f32 %v1939, %v2115
        %v2132 = vmul.f32 %v1940, %v2116
        %v2133 = vmul.f32 %v1941, %v2117
        %v2134 = vmul.f32 %v1942, %v2118
        %v2135 = vmul.f32 %v1943, %v2119
        %v2136 = vmul.f32 %v1944, %v2120
        %v2137 = vmul.f32 %v1945, %v2121
        %v2138 = vmul.f32 %v1946, %v2122
        %v2139 = vsub.f32 2.0, %v2123
        %v2140 = vsub.f32 2.0, %v2124
        %v2141 = vsub.f32 2.0, %v2125
        %v2142 = vsub.f32 2.0, %v2126
        %v2143 = vsub.f32 2.0, %v2127
        %v2144 = vsub.f32 2.0, %v2128
        %v2145 = vsub.f32 2.0, %v2129
        %v2146 = vsub.f32 2.0, %v2130
        %v2147 = vsub.f32 2.0, %v2131
        %v2148 = vsub.f32 2.0, %v2132
        %v2149 = vsub.f32 2.0, %v2133
        %v2150 = vsub.f32 2.0, %v2134
        %v2151 = vsub.f32 2.0, %v2135
        %v2152 = vsub.f32 2.0, %v2136
        %v2153 = vsub.f32 2.0, %v2137
        %v2154 = vsub.f32 2.0, %v2138
        %v2155 = vmul.f32 %v2107, %v2139
        %v2156 = vmul.f32 %v2108, %v2140
        %v2157 = vmul.f32 %v2109, %v2141
        %v2158 = vmul.f32 %v2110, %v2142
        %v2159 = vmul.f32 %v2111, %v2143
        %v2160 = vmul.f32 %v2112, %v2144
        %v2161 = vmul.f32 %v2113, %v2145
        %v2162 = vmul.f32 %v2114, %v2146
        %v2163 = vmul.f32 %v2115, %v2147
        %v2164 = vmul.f32 %v2116, %v2148
        %v2165 = vmul.f32 %v2117, %v2149
        %v2166 = vmul.f32 %v2118, %v2150
        %v2167 = vmul.f32 %v2119, %v2151
        %v2168 = vmul.f32 %v2120, %v2152
        %v2169 = vmul.f32 %v2121, %v2153
        %v2170 = vmul.f32 %v2122, %v2154
        %vm2171 = vcmp.ge.f32.partialorder %v1851, 0.0
        %vm2172 = vcmp.ge.f32.partialorder %v1852, 0.0
        %vm2173 = vcmp.ge.f32.partialorder %v1853, 0.0
        %vm2174 = vcmp.ge.f32.partialorder %v1854, 0.0
        %vm2175 = vcmp.ge.f32.partialorder %v1855, 0.0
        %vm2176 = vcmp.ge.f32.partialorder %v1856, 0.0
        %vm2177 = vcmp.ge.f32.partialorder %v1857, 0.0
        %vm2178 = vcmp.ge.f32.partialorder %v1858, 0.0
        %vm2179 = vcmp.ge.f32.partialorder %v1859, 0.0
        %vm2180 = vcmp.ge.f32.partialorder %v1860, 0.0
        %vm2181 = vcmp.ge.f32.partialorder %v1861, 0.0
        %vm2182 = vcmp.ge.f32.partialorder %v1862, 0.0
        %vm2183 = vcmp.ge.f32.partialorder %v1863, 0.0
        %vm2184 = vcmp.ge.f32.partialorder %v1864, 0.0
        %vm2185 = vcmp.ge.f32.partialorder %v1865, 0.0
        %vm2186 = vcmp.ge.f32.partialorder %v1866, 0.0
        %v2187 = vmul.f32 %v1900, %v2155
        %v2188 = vmul.f32 %v1902, %v2156
        %v2189 = vmul.f32 %v1904, %v2157
        %v2190 = vmul.f32 %v1906, %v2158
        %v2191 = vmul.f32 %v1908, %v2159
        %v2192 = vmul.f32 %v1910, %v2160
        %v2193 = vmul.f32 %v1912, %v2161
        %v2194 = vmul.f32 %v1914, %v2162
        %v2195 = vmul.f32 %v1916, %v2163
        %v2196 = vmul.f32 %v1918, %v2164
        %v2197 = vmul.f32 %v1920, %v2165
        %v2198 = vmul.f32 %v1922, %v2166
        %v2199 = vmul.f32 %v1924, %v2167
        %v2200 = vmul.f32 %v1926, %v2168
        %v2201 = vmul.f32 %v1928, %v2169
        %v2202 = vmul.f32 %v1930, %v2170
        %v2203 = vsel %vm2171, %v2155, %v2187
        %v2204 = vsel %vm2172, %v2156, %v2188
        %v2205 = vsel %vm2173, %v2157, %v2189
        %v2206 = vsel %vm2174, %v2158, %v2190
        %v2207 = vsel %vm2175, %v2159, %v2191
        %v2208 = vsel %vm2176, %v2160, %v2192
        %v2209 = vsel %vm2177, %v2161, %v2193
        %v2210 = vsel %vm2178, %v2162, %v2194
        %v2211 = vsel %vm2179, %v2163, %v2195
        %v2212 = vsel %vm2180, %v2164, %v2196
        %v2213 = vsel %vm2181, %v2165, %v2197
        %v2214 = vsel %vm2182, %v2166, %v2198
        %v2215 = vsel %vm2183, %v2167, %v2199
        %v2216 = vsel %vm2184, %v2168, %v2200
        %v2217 = vsel %vm2185, %v2169, %v2201
        %v2218 = vsel %vm2186, %v2170, %v2202
        %v2219 = vmul.f32 %v2203, %v1190
        %v2220 = vmul.f32 %v2204, %v1191
        %v2221 = vmul.f32 %v2205, %v1192
        %v2222 = vmul.f32 %v2206, %v1193
        %v2223 = vmul.f32 %v2207, %v1194
        %v2224 = vmul.f32 %v2208, %v1195
        %v2225 = vmul.f32 %v2209, %v1196
        %v2226 = vmul.f32 %v2210, %v1197
        %v2227 = vmul.f32 %v2211, %v1198
        %v2228 = vmul.f32 %v2212, %v1199
        %v2229 = vmul.f32 %v2213, %v1200
        %v2230 = vmul.f32 %v2214, %v1201
        %v2231 = vmul.f32 %v2215, %v1202
        %v2232 = vmul.f32 %v2216, %v1203
        %v2233 = vmul.f32 %v2217, %v1204
        %v2234 = vmul.f32 %v2218, %v1205
        %v2235 = vsel %vm845, %v2219, 0.0
        %v2236 = vsel %vm845, %v2220, 0.0
        %v2237 = vadd.f32 %v2235, %v2236
        %v2238 = vsel %vm845, %v2221, 0.0
        %v2239 = vadd.f32 %v2237, %v2238
        %v2240 = vsel %vm845, %v2222, 0.0
        %v2241 = vadd.f32 %v2239, %v2240
        %v2242 = vrot.slane %v2241, 4
        %v2243 = vadd.f32 %v2241, %v2242
        %v2244 = vrot.slane %v2243, 2
        %v2245 = vadd.f32 %v2243, %v2244
        %v2246 = vrot.slane %v2245, 1
        %v2247 = vadd.f32 %v2245, %v2246
        %v2248 = vsel %vm845, %v2223, 0.0
        %v2249 = vsel %vm845, %v2224, 0.0
        %v2250 = vadd.f32 %v2248, %v2249
        %v2251 = vsel %vm845, %v2225, 0.0
        %v2252 = vadd.f32 %v2250, %v2251
        %v2253 = vsel %vm845, %v2226, 0.0
        %v2254 = vadd.f32 %v2252, %v2253
        %v2255 = vrot.slane %v2254, 4
        %v2256 = vadd.f32 %v2254, %v2255
        %v2257 = vrot.slane %v2256, 2
        %v2258 = vadd.f32 %v2256, %v2257
        %v2259 = vrot.slane %v2258, 1
        %v2260 = vadd.f32 %v2258, %v2259
        %v2261 = vsel %vm845, %v2227, 0.0
        %v2262 = vsel %vm845, %v2228, 0.0
        %v2263 = vadd.f32 %v2261, %v2262
        %v2264 = vsel %vm845, %v2229, 0.0
        %v2265 = vadd.f32 %v2263, %v2264
        %v2266 = vsel %vm845, %v2230, 0.0
        %v2267 = vadd.f32 %v2265, %v2266
        %v2268 = vrot.slane %v2267, 4
        %v2269 = vadd.f32 %v2267, %v2268
        %v2270 = vrot.slane %v2269, 2
        %v2271 = vadd.f32 %v2269, %v2270
        %v2272 = vrot.slane %v2271, 1
        %v2273 = vadd.f32 %v2271, %v2272
        %v2274 = vsel %vm845, %v2231, 0.0
        %v2275 = vsel %vm845, %v2232, 0.0
        %v2276 = vadd.f32 %v2274, %v2275
        %v2277 = vsel %vm845, %v2233, 0.0
        %v2278 = vadd.f32 %v2276, %v2277
        %v2279 = vsel %vm845, %v2234, 0.0
        %v2280 = vadd.f32 %v2278, %v2279
        %v2281 = vrot.slane %v2280, 4
        %v2282 = vadd.f32 %v2280, %v2281
        %v2283 = vrot.slane %v2282, 2
        %v2284 = vadd.f32 %v2282, %v2283
        %v2285 = vrot.slane %v2284, 1
        %v2286 = vadd.f32 %v2284, %v2285
        %v2291 = vsel %vm1262, %v2260, %v2247
        %v2292 = vsel %vm1264, %v2273, %v2291
        %v2293 = vsel %vm1266, %v2286, %v2292
        %v2295 = vsel %vm1269, %v2293, 0.0
        %2296 = vadd.xlane.f32.xlu0 %v2295
        %v2297 = vpop.xlane.xlu0 %2296
        %v2298 = vmul.f32 %v2203, %v1174
        %v2299 = vmul.f32 %v2204, %v1175
        %v2300 = vmul.f32 %v2205, %v1176
        %v2301 = vmul.f32 %v2206, %v1177
        %v2302 = vmul.f32 %v2207, %v1178
        %v2303 = vmul.f32 %v2208, %v1179
        %v2304 = vmul.f32 %v2209, %v1180
        %v2305 = vmul.f32 %v2210, %v1181
        %v2306 = vmul.f32 %v2211, %v1182
        %v2307 = vmul.f32 %v2212, %v1183
        %v2308 = vmul.f32 %v2213, %v1184
        %v2309 = vmul.f32 %v2214, %v1185
        %v2310 = vmul.f32 %v2215, %v1186
        %v2311 = vmul.f32 %v2216, %v1187
        %v2312 = vmul.f32 %v2217, %v1188
        %v2313 = vmul.f32 %v2218, %v1189
        %v2314 = vsel %vm845, %v2298, 0.0
        %v2315 = vsel %vm845, %v2299, 0.0
        %v2316 = vadd.f32 %v2314, %v2315
        %v2317 = vsel %vm845, %v2300, 0.0
        %v2318 = vadd.f32 %v2316, %v2317
        %v2319 = vsel %vm845, %v2301, 0.0
        %v2320 = vadd.f32 %v2318, %v2319
        %v2321 = vrot.slane %v2320, 4
        %v2322 = vadd.f32 %v2320, %v2321
        %v2323 = vrot.slane %v2322, 2
        %v2324 = vadd.f32 %v2322, %v2323
        %v2325 = vrot.slane %v2324, 1
        %v2326 = vadd.f32 %v2324, %v2325
        %v2327 = vsel %vm845, %v2302, 0.0
        %v2328 = vsel %vm845, %v2303, 0.0
        %v2329 = vadd.f32 %v2327, %v2328
        %v2330 = vsel %vm845, %v2304, 0.0
        %v2331 = vadd.f32 %v2329, %v2330
        %v2332 = vsel %vm845, %v2305, 0.0
        %v2333 = vadd.f32 %v2331, %v2332
        %v2334 = vrot.slane %v2333, 4
        %v2335 = vadd.f32 %v2333, %v2334
        %v2336 = vrot.slane %v2335, 2
        %v2337 = vadd.f32 %v2335, %v2336
        %v2338 = vrot.slane %v2337, 1
        %v2339 = vadd.f32 %v2337, %v2338
        %v2340 = vsel %vm845, %v2306, 0.0
        %v2341 = vsel %vm845, %v2307, 0.0
        %v2342 = vadd.f32 %v2340, %v2341
        %v2343 = vsel %vm845, %v2308, 0.0
        %v2344 = vadd.f32 %v2342, %v2343
        %v2345 = vsel %vm845, %v2309, 0.0
        %v2346 = vadd.f32 %v2344, %v2345
        %v2347 = vrot.slane %v2346, 4
        %v2348 = vadd.f32 %v2346, %v2347
        %v2349 = vrot.slane %v2348, 2
        %v2350 = vadd.f32 %v2348, %v2349
        %v2351 = vrot.slane %v2350, 1
        %v2352 = vadd.f32 %v2350, %v2351
        %v2353 = vsel %vm845, %v2310, 0.0
        %v2354 = vsel %vm845, %v2311, 0.0
        %v2355 = vadd.f32 %v2353, %v2354
        %v2356 = vsel %vm845, %v2312, 0.0
        %v2357 = vadd.f32 %v2355, %v2356
        %v2358 = vsel %vm845, %v2313, 0.0
        %v2359 = vadd.f32 %v2357, %v2358
        %v2360 = vrot.slane %v2359, 4
        %v2361 = vadd.f32 %v2359, %v2360
        %v2362 = vrot.slane %v2361, 2
        %v2363 = vadd.f32 %v2361, %v2362
        %v2364 = vrot.slane %v2363, 1
        %v2365 = vadd.f32 %v2363, %v2364
        %v2370 = vsel %vm1262, %v2339, %v2326
        %v2371 = vsel %vm1264, %v2352, %v2370
        %v2372 = vsel %vm1266, %v2365, %v2371
        %v2374 = vsel %vm1269, %v2372, 0.0
        %2375 = vadd.xlane.f32.xlu0 %v2374
        %v2376 = vpop.xlane.xlu0 %2375
        %v2377 = vadd.f32 %v2376, %v1272
        %v2378 = vadd.f32 %v2297, 1.0
        %v2379 = vsub.f32 %v2377, %v2297
        %v2380 = vadd.f32 %v2379, 1.0
        %v2381 = vrcp.pop %v2380
        %v2382 = vmul.f32 %v2380, %v2381
        %v2383 = vsub.f32 1.0, %v2382
        %v2384 = vmul.f32 %v2381, %v2383
        %v2385 = vadd.f32 %v2381, %v2384
        %vm2386 = vweird.f32 %v2380
        %vm2387 = vweird.f32 %v2381
        %vm2388 = vmor %vm2386, %vm2387
        %v2389 = vsel %vm2388, %v2381, %v2385
        %v2390 = vand.u32 2147483647, %v2380
        %vm2391 = vcmp.eq.f32.partialorder %v2390, 8.507059e+37
        %v2392 = vand.u32 %v2380, 2147483648
        %v2393 = vor.u32 1.1754944e-38, %v2392
        %v2394 = vsel %vm2391, %v2393, %v2389
        %v2395 = vmul.f32 %v2378, %v2394
        %v2396 = vsub.f32 1.0, %v2395
        %v2397 = vld [vmem:[%s614] sm:$0xf]
        %v2398 = vld [vmem:[%s614 + $0x4] sm:$0xf]
        %v2399 = vld [vmem:[%s614 + $0x8] sm:$0xf]
        %v2400 = vld [vmem:[%s614 + $0xc] sm:$0xf]
        %v2401 = vld [vmem:[%s614 + $0x10] sm:$0xf]
        %v2402 = vld [vmem:[%s614 + $0x14] sm:$0xf]
        %v2403 = vld [vmem:[%s614 + $0x18] sm:$0xf]
        %v2404 = vld [vmem:[%s614 + $0x1c] sm:$0xf]
        %v2405 = vld [vmem:[%s614 + $0x20] sm:$0xf]
        %v2406 = vld [vmem:[%s614 + $0x24] sm:$0xf]
        %v2407 = vld [vmem:[%s614 + $0x28] sm:$0xf]
        %v2408 = vld [vmem:[%s614 + $0x2c] sm:$0xf]
        %v2409 = vld [vmem:[%s614 + $0x30] sm:$0xf]
        %v2410 = vld [vmem:[%s614 + $0x34] sm:$0xf]
        %v2411 = vld [vmem:[%s614 + $0x38] sm:$0xf]
        %v2412 = vld [vmem:[%s614 + $0x3c] sm:$0xf]
        %v2413 = vunpack.c.l.bf16 %v2397
        %v2414 = vunpack.c.l.bf16 %v2398
        %v2415 = vunpack.c.l.bf16 %v2399
        %v2416 = vunpack.c.l.bf16 %v2400
        %v2417 = vunpack.c.l.bf16 %v2401
        %v2418 = vunpack.c.l.bf16 %v2402
        %v2419 = vunpack.c.l.bf16 %v2403
        %v2420 = vunpack.c.l.bf16 %v2404
        %v2421 = vunpack.c.l.bf16 %v2405
        %v2422 = vunpack.c.l.bf16 %v2406
        %v2423 = vunpack.c.l.bf16 %v2407
        %v2424 = vunpack.c.l.bf16 %v2408
        %v2425 = vunpack.c.l.bf16 %v2409
        %v2426 = vunpack.c.l.bf16 %v2410
        %v2427 = vunpack.c.l.bf16 %v2411
        %v2428 = vunpack.c.l.bf16 %v2412
        %v2429 = vand.u32 2147483647, %v2413
        %v2430 = vand.u32 2147483647, %v2414
        %v2431 = vand.u32 2147483647, %v2415
        %v2432 = vand.u32 2147483647, %v2416
        %v2433 = vand.u32 2147483647, %v2417
        %v2434 = vand.u32 2147483647, %v2418
        %v2435 = vand.u32 2147483647, %v2419
        %v2436 = vand.u32 2147483647, %v2420
        %v2437 = vand.u32 2147483647, %v2421
        %v2438 = vand.u32 2147483647, %v2422
        %v2439 = vand.u32 2147483647, %v2423
        %v2440 = vand.u32 2147483647, %v2424
        %v2441 = vand.u32 2147483647, %v2425
        %v2442 = vand.u32 2147483647, %v2426
        %v2443 = vand.u32 2147483647, %v2427
        %v2444 = vand.u32 2147483647, %v2428
        %v2445 = vsub.f32 0.0, %v2429
        %v2446 = vsub.f32 0.0, %v2430
        %v2447 = vsub.f32 0.0, %v2431
        %v2448 = vsub.f32 0.0, %v2432
        %v2449 = vsub.f32 0.0, %v2433
        %v2450 = vsub.f32 0.0, %v2434
        %v2451 = vsub.f32 0.0, %v2435
        %v2452 = vsub.f32 0.0, %v2436
        %v2453 = vsub.f32 0.0, %v2437
        %v2454 = vsub.f32 0.0, %v2438
        %v2455 = vsub.f32 0.0, %v2439
        %v2456 = vsub.f32 0.0, %v2440
        %v2457 = vsub.f32 0.0, %v2441
        %v2458 = vsub.f32 0.0, %v2442
        %v2459 = vsub.f32 0.0, %v2443
        %v2460 = vsub.f32 0.0, %v2444
        %v2461 = vmul.f32 %v2445, 1.442695
        %v2462 = vpow.pop %v2461
        %v2463 = vmul.f32 %v2446, 1.442695
        %v2464 = vpow.pop %v2463
        %v2465 = vmul.f32 %v2447, 1.442695
        %v2466 = vpow.pop %v2465
        %v2467 = vmul.f32 %v2448, 1.442695
        %v2468 = vpow.pop %v2467
        %v2469 = vmul.f32 %v2449, 1.442695
        %v2470 = vpow.pop %v2469
        %v2471 = vmul.f32 %v2450, 1.442695
        %v2472 = vpow.pop %v2471
        %v2473 = vmul.f32 %v2451, 1.442695
        %v2474 = vpow.pop %v2473
        %v2475 = vmul.f32 %v2452, 1.442695
        %v2476 = vpow.pop %v2475
        %v2477 = vmul.f32 %v2453, 1.442695
        %v2478 = vpow.pop %v2477
        %v2479 = vmul.f32 %v2454, 1.442695
        %v2480 = vpow.pop %v2479
        %v2481 = vmul.f32 %v2455, 1.442695
        %v2482 = vpow.pop %v2481
        %v2483 = vmul.f32 %v2456, 1.442695
        %v2484 = vpow.pop %v2483
        %v2485 = vmul.f32 %v2457, 1.442695
        %v2486 = vpow.pop %v2485
        %v2487 = vmul.f32 %v2458, 1.442695
        %v2488 = vpow.pop %v2487
        %v2489 = vmul.f32 %v2459, 1.442695
        %v2490 = vpow.pop %v2489
        %v2491 = vmul.f32 %v2460, 1.442695
        %v2492 = vpow.pop %v2491
        %v2493 = vadd.f32 %v2462, 1.0
        %v2494 = vadd.f32 %v2464, 1.0
        %v2495 = vadd.f32 %v2466, 1.0
        %v2496 = vadd.f32 %v2468, 1.0
        %v2497 = vadd.f32 %v2470, 1.0
        %v2498 = vadd.f32 %v2472, 1.0
        %v2499 = vadd.f32 %v2474, 1.0
        %v2500 = vadd.f32 %v2476, 1.0
        %v2501 = vadd.f32 %v2478, 1.0
        %v2502 = vadd.f32 %v2480, 1.0
        %v2503 = vadd.f32 %v2482, 1.0
        %v2504 = vadd.f32 %v2484, 1.0
        %v2505 = vadd.f32 %v2486, 1.0
        %v2506 = vadd.f32 %v2488, 1.0
        %v2507 = vadd.f32 %v2490, 1.0
        %v2508 = vadd.f32 %v2492, 1.0
        %v2509 = vmax.f32 %v2413, 0.0
        %v2510 = vmax.f32 %v2414, 0.0
        %v2511 = vmax.f32 %v2415, 0.0
        %v2512 = vmax.f32 %v2416, 0.0
        %v2513 = vmax.f32 %v2417, 0.0
        %v2514 = vmax.f32 %v2418, 0.0
        %v2515 = vmax.f32 %v2419, 0.0
        %v2516 = vmax.f32 %v2420, 0.0
        %v2517 = vmax.f32 %v2421, 0.0
        %v2518 = vmax.f32 %v2422, 0.0
        %v2519 = vmax.f32 %v2423, 0.0
        %v2520 = vmax.f32 %v2424, 0.0
        %v2521 = vmax.f32 %v2425, 0.0
        %v2522 = vmax.f32 %v2426, 0.0
        %v2523 = vmax.f32 %v2427, 0.0
        %v2524 = vmax.f32 %v2428, 0.0
        %v2525 = vmul.f32 %v2413, %v769
        %v2526 = vmul.f32 %v2414, %v770
        %v2527 = vmul.f32 %v2415, %v771
        %v2528 = vmul.f32 %v2416, %v772
        %v2529 = vmul.f32 %v2417, %v773
        %v2530 = vmul.f32 %v2418, %v774
        %v2531 = vmul.f32 %v2419, %v775
        %v2532 = vmul.f32 %v2420, %v776
        %v2533 = vmul.f32 %v2421, %v777
        %v2534 = vmul.f32 %v2422, %v778
        %v2535 = vmul.f32 %v2423, %v779
        %v2536 = vmul.f32 %v2424, %v780
        %v2537 = vmul.f32 %v2425, %v781
        %v2538 = vmul.f32 %v2426, %v782
        %v2539 = vmul.f32 %v2427, %v783
        %v2540 = vmul.f32 %v2428, %v784
        %v2541 = vsub.f32 %v2509, %v2525
        %v2542 = vsub.f32 %v2510, %v2526
        %v2543 = vsub.f32 %v2511, %v2527
        %v2544 = vsub.f32 %v2512, %v2528
        %v2545 = vsub.f32 %v2513, %v2529
        %v2546 = vsub.f32 %v2514, %v2530
        %v2547 = vsub.f32 %v2515, %v2531
        %v2548 = vsub.f32 %v2516, %v2532
        %v2549 = vsub.f32 %v2517, %v2533
        %v2550 = vsub.f32 %v2518, %v2534
        %v2551 = vsub.f32 %v2519, %v2535
        %v2552 = vsub.f32 %v2520, %v2536
        %v2553 = vsub.f32 %v2521, %v2537
        %v2554 = vsub.f32 %v2522, %v2538
        %v2555 = vsub.f32 %v2523, %v2539
        %v2556 = vsub.f32 %v2524, %v2540
        %v2557 = vlog2.pop %v2493
        %v2558 = vmul.f32 %v2557, 0.6931472
        %v2559 = vlog2.pop %v2494
        %v2560 = vmul.f32 %v2559, 0.6931472
        %v2561 = vlog2.pop %v2495
        %v2562 = vmul.f32 %v2561, 0.6931472
        %v2563 = vlog2.pop %v2496
        %v2564 = vmul.f32 %v2563, 0.6931472
        %v2565 = vlog2.pop %v2497
        %v2566 = vmul.f32 %v2565, 0.6931472
        %v2567 = vlog2.pop %v2498
        %v2568 = vmul.f32 %v2567, 0.6931472
        %v2569 = vlog2.pop %v2499
        %v2570 = vmul.f32 %v2569, 0.6931472
        %v2571 = vlog2.pop %v2500
        %v2572 = vmul.f32 %v2571, 0.6931472
        %v2573 = vlog2.pop %v2501
        %v2574 = vmul.f32 %v2573, 0.6931472
        %v2575 = vlog2.pop %v2502
        %v2576 = vmul.f32 %v2575, 0.6931472
        %v2577 = vlog2.pop %v2503
        %v2578 = vmul.f32 %v2577, 0.6931472
        %v2579 = vlog2.pop %v2504
        %v2580 = vmul.f32 %v2579, 0.6931472
        %v2581 = vlog2.pop %v2505
        %v2582 = vmul.f32 %v2581, 0.6931472
        %v2583 = vlog2.pop %v2506
        %v2584 = vmul.f32 %v2583, 0.6931472
        %v2585 = vlog2.pop %v2507
        %v2586 = vmul.f32 %v2585, 0.6931472
        %v2587 = vlog2.pop %v2508
        %v2588 = vmul.f32 %v2587, 0.6931472
        %v2589 = vadd.f32 %v2541, %v2558
        %v2590 = vadd.f32 %v2542, %v2560
        %v2591 = vadd.f32 %v2543, %v2562
        %v2592 = vadd.f32 %v2544, %v2564
        %v2593 = vadd.f32 %v2545, %v2566
        %v2594 = vadd.f32 %v2546, %v2568
        %v2595 = vadd.f32 %v2547, %v2570
        %v2596 = vadd.f32 %v2548, %v2572
        %v2597 = vadd.f32 %v2549, %v2574
        %v2598 = vadd.f32 %v2550, %v2576
        %v2599 = vadd.f32 %v2551, %v2578
        %v2600 = vadd.f32 %v2552, %v2580
        %v2601 = vadd.f32 %v2553, %v2582
        %v2602 = vadd.f32 %v2554, %v2584
        %v2603 = vadd.f32 %v2555, %v2586
        %v2604 = vadd.f32 %v2556, %v2588
        %v2605 = vsel %vm845, %v2589, 0.0
        %v2606 = vsel %vm845, %v2590, 0.0
        %v2607 = vadd.f32 %v2605, %v2606
        %v2608 = vsel %vm845, %v2591, 0.0
        %v2609 = vadd.f32 %v2607, %v2608
        %v2610 = vsel %vm845, %v2592, 0.0
        %v2611 = vadd.f32 %v2609, %v2610
        %v2612 = vrot.slane %v2611, 4
        %v2613 = vadd.f32 %v2611, %v2612
        %v2614 = vrot.slane %v2613, 2
        %v2615 = vadd.f32 %v2613, %v2614
        %v2616 = vrot.slane %v2615, 1
        %v2617 = vadd.f32 %v2615, %v2616
        %v2618 = vsel %vm845, %v2593, 0.0
        %v2619 = vsel %vm845, %v2594, 0.0
        %v2620 = vadd.f32 %v2618, %v2619
        %v2621 = vsel %vm845, %v2595, 0.0
        %v2622 = vadd.f32 %v2620, %v2621
        %v2623 = vsel %vm845, %v2596, 0.0
        %v2624 = vadd.f32 %v2622, %v2623
        %v2625 = vrot.slane %v2624, 4
        %v2626 = vadd.f32 %v2624, %v2625
        %v2627 = vrot.slane %v2626, 2
        %v2628 = vadd.f32 %v2626, %v2627
        %v2629 = vrot.slane %v2628, 1
        %v2630 = vadd.f32 %v2628, %v2629
        %v2631 = vsel %vm845, %v2597, 0.0
        %v2632 = vsel %vm845, %v2598, 0.0
        %v2633 = vadd.f32 %v2631, %v2632
        %v2634 = vsel %vm845, %v2599, 0.0
        %v2635 = vadd.f32 %v2633, %v2634
        %v2636 = vsel %vm845, %v2600, 0.0
        %v2637 = vadd.f32 %v2635, %v2636
        %v2638 = vrot.slane %v2637, 4
        %v2639 = vadd.f32 %v2637, %v2638
        %v2640 = vrot.slane %v2639, 2
        %v2641 = vadd.f32 %v2639, %v2640
        %v2642 = vrot.slane %v2641, 1
        %v2643 = vadd.f32 %v2641, %v2642
        %v2644 = vsel %vm845, %v2601, 0.0
        %v2645 = vsel %vm845, %v2602, 0.0
        %v2646 = vadd.f32 %v2644, %v2645
        %v2647 = vsel %vm845, %v2603, 0.0
        %v2648 = vadd.f32 %v2646, %v2647
        %v2649 = vsel %vm845, %v2604, 0.0
        %v2650 = vadd.f32 %v2648, %v2649
        %v2651 = vrot.slane %v2650, 4
        %v2652 = vadd.f32 %v2650, %v2651
        %v2653 = vrot.slane %v2652, 2
        %v2654 = vadd.f32 %v2652, %v2653
        %v2655 = vrot.slane %v2654, 1
        %v2656 = vadd.f32 %v2654, %v2655
        %v2661 = vsel %vm1262, %v2630, %v2617
        %v2662 = vsel %vm1264, %v2643, %v2661
        %v2663 = vsel %vm1266, %v2656, %v2662
        %v2665 = vsel %vm1269, %v2663, 0.0
        %2666 = vadd.xlane.f32.xlu0 %v2665
        %v2667 = vpop.xlane.xlu0 %2666
        %v2668 = vmul.f32 %v2667, 0.0009765625
        %v2669 = vrcp.pop %v2493
        %v2670 = vrcp.pop %v2494
        %v2671 = vrcp.pop %v2495
        %v2672 = vrcp.pop %v2496
        %v2673 = vrcp.pop %v2497
        %v2674 = vrcp.pop %v2498
        %v2675 = vrcp.pop %v2499
        %v2676 = vrcp.pop %v2500
        %v2677 = vrcp.pop %v2501
        %v2678 = vrcp.pop %v2502
        %v2679 = vrcp.pop %v2503
        %v2680 = vrcp.pop %v2504
        %v2681 = vrcp.pop %v2505
        %v2682 = vrcp.pop %v2506
        %v2683 = vrcp.pop %v2507
        %v2684 = vrcp.pop %v2508
        %v2685 = vmul.f32 %v2493, %v2669
        %v2686 = vmul.f32 %v2494, %v2670
        %v2687 = vmul.f32 %v2495, %v2671
        %v2688 = vmul.f32 %v2496, %v2672
        %v2689 = vmul.f32 %v2497, %v2673
        %v2690 = vmul.f32 %v2498, %v2674
        %v2691 = vmul.f32 %v2499, %v2675
        %v2692 = vmul.f32 %v2500, %v2676
        %v2693 = vmul.f32 %v2501, %v2677
        %v2694 = vmul.f32 %v2502, %v2678
        %v2695 = vmul.f32 %v2503, %v2679
        %v2696 = vmul.f32 %v2504, %v2680
        %v2697 = vmul.f32 %v2505, %v2681
        %v2698 = vmul.f32 %v2506, %v2682
        %v2699 = vmul.f32 %v2507, %v2683
        %v2700 = vmul.f32 %v2508, %v2684
        %v2701 = vsub.f32 2.0, %v2685
        %v2702 = vsub.f32 2.0, %v2686
        %v2703 = vsub.f32 2.0, %v2687
        %v2704 = vsub.f32 2.0, %v2688
        %v2705 = vsub.f32 2.0, %v2689
        %v2706 = vsub.f32 2.0, %v2690
        %v2707 = vsub.f32 2.0, %v2691
        %v2708 = vsub.f32 2.0, %v2692
        %v2709 = vsub.f32 2.0, %v2693
        %v2710 = vsub.f32 2.0, %v2694
        %v2711 = vsub.f32 2.0, %v2695
        %v2712 = vsub.f32 2.0, %v2696
        %v2713 = vsub.f32 2.0, %v2697
        %v2714 = vsub.f32 2.0, %v2698
        %v2715 = vsub.f32 2.0, %v2699
        %v2716 = vsub.f32 2.0, %v2700
        %v2717 = vmul.f32 %v2669, %v2701
        %v2718 = vmul.f32 %v2670, %v2702
        %v2719 = vmul.f32 %v2671, %v2703
        %v2720 = vmul.f32 %v2672, %v2704
        %v2721 = vmul.f32 %v2673, %v2705
        %v2722 = vmul.f32 %v2674, %v2706
        %v2723 = vmul.f32 %v2675, %v2707
        %v2724 = vmul.f32 %v2676, %v2708
        %v2725 = vmul.f32 %v2677, %v2709
        %v2726 = vmul.f32 %v2678, %v2710
        %v2727 = vmul.f32 %v2679, %v2711
        %v2728 = vmul.f32 %v2680, %v2712
        %v2729 = vmul.f32 %v2681, %v2713
        %v2730 = vmul.f32 %v2682, %v2714
        %v2731 = vmul.f32 %v2683, %v2715
        %v2732 = vmul.f32 %v2684, %v2716
        %vm2733 = vcmp.ge.f32.partialorder %v2413, 0.0
        %vm2734 = vcmp.ge.f32.partialorder %v2414, 0.0
        %vm2735 = vcmp.ge.f32.partialorder %v2415, 0.0
        %vm2736 = vcmp.ge.f32.partialorder %v2416, 0.0
        %vm2737 = vcmp.ge.f32.partialorder %v2417, 0.0
        %vm2738 = vcmp.ge.f32.partialorder %v2418, 0.0
        %vm2739 = vcmp.ge.f32.partialorder %v2419, 0.0
        %vm2740 = vcmp.ge.f32.partialorder %v2420, 0.0
        %vm2741 = vcmp.ge.f32.partialorder %v2421, 0.0
        %vm2742 = vcmp.ge.f32.partialorder %v2422, 0.0
        %vm2743 = vcmp.ge.f32.partialorder %v2423, 0.0
        %vm2744 = vcmp.ge.f32.partialorder %v2424, 0.0
        %vm2745 = vcmp.ge.f32.partialorder %v2425, 0.0
        %vm2746 = vcmp.ge.f32.partialorder %v2426, 0.0
        %vm2747 = vcmp.ge.f32.partialorder %v2427, 0.0
        %vm2748 = vcmp.ge.f32.partialorder %v2428, 0.0
        %v2749 = vmul.f32 %v2462, %v2717
        %v2750 = vmul.f32 %v2464, %v2718
        %v2751 = vmul.f32 %v2466, %v2719
        %v2752 = vmul.f32 %v2468, %v2720
        %v2753 = vmul.f32 %v2470, %v2721
        %v2754 = vmul.f32 %v2472, %v2722
        %v2755 = vmul.f32 %v2474, %v2723
        %v2756 = vmul.f32 %v2476, %v2724
        %v2757 = vmul.f32 %v2478, %v2725
        %v2758 = vmul.f32 %v2480, %v2726
        %v2759 = vmul.f32 %v2482, %v2727
        %v2760 = vmul.f32 %v2484, %v2728
        %v2761 = vmul.f32 %v2486, %v2729
        %v2762 = vmul.f32 %v2488, %v2730
        %v2763 = vmul.f32 %v2490, %v2731
        %v2764 = vmul.f32 %v2492, %v2732
        %v2765 = vsel %vm2733, %v2717, %v2749
        %v2766 = vsel %vm2734, %v2718, %v2750
        %v2767 = vsel %vm2735, %v2719, %v2751
        %v2768 = vsel %vm2736, %v2720, %v2752
        %v2769 = vsel %vm2737, %v2721, %v2753
        %v2770 = vsel %vm2738, %v2722, %v2754
        %v2771 = vsel %vm2739, %v2723, %v2755
        %v2772 = vsel %vm2740, %v2724, %v2756
        %v2773 = vsel %vm2741, %v2725, %v2757
        %v2774 = vsel %vm2742, %v2726, %v2758
        %v2775 = vsel %vm2743, %v2727, %v2759
        %v2776 = vsel %vm2744, %v2728, %v2760
        %v2777 = vsel %vm2745, %v2729, %v2761
        %v2778 = vsel %vm2746, %v2730, %v2762
        %v2779 = vsel %vm2747, %v2731, %v2763
        %v2780 = vsel %vm2748, %v2732, %v2764
        %v2781 = vmul.f32 %v2765, %v1190
        %v2782 = vmul.f32 %v2766, %v1191
        %v2783 = vmul.f32 %v2767, %v1192
        %v2784 = vmul.f32 %v2768, %v1193
        %v2785 = vmul.f32 %v2769, %v1194
        %v2786 = vmul.f32 %v2770, %v1195
        %v2787 = vmul.f32 %v2771, %v1196
        %v2788 = vmul.f32 %v2772, %v1197
        %v2789 = vmul.f32 %v2773, %v1198
        %v2790 = vmul.f32 %v2774, %v1199
        %v2791 = vmul.f32 %v2775, %v1200
        %v2792 = vmul.f32 %v2776, %v1201
        %v2793 = vmul.f32 %v2777, %v1202
        %v2794 = vmul.f32 %v2778, %v1203
        %v2795 = vmul.f32 %v2779, %v1204
        %v2796 = vmul.f32 %v2780, %v1205
        %v2797 = vsel %vm845, %v2781, 0.0
        %v2798 = vsel %vm845, %v2782, 0.0
        %v2799 = vadd.f32 %v2797, %v2798
        %v2800 = vsel %vm845, %v2783, 0.0
        %v2801 = vadd.f32 %v2799, %v2800
        %v2802 = vsel %vm845, %v2784, 0.0
        %v2803 = vadd.f32 %v2801, %v2802
        %v2804 = vrot.slane %v2803, 4
        %v2805 = vadd.f32 %v2803, %v2804
        %v2806 = vrot.slane %v2805, 2
        %v2807 = vadd.f32 %v2805, %v2806
        %v2808 = vrot.slane %v2807, 1
        %v2809 = vadd.f32 %v2807, %v2808
        %v2810 = vsel %vm845, %v2785, 0.0
        %v2811 = vsel %vm845, %v2786, 0.0
        %v2812 = vadd.f32 %v2810, %v2811
        %v2813 = vsel %vm845, %v2787, 0.0
        %v2814 = vadd.f32 %v2812, %v2813
        %v2815 = vsel %vm845, %v2788, 0.0
        %v2816 = vadd.f32 %v2814, %v2815
        %v2817 = vrot.slane %v2816, 4
        %v2818 = vadd.f32 %v2816, %v2817
        %v2819 = vrot.slane %v2818, 2
        %v2820 = vadd.f32 %v2818, %v2819
        %v2821 = vrot.slane %v2820, 1
        %v2822 = vadd.f32 %v2820, %v2821
        %v2823 = vsel %vm845, %v2789, 0.0
        %v2824 = vsel %vm845, %v2790, 0.0
        %v2825 = vadd.f32 %v2823, %v2824
        %v2826 = vsel %vm845, %v2791, 0.0
        %v2827 = vadd.f32 %v2825, %v2826
        %v2828 = vsel %vm845, %v2792, 0.0
        %v2829 = vadd.f32 %v2827, %v2828
        %v2830 = vrot.slane %v2829, 4
        %v2831 = vadd.f32 %v2829, %v2830
        %v2832 = vrot.slane %v2831, 2
        %v2833 = vadd.f32 %v2831, %v2832
        %v2834 = vrot.slane %v2833, 1
        %v2835 = vadd.f32 %v2833, %v2834
        %v2836 = vsel %vm845, %v2793, 0.0
        %v2837 = vsel %vm845, %v2794, 0.0
        %v2838 = vadd.f32 %v2836, %v2837
        %v2839 = vsel %vm845, %v2795, 0.0
        %v2840 = vadd.f32 %v2838, %v2839
        %v2841 = vsel %vm845, %v2796, 0.0
        %v2842 = vadd.f32 %v2840, %v2841
        %v2843 = vrot.slane %v2842, 4
        %v2844 = vadd.f32 %v2842, %v2843
        %v2845 = vrot.slane %v2844, 2
        %v2846 = vadd.f32 %v2844, %v2845
        %v2847 = vrot.slane %v2846, 1
        %v2848 = vadd.f32 %v2846, %v2847
        %v2853 = vsel %vm1262, %v2822, %v2809
        %v2854 = vsel %vm1264, %v2835, %v2853
        %v2855 = vsel %vm1266, %v2848, %v2854
        %v2857 = vsel %vm1269, %v2855, 0.0
        %2858 = vadd.xlane.f32.xlu0 %v2857
        %v2859 = vpop.xlane.xlu0 %2858
        %v2860 = vmul.f32 %v2765, %v1174
        %v2861 = vmul.f32 %v2766, %v1175
        %v2862 = vmul.f32 %v2767, %v1176
        %v2863 = vmul.f32 %v2768, %v1177
        %v2864 = vmul.f32 %v2769, %v1178
        %v2865 = vmul.f32 %v2770, %v1179
        %v2866 = vmul.f32 %v2771, %v1180
        %v2867 = vmul.f32 %v2772, %v1181
        %v2868 = vmul.f32 %v2773, %v1182
        %v2869 = vmul.f32 %v2774, %v1183
        %v2870 = vmul.f32 %v2775, %v1184
        %v2871 = vmul.f32 %v2776, %v1185
        %v2872 = vmul.f32 %v2777, %v1186
        %v2873 = vmul.f32 %v2778, %v1187
        %v2874 = vmul.f32 %v2779, %v1188
        %v2875 = vmul.f32 %v2780, %v1189
        %v2876 = vsel %vm845, %v2860, 0.0
        %v2877 = vsel %vm845, %v2861, 0.0
        %v2878 = vadd.f32 %v2876, %v2877
        %v2879 = vsel %vm845, %v2862, 0.0
        %v2880 = vadd.f32 %v2878, %v2879
        %v2881 = vsel %vm845, %v2863, 0.0
        %v2882 = vadd.f32 %v2880, %v2881
        %v2883 = vrot.slane %v2882, 4
        %v2884 = vadd.f32 %v2882, %v2883
        %v2885 = vrot.slane %v2884, 2
        %v2886 = vadd.f32 %v2884, %v2885
        %v2887 = vrot.slane %v2886, 1
        %v2888 = vadd.f32 %v2886, %v2887
        %v2889 = vsel %vm845, %v2864, 0.0
        %v2890 = vsel %vm845, %v2865, 0.0
        %v2891 = vadd.f32 %v2889, %v2890
        %v2892 = vsel %vm845, %v2866, 0.0
        %v2893 = vadd.f32 %v2891, %v2892
        %v2894 = vsel %vm845, %v2867, 0.0
        %v2895 = vadd.f32 %v2893, %v2894
        %v2896 = vrot.slane %v2895, 4
        %v2897 = vadd.f32 %v2895, %v2896
        %v2898 = vrot.slane %v2897, 2
        %v2899 = vadd.f32 %v2897, %v2898
        %v2900 = vrot.slane %v2899, 1
        %v2901 = vadd.f32 %v2899, %v2900
        %v2902 = vsel %vm845, %v2868, 0.0
        %v2903 = vsel %vm845, %v2869, 0.0
        %v2904 = vadd.f32 %v2902, %v2903
        %v2905 = vsel %vm845, %v2870, 0.0
        %v2906 = vadd.f32 %v2904, %v2905
        %v2907 = vsel %vm845, %v2871, 0.0
        %v2908 = vadd.f32 %v2906, %v2907
        %v2909 = vrot.slane %v2908, 4
        %v2910 = vadd.f32 %v2908, %v2909
        %v2911 = vrot.slane %v2910, 2
        %v2912 = vadd.f32 %v2910, %v2911
        %v2913 = vrot.slane %v2912, 1
        %v2914 = vadd.f32 %v2912, %v2913
        %v2915 = vsel %vm845, %v2872, 0.0
        %v2916 = vsel %vm845, %v2873, 0.0
        %v2917 = vadd.f32 %v2915, %v2916
        %v2918 = vsel %vm845, %v2874, 0.0
        %v2919 = vadd.f32 %v2917, %v2918
        %v2920 = vsel %vm845, %v2875, 0.0
        %v2921 = vadd.f32 %v2919, %v2920
        %v2922 = vrot.slane %v2921, 4
        %v2923 = vadd.f32 %v2921, %v2922
        %v2924 = vrot.slane %v2923, 2
        %v2925 = vadd.f32 %v2923, %v2924
        %v2926 = vrot.slane %v2925, 1
        %v2927 = vadd.f32 %v2925, %v2926
        %v2932 = vsel %vm1262, %v2901, %v2888
        %v2933 = vsel %vm1264, %v2914, %v2932
        %v2934 = vsel %vm1266, %v2927, %v2933
        %v2936 = vsel %vm1269, %v2934, 0.0
        %2937 = vadd.xlane.f32.xlu0 %v2936
        %v2938 = vpop.xlane.xlu0 %2937
        %v2939 = vadd.f32 %v2938, %v1272
        %v2940 = vadd.f32 %v2859, 1.0
        %v2941 = vsub.f32 %v2939, %v2859
        %v2942 = vadd.f32 %v2941, 1.0
        %v2943 = vrcp.pop %v2942
        %v2944 = vmul.f32 %v2942, %v2943
        %v2945 = vsub.f32 1.0, %v2944
        %v2946 = vmul.f32 %v2943, %v2945
        %v2947 = vadd.f32 %v2943, %v2946
        %vm2948 = vweird.f32 %v2942
        %vm2949 = vweird.f32 %v2943
        %vm2950 = vmor %vm2948, %vm2949
        %v2951 = vsel %vm2950, %v2943, %v2947
        %v2952 = vand.u32 2147483647, %v2942
        %vm2953 = vcmp.eq.f32.partialorder %v2952, 8.507059e+37
        %v2954 = vand.u32 %v2942, 2147483648
        %v2955 = vor.u32 1.1754944e-38, %v2954
        %v2956 = vsel %vm2953, %v2955, %v2951
        %v2957 = vmul.f32 %v2940, %v2956
        %v2958 = vsub.f32 1.0, %v2957
        %v2959 = vld [vmem:[%s624] sm:$0xf]
        %v2960 = vld [vmem:[%s624 + $0x4] sm:$0xf]
        %v2961 = vld [vmem:[%s624 + $0x8] sm:$0xf]
        %v2962 = vld [vmem:[%s624 + $0xc] sm:$0xf]
        %v2963 = vld [vmem:[%s624 + $0x10] sm:$0xf]
        %v2964 = vld [vmem:[%s624 + $0x14] sm:$0xf]
        %v2965 = vld [vmem:[%s624 + $0x18] sm:$0xf]
        %v2966 = vld [vmem:[%s624 + $0x1c] sm:$0xf]
        %v2967 = vld [vmem:[%s624 + $0x20] sm:$0xf]
        %v2968 = vld [vmem:[%s624 + $0x24] sm:$0xf]
        %v2969 = vld [vmem:[%s624 + $0x28] sm:$0xf]
        %v2970 = vld [vmem:[%s624 + $0x2c] sm:$0xf]
        %v2971 = vld [vmem:[%s624 + $0x30] sm:$0xf]
        %v2972 = vld [vmem:[%s624 + $0x34] sm:$0xf]
        %v2973 = vld [vmem:[%s624 + $0x38] sm:$0xf]
        %v2974 = vld [vmem:[%s624 + $0x3c] sm:$0xf]
        %v2975 = vunpack.c.l.bf16 %v2959
        %v2976 = vunpack.c.l.bf16 %v2960
        %v2977 = vunpack.c.l.bf16 %v2961
        %v2978 = vunpack.c.l.bf16 %v2962
        %v2979 = vunpack.c.l.bf16 %v2963
        %v2980 = vunpack.c.l.bf16 %v2964
        %v2981 = vunpack.c.l.bf16 %v2965
        %v2982 = vunpack.c.l.bf16 %v2966
        %v2983 = vunpack.c.l.bf16 %v2967
        %v2984 = vunpack.c.l.bf16 %v2968
        %v2985 = vunpack.c.l.bf16 %v2969
        %v2986 = vunpack.c.l.bf16 %v2970
        %v2987 = vunpack.c.l.bf16 %v2971
        %v2988 = vunpack.c.l.bf16 %v2972
        %v2989 = vunpack.c.l.bf16 %v2973
        %v2990 = vunpack.c.l.bf16 %v2974
        %v2991 = vand.u32 2147483647, %v2975
        %v2992 = vand.u32 2147483647, %v2976
        %v2993 = vand.u32 2147483647, %v2977
        %v2994 = vand.u32 2147483647, %v2978
        %v2995 = vand.u32 2147483647, %v2979
        %v2996 = vand.u32 2147483647, %v2980
        %v2997 = vand.u32 2147483647, %v2981
        %v2998 = vand.u32 2147483647, %v2982
        %v2999 = vand.u32 2147483647, %v2983
        %v3000 = vand.u32 2147483647, %v2984
        %v3001 = vand.u32 2147483647, %v2985
        %v3002 = vand.u32 2147483647, %v2986
        %v3003 = vand.u32 2147483647, %v2987
        %v3004 = vand.u32 2147483647, %v2988
        %v3005 = vand.u32 2147483647, %v2989
        %v3006 = vand.u32 2147483647, %v2990
        %v3007 = vsub.f32 0.0, %v2991
        %v3008 = vsub.f32 0.0, %v2992
        %v3009 = vsub.f32 0.0, %v2993
        %v3010 = vsub.f32 0.0, %v2994
        %v3011 = vsub.f32 0.0, %v2995
        %v3012 = vsub.f32 0.0, %v2996
        %v3013 = vsub.f32 0.0, %v2997
        %v3014 = vsub.f32 0.0, %v2998
        %v3015 = vsub.f32 0.0, %v2999
        %v3016 = vsub.f32 0.0, %v3000
        %v3017 = vsub.f32 0.0, %v3001
        %v3018 = vsub.f32 0.0, %v3002
        %v3019 = vsub.f32 0.0, %v3003
        %v3020 = vsub.f32 0.0, %v3004
        %v3021 = vsub.f32 0.0, %v3005
        %v3022 = vsub.f32 0.0, %v3006
        %v3023 = vmul.f32 %v3007, 1.442695
        %v3024 = vpow.pop %v3023
        %v3025 = vmul.f32 %v3008, 1.442695
        %v3026 = vpow.pop %v3025
        %v3027 = vmul.f32 %v3009, 1.442695
        %v3028 = vpow.pop %v3027
        %v3029 = vmul.f32 %v3010, 1.442695
        %v3030 = vpow.pop %v3029
        %v3031 = vmul.f32 %v3011, 1.442695
        %v3032 = vpow.pop %v3031
        %v3033 = vmul.f32 %v3012, 1.442695
        %v3034 = vpow.pop %v3033
        %v3035 = vmul.f32 %v3013, 1.442695
        %v3036 = vpow.pop %v3035
        %v3037 = vmul.f32 %v3014, 1.442695
        %v3038 = vpow.pop %v3037
        %v3039 = vmul.f32 %v3015, 1.442695
        %v3040 = vpow.pop %v3039
        %v3041 = vmul.f32 %v3016, 1.442695
        %v3042 = vpow.pop %v3041
        %v3043 = vmul.f32 %v3017, 1.442695
        %v3044 = vpow.pop %v3043
        %v3045 = vmul.f32 %v3018, 1.442695
        %v3046 = vpow.pop %v3045
        %v3047 = vmul.f32 %v3019, 1.442695
        %v3048 = vpow.pop %v3047
        %v3049 = vmul.f32 %v3020, 1.442695
        %v3050 = vpow.pop %v3049
        %v3051 = vmul.f32 %v3021, 1.442695
        %v3052 = vpow.pop %v3051
        %v3053 = vmul.f32 %v3022, 1.442695
        %v3054 = vpow.pop %v3053
        %v3055 = vadd.f32 %v3024, 1.0
        %v3056 = vadd.f32 %v3026, 1.0
        %v3057 = vadd.f32 %v3028, 1.0
        %v3058 = vadd.f32 %v3030, 1.0
        %v3059 = vadd.f32 %v3032, 1.0
        %v3060 = vadd.f32 %v3034, 1.0
        %v3061 = vadd.f32 %v3036, 1.0
        %v3062 = vadd.f32 %v3038, 1.0
        %v3063 = vadd.f32 %v3040, 1.0
        %v3064 = vadd.f32 %v3042, 1.0
        %v3065 = vadd.f32 %v3044, 1.0
        %v3066 = vadd.f32 %v3046, 1.0
        %v3067 = vadd.f32 %v3048, 1.0
        %v3068 = vadd.f32 %v3050, 1.0
        %v3069 = vadd.f32 %v3052, 1.0
        %v3070 = vadd.f32 %v3054, 1.0
        %v3071 = vmax.f32 %v2975, 0.0
        %v3072 = vmax.f32 %v2976, 0.0
        %v3073 = vmax.f32 %v2977, 0.0
        %v3074 = vmax.f32 %v2978, 0.0
        %v3075 = vmax.f32 %v2979, 0.0
        %v3076 = vmax.f32 %v2980, 0.0
        %v3077 = vmax.f32 %v2981, 0.0
        %v3078 = vmax.f32 %v2982, 0.0
        %v3079 = vmax.f32 %v2983, 0.0
        %v3080 = vmax.f32 %v2984, 0.0
        %v3081 = vmax.f32 %v2985, 0.0
        %v3082 = vmax.f32 %v2986, 0.0
        %v3083 = vmax.f32 %v2987, 0.0
        %v3084 = vmax.f32 %v2988, 0.0
        %v3085 = vmax.f32 %v2989, 0.0
        %v3086 = vmax.f32 %v2990, 0.0
        %v3087 = vmul.f32 %v2975, %v769
        %v3088 = vmul.f32 %v2976, %v770
        %v3089 = vmul.f32 %v2977, %v771
        %v3090 = vmul.f32 %v2978, %v772
        %v3091 = vmul.f32 %v2979, %v773
        %v3092 = vmul.f32 %v2980, %v774
        %v3093 = vmul.f32 %v2981, %v775
        %v3094 = vmul.f32 %v2982, %v776
        %v3095 = vmul.f32 %v2983, %v777
        %v3096 = vmul.f32 %v2984, %v778
        %v3097 = vmul.f32 %v2985, %v779
        %v3098 = vmul.f32 %v2986, %v780
        %v3099 = vmul.f32 %v2987, %v781
        %v3100 = vmul.f32 %v2988, %v782
        %v3101 = vmul.f32 %v2989, %v783
        %v3102 = vmul.f32 %v2990, %v784
        %v3103 = vsub.f32 %v3071, %v3087
        %v3104 = vsub.f32 %v3072, %v3088
        %v3105 = vsub.f32 %v3073, %v3089
        %v3106 = vsub.f32 %v3074, %v3090
        %v3107 = vsub.f32 %v3075, %v3091
        %v3108 = vsub.f32 %v3076, %v3092
        %v3109 = vsub.f32 %v3077, %v3093
        %v3110 = vsub.f32 %v3078, %v3094
        %v3111 = vsub.f32 %v3079, %v3095
        %v3112 = vsub.f32 %v3080, %v3096
        %v3113 = vsub.f32 %v3081, %v3097
        %v3114 = vsub.f32 %v3082, %v3098
        %v3115 = vsub.f32 %v3083, %v3099
        %v3116 = vsub.f32 %v3084, %v3100
        %v3117 = vsub.f32 %v3085, %v3101
        %v3118 = vsub.f32 %v3086, %v3102
        %v3119 = vlog2.pop %v3055
        %v3120 = vmul.f32 %v3119, 0.6931472
        %v3121 = vlog2.pop %v3056
        %v3122 = vmul.f32 %v3121, 0.6931472
        %v3123 = vlog2.pop %v3057
        %v3124 = vmul.f32 %v3123, 0.6931472
        %v3125 = vlog2.pop %v3058
        %v3126 = vmul.f32 %v3125, 0.6931472
        %v3127 = vlog2.pop %v3059
        %v3128 = vmul.f32 %v3127, 0.6931472
        %v3129 = vlog2.pop %v3060
        %v3130 = vmul.f32 %v3129, 0.6931472
        %v3131 = vlog2.pop %v3061
        %v3132 = vmul.f32 %v3131, 0.6931472
        %v3133 = vlog2.pop %v3062
        %v3134 = vmul.f32 %v3133, 0.6931472
        %v3135 = vlog2.pop %v3063
        %v3136 = vmul.f32 %v3135, 0.6931472
        %v3137 = vlog2.pop %v3064
        %v3138 = vmul.f32 %v3137, 0.6931472
        %v3139 = vlog2.pop %v3065
        %v3140 = vmul.f32 %v3139, 0.6931472
        %v3141 = vlog2.pop %v3066
        %v3142 = vmul.f32 %v3141, 0.6931472
        %v3143 = vlog2.pop %v3067
        %v3144 = vmul.f32 %v3143, 0.6931472
        %v3145 = vlog2.pop %v3068
        %v3146 = vmul.f32 %v3145, 0.6931472
        %v3147 = vlog2.pop %v3069
        %v3148 = vmul.f32 %v3147, 0.6931472
        %v3149 = vlog2.pop %v3070
        %v3150 = vmul.f32 %v3149, 0.6931472
        %v3151 = vadd.f32 %v3103, %v3120
        %v3152 = vadd.f32 %v3104, %v3122
        %v3153 = vadd.f32 %v3105, %v3124
        %v3154 = vadd.f32 %v3106, %v3126
        %v3155 = vadd.f32 %v3107, %v3128
        %v3156 = vadd.f32 %v3108, %v3130
        %v3157 = vadd.f32 %v3109, %v3132
        %v3158 = vadd.f32 %v3110, %v3134
        %v3159 = vadd.f32 %v3111, %v3136
        %v3160 = vadd.f32 %v3112, %v3138
        %v3161 = vadd.f32 %v3113, %v3140
        %v3162 = vadd.f32 %v3114, %v3142
        %v3163 = vadd.f32 %v3115, %v3144
        %v3164 = vadd.f32 %v3116, %v3146
        %v3165 = vadd.f32 %v3117, %v3148
        %v3166 = vadd.f32 %v3118, %v3150
        %v3167 = vsel %vm845, %v3151, 0.0
        %v3168 = vsel %vm845, %v3152, 0.0
        %v3169 = vadd.f32 %v3167, %v3168
        %v3170 = vsel %vm845, %v3153, 0.0
        %v3171 = vadd.f32 %v3169, %v3170
        %v3172 = vsel %vm845, %v3154, 0.0
        %v3173 = vadd.f32 %v3171, %v3172
        %v3174 = vrot.slane %v3173, 4
        %v3175 = vadd.f32 %v3173, %v3174
        %v3176 = vrot.slane %v3175, 2
        %v3177 = vadd.f32 %v3175, %v3176
        %v3178 = vrot.slane %v3177, 1
        %v3179 = vadd.f32 %v3177, %v3178
        %v3180 = vsel %vm845, %v3155, 0.0
        %v3181 = vsel %vm845, %v3156, 0.0
        %v3182 = vadd.f32 %v3180, %v3181
        %v3183 = vsel %vm845, %v3157, 0.0
        %v3184 = vadd.f32 %v3182, %v3183
        %v3185 = vsel %vm845, %v3158, 0.0
        %v3186 = vadd.f32 %v3184, %v3185
        %v3187 = vrot.slane %v3186, 4
        %v3188 = vadd.f32 %v3186, %v3187
        %v3189 = vrot.slane %v3188, 2
        %v3190 = vadd.f32 %v3188, %v3189
        %v3191 = vrot.slane %v3190, 1
        %v3192 = vadd.f32 %v3190, %v3191
        %v3193 = vsel %vm845, %v3159, 0.0
        %v3194 = vsel %vm845, %v3160, 0.0
        %v3195 = vadd.f32 %v3193, %v3194
        %v3196 = vsel %vm845, %v3161, 0.0
        %v3197 = vadd.f32 %v3195, %v3196
        %v3198 = vsel %vm845, %v3162, 0.0
        %v3199 = vadd.f32 %v3197, %v3198
        %v3200 = vrot.slane %v3199, 4
        %v3201 = vadd.f32 %v3199, %v3200
        %v3202 = vrot.slane %v3201, 2
        %v3203 = vadd.f32 %v3201, %v3202
        %v3204 = vrot.slane %v3203, 1
        %v3205 = vadd.f32 %v3203, %v3204
        %v3206 = vsel %vm845, %v3163, 0.0
        %v3207 = vsel %vm845, %v3164, 0.0
        %v3208 = vadd.f32 %v3206, %v3207
        %v3209 = vsel %vm845, %v3165, 0.0
        %v3210 = vadd.f32 %v3208, %v3209
        %v3211 = vsel %vm845, %v3166, 0.0
        %v3212 = vadd.f32 %v3210, %v3211
        %v3213 = vrot.slane %v3212, 4
        %v3214 = vadd.f32 %v3212, %v3213
        %v3215 = vrot.slane %v3214, 2
        %v3216 = vadd.f32 %v3214, %v3215
        %v3217 = vrot.slane %v3216, 1
        %v3218 = vadd.f32 %v3216, %v3217
        %v3223 = vsel %vm1262, %v3192, %v3179
        %v3224 = vsel %vm1264, %v3205, %v3223
        %v3225 = vsel %vm1266, %v3218, %v3224
        %v3227 = vsel %vm1269, %v3225, 0.0
        %3228 = vadd.xlane.f32.xlu0 %v3227
        %v3229 = vpop.xlane.xlu0 %3228
        %v3230 = vmul.f32 %v3229, 0.0009765625
        %v3231 = vrcp.pop %v3055
        %v3232 = vrcp.pop %v3056
        %v3233 = vrcp.pop %v3057
        %v3234 = vrcp.pop %v3058
        %v3235 = vrcp.pop %v3059
        %v3236 = vrcp.pop %v3060
        %v3237 = vrcp.pop %v3061
        %v3238 = vrcp.pop %v3062
        %v3239 = vrcp.pop %v3063
        %v3240 = vrcp.pop %v3064
        %v3241 = vrcp.pop %v3065
        %v3242 = vrcp.pop %v3066
        %v3243 = vrcp.pop %v3067
        %v3244 = vrcp.pop %v3068
        %v3245 = vrcp.pop %v3069
        %v3246 = vrcp.pop %v3070
        %v3247 = vmul.f32 %v3055, %v3231
        %v3248 = vmul.f32 %v3056, %v3232
        %v3249 = vmul.f32 %v3057, %v3233
        %v3250 = vmul.f32 %v3058, %v3234
        %v3251 = vmul.f32 %v3059, %v3235
        %v3252 = vmul.f32 %v3060, %v3236
        %v3253 = vmul.f32 %v3061, %v3237
        %v3254 = vmul.f32 %v3062, %v3238
        %v3255 = vmul.f32 %v3063, %v3239
        %v3256 = vmul.f32 %v3064, %v3240
        %v3257 = vmul.f32 %v3065, %v3241
        %v3258 = vmul.f32 %v3066, %v3242
        %v3259 = vmul.f32 %v3067, %v3243
        %v3260 = vmul.f32 %v3068, %v3244
        %v3261 = vmul.f32 %v3069, %v3245
        %v3262 = vmul.f32 %v3070, %v3246
        %v3263 = vsub.f32 2.0, %v3247
        %v3264 = vsub.f32 2.0, %v3248
        %v3265 = vsub.f32 2.0, %v3249
        %v3266 = vsub.f32 2.0, %v3250
        %v3267 = vsub.f32 2.0, %v3251
        %v3268 = vsub.f32 2.0, %v3252
        %v3269 = vsub.f32 2.0, %v3253
        %v3270 = vsub.f32 2.0, %v3254
        %v3271 = vsub.f32 2.0, %v3255
        %v3272 = vsub.f32 2.0, %v3256
        %v3273 = vsub.f32 2.0, %v3257
        %v3274 = vsub.f32 2.0, %v3258
        %v3275 = vsub.f32 2.0, %v3259
        %v3276 = vsub.f32 2.0, %v3260
        %v3277 = vsub.f32 2.0, %v3261
        %v3278 = vsub.f32 2.0, %v3262
        %v3279 = vmul.f32 %v3231, %v3263
        %v3280 = vmul.f32 %v3232, %v3264
        %v3281 = vmul.f32 %v3233, %v3265
        %v3282 = vmul.f32 %v3234, %v3266
        %v3283 = vmul.f32 %v3235, %v3267
        %v3284 = vmul.f32 %v3236, %v3268
        %v3285 = vmul.f32 %v3237, %v3269
        %v3286 = vmul.f32 %v3238, %v3270
        %v3287 = vmul.f32 %v3239, %v3271
        %v3288 = vmul.f32 %v3240, %v3272
        %v3289 = vmul.f32 %v3241, %v3273
        %v3290 = vmul.f32 %v3242, %v3274
        %v3291 = vmul.f32 %v3243, %v3275
        %v3292 = vmul.f32 %v3244, %v3276
        %v3293 = vmul.f32 %v3245, %v3277
        %v3294 = vmul.f32 %v3246, %v3278
        %vm3295 = vcmp.ge.f32.partialorder %v2975, 0.0
        %vm3296 = vcmp.ge.f32.partialorder %v2976, 0.0
        %vm3297 = vcmp.ge.f32.partialorder %v2977, 0.0
        %vm3298 = vcmp.ge.f32.partialorder %v2978, 0.0
        %vm3299 = vcmp.ge.f32.partialorder %v2979, 0.0
        %vm3300 = vcmp.ge.f32.partialorder %v2980, 0.0
        %vm3301 = vcmp.ge.f32.partialorder %v2981, 0.0
        %vm3302 = vcmp.ge.f32.partialorder %v2982, 0.0
        %vm3303 = vcmp.ge.f32.partialorder %v2983, 0.0
        %vm3304 = vcmp.ge.f32.partialorder %v2984, 0.0
        %vm3305 = vcmp.ge.f32.partialorder %v2985, 0.0
        %vm3306 = vcmp.ge.f32.partialorder %v2986, 0.0
        %vm3307 = vcmp.ge.f32.partialorder %v2987, 0.0
        %vm3308 = vcmp.ge.f32.partialorder %v2988, 0.0
        %vm3309 = vcmp.ge.f32.partialorder %v2989, 0.0
        %vm3310 = vcmp.ge.f32.partialorder %v2990, 0.0
        %v3311 = vmul.f32 %v3024, %v3279
        %v3312 = vmul.f32 %v3026, %v3280
        %v3313 = vmul.f32 %v3028, %v3281
        %v3314 = vmul.f32 %v3030, %v3282
        %v3315 = vmul.f32 %v3032, %v3283
        %v3316 = vmul.f32 %v3034, %v3284
        %v3317 = vmul.f32 %v3036, %v3285
        %v3318 = vmul.f32 %v3038, %v3286
        %v3319 = vmul.f32 %v3040, %v3287
        %v3320 = vmul.f32 %v3042, %v3288
        %v3321 = vmul.f32 %v3044, %v3289
        %v3322 = vmul.f32 %v3046, %v3290
        %v3323 = vmul.f32 %v3048, %v3291
        %v3324 = vmul.f32 %v3050, %v3292
        %v3325 = vmul.f32 %v3052, %v3293
        %v3326 = vmul.f32 %v3054, %v3294
        %v3327 = vsel %vm3295, %v3279, %v3311
        %v3328 = vsel %vm3296, %v3280, %v3312
        %v3329 = vsel %vm3297, %v3281, %v3313
        %v3330 = vsel %vm3298, %v3282, %v3314
        %v3331 = vsel %vm3299, %v3283, %v3315
        %v3332 = vsel %vm3300, %v3284, %v3316
        %v3333 = vsel %vm3301, %v3285, %v3317
        %v3334 = vsel %vm3302, %v3286, %v3318
        %v3335 = vsel %vm3303, %v3287, %v3319
        %v3336 = vsel %vm3304, %v3288, %v3320
        %v3337 = vsel %vm3305, %v3289, %v3321
        %v3338 = vsel %vm3306, %v3290, %v3322
        %v3339 = vsel %vm3307, %v3291, %v3323
        %v3340 = vsel %vm3308, %v3292, %v3324
        %v3341 = vsel %vm3309, %v3293, %v3325
        %v3342 = vsel %vm3310, %v3294, %v3326
        %v3343 = vmul.f32 %v3327, %v1190
        %v3344 = vmul.f32 %v3328, %v1191
        %v3345 = vmul.f32 %v3329, %v1192
        %v3346 = vmul.f32 %v3330, %v1193
        %v3347 = vmul.f32 %v3331, %v1194
        %v3348 = vmul.f32 %v3332, %v1195
        %v3349 = vmul.f32 %v3333, %v1196
        %v3350 = vmul.f32 %v3334, %v1197
        %v3351 = vmul.f32 %v3335, %v1198
        %v3352 = vmul.f32 %v3336, %v1199
        %v3353 = vmul.f32 %v3337, %v1200
        %v3354 = vmul.f32 %v3338, %v1201
        %v3355 = vmul.f32 %v3339, %v1202
        %v3356 = vmul.f32 %v3340, %v1203
        %v3357 = vmul.f32 %v3341, %v1204
        %v3358 = vmul.f32 %v3342, %v1205
        %v3359 = vsel %vm845, %v3343, 0.0
        %v3360 = vsel %vm845, %v3344, 0.0
        %v3361 = vadd.f32 %v3359, %v3360
        %v3362 = vsel %vm845, %v3345, 0.0
        %v3363 = vadd.f32 %v3361, %v3362
        %v3364 = vsel %vm845, %v3346, 0.0
        %v3365 = vadd.f32 %v3363, %v3364
        %v3366 = vrot.slane %v3365, 4
        %v3367 = vadd.f32 %v3365, %v3366
        %v3368 = vrot.slane %v3367, 2
        %v3369 = vadd.f32 %v3367, %v3368
        %v3370 = vrot.slane %v3369, 1
        %v3371 = vadd.f32 %v3369, %v3370
        %v3372 = vsel %vm845, %v3347, 0.0
        %v3373 = vsel %vm845, %v3348, 0.0
        %v3374 = vadd.f32 %v3372, %v3373
        %v3375 = vsel %vm845, %v3349, 0.0
        %v3376 = vadd.f32 %v3374, %v3375
        %v3377 = vsel %vm845, %v3350, 0.0
        %v3378 = vadd.f32 %v3376, %v3377
        %v3379 = vrot.slane %v3378, 4
        %v3380 = vadd.f32 %v3378, %v3379
        %v3381 = vrot.slane %v3380, 2
        %v3382 = vadd.f32 %v3380, %v3381
        %v3383 = vrot.slane %v3382, 1
        %v3384 = vadd.f32 %v3382, %v3383
        %v3385 = vsel %vm845, %v3351, 0.0
        %v3386 = vsel %vm845, %v3352, 0.0
        %v3387 = vadd.f32 %v3385, %v3386
        %v3388 = vsel %vm845, %v3353, 0.0
        %v3389 = vadd.f32 %v3387, %v3388
        %v3390 = vsel %vm845, %v3354, 0.0
        %v3391 = vadd.f32 %v3389, %v3390
        %v3392 = vrot.slane %v3391, 4
        %v3393 = vadd.f32 %v3391, %v3392
        %v3394 = vrot.slane %v3393, 2
        %v3395 = vadd.f32 %v3393, %v3394
        %v3396 = vrot.slane %v3395, 1
        %v3397 = vadd.f32 %v3395, %v3396
        %v3398 = vsel %vm845, %v3355, 0.0
        %v3399 = vsel %vm845, %v3356, 0.0
        %v3400 = vadd.f32 %v3398, %v3399
        %v3401 = vsel %vm845, %v3357, 0.0
        %v3402 = vadd.f32 %v3400, %v3401
        %v3403 = vsel %vm845, %v3358, 0.0
        %v3404 = vadd.f32 %v3402, %v3403
        %v3405 = vrot.slane %v3404, 4
        %v3406 = vadd.f32 %v3404, %v3405
        %v3407 = vrot.slane %v3406, 2
        %v3408 = vadd.f32 %v3406, %v3407
        %v3409 = vrot.slane %v3408, 1
        %v3410 = vadd.f32 %v3408, %v3409
        %v3415 = vsel %vm1262, %v3384, %v3371
        %v3416 = vsel %vm1264, %v3397, %v3415
        %v3417 = vsel %vm1266, %v3410, %v3416
        %v3419 = vsel %vm1269, %v3417, 0.0
        %3420 = vadd.xlane.f32.xlu0 %v3419
        %v3421 = vpop.xlane.xlu0 %3420
        %v3422 = vmul.f32 %v3327, %v1174
        %v3423 = vmul.f32 %v3328, %v1175
        %v3424 = vmul.f32 %v3329, %v1176
        %v3425 = vmul.f32 %v3330, %v1177
        %v3426 = vmul.f32 %v3331, %v1178
        %v3427 = vmul.f32 %v3332, %v1179
        %v3428 = vmul.f32 %v3333, %v1180
        %v3429 = vmul.f32 %v3334, %v1181
        %v3430 = vmul.f32 %v3335, %v1182
        %v3431 = vmul.f32 %v3336, %v1183
        %v3432 = vmul.f32 %v3337, %v1184
        %v3433 = vmul.f32 %v3338, %v1185
        %v3434 = vmul.f32 %v3339, %v1186
        %v3435 = vmul.f32 %v3340, %v1187
        %v3436 = vmul.f32 %v3341, %v1188
        %v3437 = vmul.f32 %v3342, %v1189
        %v3438 = vsel %vm845, %v3422, 0.0
        %v3439 = vsel %vm845, %v3423, 0.0
        %v3440 = vadd.f32 %v3438, %v3439
        %v3441 = vsel %vm845, %v3424, 0.0
        %v3442 = vadd.f32 %v3440, %v3441
        %v3443 = vsel %vm845, %v3425, 0.0
        %v3444 = vadd.f32 %v3442, %v3443
        %v3445 = vrot.slane %v3444, 4
        %v3446 = vadd.f32 %v3444, %v3445
        %v3447 = vrot.slane %v3446, 2
        %v3448 = vadd.f32 %v3446, %v3447
        %v3449 = vrot.slane %v3448, 1
        %v3450 = vadd.f32 %v3448, %v3449
        %v3451 = vsel %vm845, %v3426, 0.0
        %v3452 = vsel %vm845, %v3427, 0.0
        %v3453 = vadd.f32 %v3451, %v3452
        %v3454 = vsel %vm845, %v3428, 0.0
        %v3455 = vadd.f32 %v3453, %v3454
        %v3456 = vsel %vm845, %v3429, 0.0
        %v3457 = vadd.f32 %v3455, %v3456
        %v3458 = vrot.slane %v3457, 4
        %v3459 = vadd.f32 %v3457, %v3458
        %v3460 = vrot.slane %v3459, 2
        %v3461 = vadd.f32 %v3459, %v3460
        %v3462 = vrot.slane %v3461, 1
        %v3463 = vadd.f32 %v3461, %v3462
        %v3464 = vsel %vm845, %v3430, 0.0
        %v3465 = vsel %vm845, %v3431, 0.0
        %v3466 = vadd.f32 %v3464, %v3465
        %v3467 = vsel %vm845, %v3432, 0.0
        %v3468 = vadd.f32 %v3466, %v3467
        %v3469 = vsel %vm845, %v3433, 0.0
        %v3470 = vadd.f32 %v3468, %v3469
        %v3471 = vrot.slane %v3470, 4
        %v3472 = vadd.f32 %v3470, %v3471
        %v3473 = vrot.slane %v3472, 2
        %v3474 = vadd.f32 %v3472, %v3473
        %v3475 = vrot.slane %v3474, 1
        %v3476 = vadd.f32 %v3474, %v3475
        %v3477 = vsel %vm845, %v3434, 0.0
        %v3478 = vsel %vm845, %v3435, 0.0
        %v3479 = vadd.f32 %v3477, %v3478
        %v3480 = vsel %vm845, %v3436, 0.0
        %v3481 = vadd.f32 %v3479, %v3480
        %v3482 = vsel %vm845, %v3437, 0.0
        %v3483 = vadd.f32 %v3481, %v3482
        %v3484 = vrot.slane %v3483, 4
        %v3485 = vadd.f32 %v3483, %v3484
        %v3486 = vrot.slane %v3485, 2
        %v3487 = vadd.f32 %v3485, %v3486
        %v3488 = vrot.slane %v3487, 1
        %v3489 = vadd.f32 %v3487, %v3488
        %v3494 = vsel %vm1262, %v3463, %v3450
        %v3495 = vsel %vm1264, %v3476, %v3494
        %v3496 = vsel %vm1266, %v3489, %v3495
        %v3498 = vsel %vm1269, %v3496, 0.0
        %3499 = vadd.xlane.f32.xlu0 %v3498
        %v3500 = vpop.xlane.xlu0 %3499
        %v3501 = vadd.f32 %v3500, %v1272
        %v3502 = vadd.f32 %v3421, 1.0
        %v3503 = vsub.f32 %v3501, %v3421
        %v3504 = vadd.f32 %v3503, 1.0
        %v3505 = vrcp.pop %v3504
        %v3506 = vmul.f32 %v3504, %v3505
        %v3507 = vsub.f32 1.0, %v3506
        %v3508 = vmul.f32 %v3505, %v3507
        %v3509 = vadd.f32 %v3505, %v3508
        %vm3510 = vweird.f32 %v3504
        %vm3511 = vweird.f32 %v3505
        %vm3512 = vmor %vm3510, %vm3511
        %v3513 = vsel %vm3512, %v3505, %v3509
        %v3514 = vand.u32 2147483647, %v3504
        %vm3515 = vcmp.eq.f32.partialorder %v3514, 8.507059e+37
        %v3516 = vand.u32 %v3504, 2147483648
        %v3517 = vor.u32 1.1754944e-38, %v3516
        %v3518 = vsel %vm3515, %v3517, %v3513
        %v3519 = vmul.f32 %v3502, %v3518
        %v3520 = vsub.f32 1.0, %v3519
        %v3521 = vld [vmem:[%s634] sm:$0xf]
        %v3522 = vld [vmem:[%s634 + $0x4] sm:$0xf]
        %v3523 = vld [vmem:[%s634 + $0x8] sm:$0xf]
        %v3524 = vld [vmem:[%s634 + $0xc] sm:$0xf]
        %v3525 = vld [vmem:[%s634 + $0x10] sm:$0xf]
        %v3526 = vld [vmem:[%s634 + $0x14] sm:$0xf]
        %v3527 = vld [vmem:[%s634 + $0x18] sm:$0xf]
        %v3528 = vld [vmem:[%s634 + $0x1c] sm:$0xf]
        %v3529 = vld [vmem:[%s634 + $0x20] sm:$0xf]
        %v3530 = vld [vmem:[%s634 + $0x24] sm:$0xf]
        %v3531 = vld [vmem:[%s634 + $0x28] sm:$0xf]
        %v3532 = vld [vmem:[%s634 + $0x2c] sm:$0xf]
        %v3533 = vld [vmem:[%s634 + $0x30] sm:$0xf]
        %v3534 = vld [vmem:[%s634 + $0x34] sm:$0xf]
        %v3535 = vld [vmem:[%s634 + $0x38] sm:$0xf]
        %v3536 = vld [vmem:[%s634 + $0x3c] sm:$0xf]
        %v3537 = vunpack.c.l.bf16 %v3521
        %v3538 = vunpack.c.l.bf16 %v3522
        %v3539 = vunpack.c.l.bf16 %v3523
        %v3540 = vunpack.c.l.bf16 %v3524
        %v3541 = vunpack.c.l.bf16 %v3525
        %v3542 = vunpack.c.l.bf16 %v3526
        %v3543 = vunpack.c.l.bf16 %v3527
        %v3544 = vunpack.c.l.bf16 %v3528
        %v3545 = vunpack.c.l.bf16 %v3529
        %v3546 = vunpack.c.l.bf16 %v3530
        %v3547 = vunpack.c.l.bf16 %v3531
        %v3548 = vunpack.c.l.bf16 %v3532
        %v3549 = vunpack.c.l.bf16 %v3533
        %v3550 = vunpack.c.l.bf16 %v3534
        %v3551 = vunpack.c.l.bf16 %v3535
        %v3552 = vunpack.c.l.bf16 %v3536
        %v3553 = vand.u32 2147483647, %v3537
        %v3554 = vand.u32 2147483647, %v3538
        %v3555 = vand.u32 2147483647, %v3539
        %v3556 = vand.u32 2147483647, %v3540
        %v3557 = vand.u32 2147483647, %v3541
        %v3558 = vand.u32 2147483647, %v3542
        %v3559 = vand.u32 2147483647, %v3543
        %v3560 = vand.u32 2147483647, %v3544
        %v3561 = vand.u32 2147483647, %v3545
        %v3562 = vand.u32 2147483647, %v3546
        %v3563 = vand.u32 2147483647, %v3547
        %v3564 = vand.u32 2147483647, %v3548
        %v3565 = vand.u32 2147483647, %v3549
        %v3566 = vand.u32 2147483647, %v3550
        %v3567 = vand.u32 2147483647, %v3551
        %v3568 = vand.u32 2147483647, %v3552
        %v3569 = vsub.f32 0.0, %v3553
        %v3570 = vsub.f32 0.0, %v3554
        %v3571 = vsub.f32 0.0, %v3555
        %v3572 = vsub.f32 0.0, %v3556
        %v3573 = vsub.f32 0.0, %v3557
        %v3574 = vsub.f32 0.0, %v3558
        %v3575 = vsub.f32 0.0, %v3559
        %v3576 = vsub.f32 0.0, %v3560
        %v3577 = vsub.f32 0.0, %v3561
        %v3578 = vsub.f32 0.0, %v3562
        %v3579 = vsub.f32 0.0, %v3563
        %v3580 = vsub.f32 0.0, %v3564
        %v3581 = vsub.f32 0.0, %v3565
        %v3582 = vsub.f32 0.0, %v3566
        %v3583 = vsub.f32 0.0, %v3567
        %v3584 = vsub.f32 0.0, %v3568
        %v3585 = vmul.f32 %v3569, 1.442695
        %v3586 = vpow.pop %v3585
        %v3587 = vmul.f32 %v3570, 1.442695
        %v3588 = vpow.pop %v3587
        %v3589 = vmul.f32 %v3571, 1.442695
        %v3590 = vpow.pop %v3589
        %v3591 = vmul.f32 %v3572, 1.442695
        %v3592 = vpow.pop %v3591
        %v3593 = vmul.f32 %v3573, 1.442695
        %v3594 = vpow.pop %v3593
        %v3595 = vmul.f32 %v3574, 1.442695
        %v3596 = vpow.pop %v3595
        %v3597 = vmul.f32 %v3575, 1.442695
        %v3598 = vpow.pop %v3597
        %v3599 = vmul.f32 %v3576, 1.442695
        %v3600 = vpow.pop %v3599
        %v3601 = vmul.f32 %v3577, 1.442695
        %v3602 = vpow.pop %v3601
        %v3603 = vmul.f32 %v3578, 1.442695
        %v3604 = vpow.pop %v3603
        %v3605 = vmul.f32 %v3579, 1.442695
        %v3606 = vpow.pop %v3605
        %v3607 = vmul.f32 %v3580, 1.442695
        %v3608 = vpow.pop %v3607
        %v3609 = vmul.f32 %v3581, 1.442695
        %v3610 = vpow.pop %v3609
        %v3611 = vmul.f32 %v3582, 1.442695
        %v3612 = vpow.pop %v3611
        %v3613 = vmul.f32 %v3583, 1.442695
        %v3614 = vpow.pop %v3613
        %v3615 = vmul.f32 %v3584, 1.442695
        %v3616 = vpow.pop %v3615
        %v3617 = vadd.f32 %v3586, 1.0
        %v3618 = vadd.f32 %v3588, 1.0
        %v3619 = vadd.f32 %v3590, 1.0
        %v3620 = vadd.f32 %v3592, 1.0
        %v3621 = vadd.f32 %v3594, 1.0
        %v3622 = vadd.f32 %v3596, 1.0
        %v3623 = vadd.f32 %v3598, 1.0
        %v3624 = vadd.f32 %v3600, 1.0
        %v3625 = vadd.f32 %v3602, 1.0
        %v3626 = vadd.f32 %v3604, 1.0
        %v3627 = vadd.f32 %v3606, 1.0
        %v3628 = vadd.f32 %v3608, 1.0
        %v3629 = vadd.f32 %v3610, 1.0
        %v3630 = vadd.f32 %v3612, 1.0
        %v3631 = vadd.f32 %v3614, 1.0
        %v3632 = vadd.f32 %v3616, 1.0
        %v3633 = vmax.f32 %v3537, 0.0
        %v3634 = vmax.f32 %v3538, 0.0
        %v3635 = vmax.f32 %v3539, 0.0
        %v3636 = vmax.f32 %v3540, 0.0
        %v3637 = vmax.f32 %v3541, 0.0
        %v3638 = vmax.f32 %v3542, 0.0
        %v3639 = vmax.f32 %v3543, 0.0
        %v3640 = vmax.f32 %v3544, 0.0
        %v3641 = vmax.f32 %v3545, 0.0
        %v3642 = vmax.f32 %v3546, 0.0
        %v3643 = vmax.f32 %v3547, 0.0
        %v3644 = vmax.f32 %v3548, 0.0
        %v3645 = vmax.f32 %v3549, 0.0
        %v3646 = vmax.f32 %v3550, 0.0
        %v3647 = vmax.f32 %v3551, 0.0
        %v3648 = vmax.f32 %v3552, 0.0
        %v3649 = vmul.f32 %v3537, %v769
        %v3650 = vmul.f32 %v3538, %v770
        %v3651 = vmul.f32 %v3539, %v771
        %v3652 = vmul.f32 %v3540, %v772
        %v3653 = vmul.f32 %v3541, %v773
        %v3654 = vmul.f32 %v3542, %v774
        %v3655 = vmul.f32 %v3543, %v775
        %v3656 = vmul.f32 %v3544, %v776
        %v3657 = vmul.f32 %v3545, %v777
        %v3658 = vmul.f32 %v3546, %v778
        %v3659 = vmul.f32 %v3547, %v779
        %v3660 = vmul.f32 %v3548, %v780
        %v3661 = vmul.f32 %v3549, %v781
        %v3662 = vmul.f32 %v3550, %v782
        %v3663 = vmul.f32 %v3551, %v783
        %v3664 = vmul.f32 %v3552, %v784
        %v3665 = vsub.f32 %v3633, %v3649
        %v3666 = vsub.f32 %v3634, %v3650
        %v3667 = vsub.f32 %v3635, %v3651
        %v3668 = vsub.f32 %v3636, %v3652
        %v3669 = vsub.f32 %v3637, %v3653
        %v3670 = vsub.f32 %v3638, %v3654
        %v3671 = vsub.f32 %v3639, %v3655
        %v3672 = vsub.f32 %v3640, %v3656
        %v3673 = vsub.f32 %v3641, %v3657
        %v3674 = vsub.f32 %v3642, %v3658
        %v3675 = vsub.f32 %v3643, %v3659
        %v3676 = vsub.f32 %v3644, %v3660
        %v3677 = vsub.f32 %v3645, %v3661
        %v3678 = vsub.f32 %v3646, %v3662
        %v3679 = vsub.f32 %v3647, %v3663
        %v3680 = vsub.f32 %v3648, %v3664
        %v3681 = vlog2.pop %v3617
        %v3682 = vmul.f32 %v3681, 0.6931472
        %v3683 = vlog2.pop %v3618
        %v3684 = vmul.f32 %v3683, 0.6931472
        %v3685 = vlog2.pop %v3619
        %v3686 = vmul.f32 %v3685, 0.6931472
        %v3687 = vlog2.pop %v3620
        %v3688 = vmul.f32 %v3687, 0.6931472
        %v3689 = vlog2.pop %v3621
        %v3690 = vmul.f32 %v3689, 0.6931472
        %v3691 = vlog2.pop %v3622
        %v3692 = vmul.f32 %v3691, 0.6931472
        %v3693 = vlog2.pop %v3623
        %v3694 = vmul.f32 %v3693, 0.6931472
        %v3695 = vlog2.pop %v3624
        %v3696 = vmul.f32 %v3695, 0.6931472
        %v3697 = vlog2.pop %v3625
        %v3698 = vmul.f32 %v3697, 0.6931472
        %v3699 = vlog2.pop %v3626
        %v3700 = vmul.f32 %v3699, 0.6931472
        %v3701 = vlog2.pop %v3627
        %v3702 = vmul.f32 %v3701, 0.6931472
        %v3703 = vlog2.pop %v3628
        %v3704 = vmul.f32 %v3703, 0.6931472
        %v3705 = vlog2.pop %v3629
        %v3706 = vmul.f32 %v3705, 0.6931472
        %v3707 = vlog2.pop %v3630
        %v3708 = vmul.f32 %v3707, 0.6931472
        %v3709 = vlog2.pop %v3631
        %v3710 = vmul.f32 %v3709, 0.6931472
        %v3711 = vlog2.pop %v3632
        %v3712 = vmul.f32 %v3711, 0.6931472
        %v3713 = vadd.f32 %v3665, %v3682
        %v3714 = vadd.f32 %v3666, %v3684
        %v3715 = vadd.f32 %v3667, %v3686
        %v3716 = vadd.f32 %v3668, %v3688
        %v3717 = vadd.f32 %v3669, %v3690
        %v3718 = vadd.f32 %v3670, %v3692
        %v3719 = vadd.f32 %v3671, %v3694
        %v3720 = vadd.f32 %v3672, %v3696
        %v3721 = vadd.f32 %v3673, %v3698
        %v3722 = vadd.f32 %v3674, %v3700
        %v3723 = vadd.f32 %v3675, %v3702
        %v3724 = vadd.f32 %v3676, %v3704
        %v3725 = vadd.f32 %v3677, %v3706
        %v3726 = vadd.f32 %v3678, %v3708
        %v3727 = vadd.f32 %v3679, %v3710
        %v3728 = vadd.f32 %v3680, %v3712
        %v3729 = vsel %vm845, %v3713, 0.0
        %v3730 = vsel %vm845, %v3714, 0.0
        %v3731 = vadd.f32 %v3729, %v3730
        %v3732 = vsel %vm845, %v3715, 0.0
        %v3733 = vadd.f32 %v3731, %v3732
        %v3734 = vsel %vm845, %v3716, 0.0
        %v3735 = vadd.f32 %v3733, %v3734
        %v3736 = vrot.slane %v3735, 4
        %v3737 = vadd.f32 %v3735, %v3736
        %v3738 = vrot.slane %v3737, 2
        %v3739 = vadd.f32 %v3737, %v3738
        %v3740 = vrot.slane %v3739, 1
        %v3741 = vadd.f32 %v3739, %v3740
        %v3742 = vsel %vm845, %v3717, 0.0
        %v3743 = vsel %vm845, %v3718, 0.0
        %v3744 = vadd.f32 %v3742, %v3743
        %v3745 = vsel %vm845, %v3719, 0.0
        %v3746 = vadd.f32 %v3744, %v3745
        %v3747 = vsel %vm845, %v3720, 0.0
        %v3748 = vadd.f32 %v3746, %v3747
        %v3749 = vrot.slane %v3748, 4
        %v3750 = vadd.f32 %v3748, %v3749
        %v3751 = vrot.slane %v3750, 2
        %v3752 = vadd.f32 %v3750, %v3751
        %v3753 = vrot.slane %v3752, 1
        %v3754 = vadd.f32 %v3752, %v3753
        %v3755 = vsel %vm845, %v3721, 0.0
        %v3756 = vsel %vm845, %v3722, 0.0
        %v3757 = vadd.f32 %v3755, %v3756
        %v3758 = vsel %vm845, %v3723, 0.0
        %v3759 = vadd.f32 %v3757, %v3758
        %v3760 = vsel %vm845, %v3724, 0.0
        %v3761 = vadd.f32 %v3759, %v3760
        %v3762 = vrot.slane %v3761, 4
        %v3763 = vadd.f32 %v3761, %v3762
        %v3764 = vrot.slane %v3763, 2
        %v3765 = vadd.f32 %v3763, %v3764
        %v3766 = vrot.slane %v3765, 1
        %v3767 = vadd.f32 %v3765, %v3766
        %v3768 = vsel %vm845, %v3725, 0.0
        %v3769 = vsel %vm845, %v3726, 0.0
        %v3770 = vadd.f32 %v3768, %v3769
        %v3771 = vsel %vm845, %v3727, 0.0
        %v3772 = vadd.f32 %v3770, %v3771
        %v3773 = vsel %vm845, %v3728, 0.0
        %v3774 = vadd.f32 %v3772, %v3773
        %v3775 = vrot.slane %v3774, 4
        %v3776 = vadd.f32 %v3774, %v3775
        %v3777 = vrot.slane %v3776, 2
        %v3778 = vadd.f32 %v3776, %v3777
        %v3779 = vrot.slane %v3778, 1
        %v3780 = vadd.f32 %v3778, %v3779
        %v3785 = vsel %vm1262, %v3754, %v3741
        %v3786 = vsel %vm1264, %v3767, %v3785
        %v3787 = vsel %vm1266, %v3780, %v3786
        %v3789 = vsel %vm1269, %v3787, 0.0
        %3790 = vadd.xlane.f32.xlu0 %v3789
        %v3791 = vpop.xlane.xlu0 %3790
        %v3792 = vmul.f32 %v3791, 0.0009765625
        %v3793 = vrcp.pop %v3617
        %v3794 = vrcp.pop %v3618
        %v3795 = vrcp.pop %v3619
        %v3796 = vrcp.pop %v3620
        %v3797 = vrcp.pop %v3621
        %v3798 = vrcp.pop %v3622
        %v3799 = vrcp.pop %v3623
        %v3800 = vrcp.pop %v3624
        %v3801 = vrcp.pop %v3625
        %v3802 = vrcp.pop %v3626
        %v3803 = vrcp.pop %v3627
        %v3804 = vrcp.pop %v3628
        %v3805 = vrcp.pop %v3629
        %v3806 = vrcp.pop %v3630
        %v3807 = vrcp.pop %v3631
        %v3808 = vrcp.pop %v3632
        %v3809 = vmul.f32 %v3617, %v3793
        %v3810 = vmul.f32 %v3618, %v3794
        %v3811 = vmul.f32 %v3619, %v3795
        %v3812 = vmul.f32 %v3620, %v3796
        %v3813 = vmul.f32 %v3621, %v3797
        %v3814 = vmul.f32 %v3622, %v3798
        %v3815 = vmul.f32 %v3623, %v3799
        %v3816 = vmul.f32 %v3624, %v3800
        %v3817 = vmul.f32 %v3625, %v3801
        %v3818 = vmul.f32 %v3626, %v3802
        %v3819 = vmul.f32 %v3627, %v3803
        %v3820 = vmul.f32 %v3628, %v3804
        %v3821 = vmul.f32 %v3629, %v3805
        %v3822 = vmul.f32 %v3630, %v3806
        %v3823 = vmul.f32 %v3631, %v3807
        %v3824 = vmul.f32 %v3632, %v3808
        %v3825 = vsub.f32 2.0, %v3809
        %v3826 = vsub.f32 2.0, %v3810
        %v3827 = vsub.f32 2.0, %v3811
        %v3828 = vsub.f32 2.0, %v3812
        %v3829 = vsub.f32 2.0, %v3813
        %v3830 = vsub.f32 2.0, %v3814
        %v3831 = vsub.f32 2.0, %v3815
        %v3832 = vsub.f32 2.0, %v3816
        %v3833 = vsub.f32 2.0, %v3817
        %v3834 = vsub.f32 2.0, %v3818
        %v3835 = vsub.f32 2.0, %v3819
        %v3836 = vsub.f32 2.0, %v3820
        %v3837 = vsub.f32 2.0, %v3821
        %v3838 = vsub.f32 2.0, %v3822
        %v3839 = vsub.f32 2.0, %v3823
        %v3840 = vsub.f32 2.0, %v3824
        %v3841 = vmul.f32 %v3793, %v3825
        %v3842 = vmul.f32 %v3794, %v3826
        %v3843 = vmul.f32 %v3795, %v3827
        %v3844 = vmul.f32 %v3796, %v3828
        %v3845 = vmul.f32 %v3797, %v3829
        %v3846 = vmul.f32 %v3798, %v3830
        %v3847 = vmul.f32 %v3799, %v3831
        %v3848 = vmul.f32 %v3800, %v3832
        %v3849 = vmul.f32 %v3801, %v3833
        %v3850 = vmul.f32 %v3802, %v3834
        %v3851 = vmul.f32 %v3803, %v3835
        %v3852 = vmul.f32 %v3804, %v3836
        %v3853 = vmul.f32 %v3805, %v3837
        %v3854 = vmul.f32 %v3806, %v3838
        %v3855 = vmul.f32 %v3807, %v3839
        %v3856 = vmul.f32 %v3808, %v3840
        %vm3857 = vcmp.ge.f32.partialorder %v3537, 0.0
        %vm3858 = vcmp.ge.f32.partialorder %v3538, 0.0
        %vm3859 = vcmp.ge.f32.partialorder %v3539, 0.0
        %vm3860 = vcmp.ge.f32.partialorder %v3540, 0.0
        %vm3861 = vcmp.ge.f32.partialorder %v3541, 0.0
        %vm3862 = vcmp.ge.f32.partialorder %v3542, 0.0
        %vm3863 = vcmp.ge.f32.partialorder %v3543, 0.0
        %vm3864 = vcmp.ge.f32.partialorder %v3544, 0.0
        %vm3865 = vcmp.ge.f32.partialorder %v3545, 0.0
        %vm3866 = vcmp.ge.f32.partialorder %v3546, 0.0
        %vm3867 = vcmp.ge.f32.partialorder %v3547, 0.0
        %vm3868 = vcmp.ge.f32.partialorder %v3548, 0.0
        %vm3869 = vcmp.ge.f32.partialorder %v3549, 0.0
        %vm3870 = vcmp.ge.f32.partialorder %v3550, 0.0
        %vm3871 = vcmp.ge.f32.partialorder %v3551, 0.0
        %vm3872 = vcmp.ge.f32.partialorder %v3552, 0.0
        %v3873 = vmul.f32 %v3586, %v3841
        %v3874 = vmul.f32 %v3588, %v3842
        %v3875 = vmul.f32 %v3590, %v3843
        %v3876 = vmul.f32 %v3592, %v3844
        %v3877 = vmul.f32 %v3594, %v3845
        %v3878 = vmul.f32 %v3596, %v3846
        %v3879 = vmul.f32 %v3598, %v3847
        %v3880 = vmul.f32 %v3600, %v3848
        %v3881 = vmul.f32 %v3602, %v3849
        %v3882 = vmul.f32 %v3604, %v3850
        %v3883 = vmul.f32 %v3606, %v3851
        %v3884 = vmul.f32 %v3608, %v3852
        %v3885 = vmul.f32 %v3610, %v3853
        %v3886 = vmul.f32 %v3612, %v3854
        %v3887 = vmul.f32 %v3614, %v3855
        %v3888 = vmul.f32 %v3616, %v3856
        %v3889 = vsel %vm3857, %v3841, %v3873
        %v3890 = vsel %vm3858, %v3842, %v3874
        %v3891 = vsel %vm3859, %v3843, %v3875
        %v3892 = vsel %vm3860, %v3844, %v3876
        %v3893 = vsel %vm3861, %v3845, %v3877
        %v3894 = vsel %vm3862, %v3846, %v3878
        %v3895 = vsel %vm3863, %v3847, %v3879
        %v3896 = vsel %vm3864, %v3848, %v3880
        %v3897 = vsel %vm3865, %v3849, %v3881
        %v3898 = vsel %vm3866, %v3850, %v3882
        %v3899 = vsel %vm3867, %v3851, %v3883
        %v3900 = vsel %vm3868, %v3852, %v3884
        %v3901 = vsel %vm3869, %v3853, %v3885
        %v3902 = vsel %vm3870, %v3854, %v3886
        %v3903 = vsel %vm3871, %v3855, %v3887
        %v3904 = vsel %vm3872, %v3856, %v3888
        %v3905 = vmul.f32 %v3889, %v1190
        %v3906 = vmul.f32 %v3890, %v1191
        %v3907 = vmul.f32 %v3891, %v1192
        %v3908 = vmul.f32 %v3892, %v1193
        %v3909 = vmul.f32 %v3893, %v1194
        %v3910 = vmul.f32 %v3894, %v1195
        %v3911 = vmul.f32 %v3895, %v1196
        %v3912 = vmul.f32 %v3896, %v1197
        %v3913 = vmul.f32 %v3897, %v1198
        %v3914 = vmul.f32 %v3898, %v1199
        %v3915 = vmul.f32 %v3899, %v1200
        %v3916 = vmul.f32 %v3900, %v1201
        %v3917 = vmul.f32 %v3901, %v1202
        %v3918 = vmul.f32 %v3902, %v1203
        %v3919 = vmul.f32 %v3903, %v1204
        %v3920 = vmul.f32 %v3904, %v1205
        %v3921 = vsel %vm845, %v3905, 0.0
        %v3922 = vsel %vm845, %v3906, 0.0
        %v3923 = vadd.f32 %v3921, %v3922
        %v3924 = vsel %vm845, %v3907, 0.0
        %v3925 = vadd.f32 %v3923, %v3924
        %v3926 = vsel %vm845, %v3908, 0.0
        %v3927 = vadd.f32 %v3925, %v3926
        %v3928 = vrot.slane %v3927, 4
        %v3929 = vadd.f32 %v3927, %v3928
        %v3930 = vrot.slane %v3929, 2
        %v3931 = vadd.f32 %v3929, %v3930
        %v3932 = vrot.slane %v3931, 1
        %v3933 = vadd.f32 %v3931, %v3932
        %v3934 = vsel %vm845, %v3909, 0.0
        %v3935 = vsel %vm845, %v3910, 0.0
        %v3936 = vadd.f32 %v3934, %v3935
        %v3937 = vsel %vm845, %v3911, 0.0
        %v3938 = vadd.f32 %v3936, %v3937
        %v3939 = vsel %vm845, %v3912, 0.0
        %v3940 = vadd.f32 %v3938, %v3939
        %v3941 = vrot.slane %v3940, 4
        %v3942 = vadd.f32 %v3940, %v3941
        %v3943 = vrot.slane %v3942, 2
        %v3944 = vadd.f32 %v3942, %v3943
        %v3945 = vrot.slane %v3944, 1
        %v3946 = vadd.f32 %v3944, %v3945
        %v3947 = vsel %vm845, %v3913, 0.0
        %v3948 = vsel %vm845, %v3914, 0.0
        %v3949 = vadd.f32 %v3947, %v3948
        %v3950 = vsel %vm845, %v3915, 0.0
        %v3951 = vadd.f32 %v3949, %v3950
        %v3952 = vsel %vm845, %v3916, 0.0
        %v3953 = vadd.f32 %v3951, %v3952
        %v3954 = vrot.slane %v3953, 4
        %v3955 = vadd.f32 %v3953, %v3954
        %v3956 = vrot.slane %v3955, 2
        %v3957 = vadd.f32 %v3955, %v3956
        %v3958 = vrot.slane %v3957, 1
        %v3959 = vadd.f32 %v3957, %v3958
        %v3960 = vsel %vm845, %v3917, 0.0
        %v3961 = vsel %vm845, %v3918, 0.0
        %v3962 = vadd.f32 %v3960, %v3961
        %v3963 = vsel %vm845, %v3919, 0.0
        %v3964 = vadd.f32 %v3962, %v3963
        %v3965 = vsel %vm845, %v3920, 0.0
        %v3966 = vadd.f32 %v3964, %v3965
        %v3967 = vrot.slane %v3966, 4
        %v3968 = vadd.f32 %v3966, %v3967
        %v3969 = vrot.slane %v3968, 2
        %v3970 = vadd.f32 %v3968, %v3969
        %v3971 = vrot.slane %v3970, 1
        %v3972 = vadd.f32 %v3970, %v3971
        %v3977 = vsel %vm1262, %v3946, %v3933
        %v3978 = vsel %vm1264, %v3959, %v3977
        %v3979 = vsel %vm1266, %v3972, %v3978
        %v3981 = vsel %vm1269, %v3979, 0.0
        %3982 = vadd.xlane.f32.xlu0 %v3981
        %v3983 = vpop.xlane.xlu0 %3982
        %v3984 = vmul.f32 %v3889, %v1174
        %v3985 = vmul.f32 %v3890, %v1175
        %v3986 = vmul.f32 %v3891, %v1176
        %v3987 = vmul.f32 %v3892, %v1177
        %v3988 = vmul.f32 %v3893, %v1178
        %v3989 = vmul.f32 %v3894, %v1179
        %v3990 = vmul.f32 %v3895, %v1180
        %v3991 = vmul.f32 %v3896, %v1181
        %v3992 = vmul.f32 %v3897, %v1182
        %v3993 = vmul.f32 %v3898, %v1183
        %v3994 = vmul.f32 %v3899, %v1184
        %v3995 = vmul.f32 %v3900, %v1185
        %v3996 = vmul.f32 %v3901, %v1186
        %v3997 = vmul.f32 %v3902, %v1187
        %v3998 = vmul.f32 %v3903, %v1188
        %v3999 = vmul.f32 %v3904, %v1189
        %v4000 = vsel %vm845, %v3984, 0.0
        %v4001 = vsel %vm845, %v3985, 0.0
        %v4002 = vadd.f32 %v4000, %v4001
        %v4003 = vsel %vm845, %v3986, 0.0
        %v4004 = vadd.f32 %v4002, %v4003
        %v4005 = vsel %vm845, %v3987, 0.0
        %v4006 = vadd.f32 %v4004, %v4005
        %v4007 = vrot.slane %v4006, 4
        %v4008 = vadd.f32 %v4006, %v4007
        %v4009 = vrot.slane %v4008, 2
        %v4010 = vadd.f32 %v4008, %v4009
        %v4011 = vrot.slane %v4010, 1
        %v4012 = vadd.f32 %v4010, %v4011
        %v4013 = vsel %vm845, %v3988, 0.0
        %v4014 = vsel %vm845, %v3989, 0.0
        %v4015 = vadd.f32 %v4013, %v4014
        %v4016 = vsel %vm845, %v3990, 0.0
        %v4017 = vadd.f32 %v4015, %v4016
        %v4018 = vsel %vm845, %v3991, 0.0
        %v4019 = vadd.f32 %v4017, %v4018
        %v4020 = vrot.slane %v4019, 4
        %v4021 = vadd.f32 %v4019, %v4020
        %v4022 = vrot.slane %v4021, 2
        %v4023 = vadd.f32 %v4021, %v4022
        %v4024 = vrot.slane %v4023, 1
        %v4025 = vadd.f32 %v4023, %v4024
        %v4026 = vsel %vm845, %v3992, 0.0
        %v4027 = vsel %vm845, %v3993, 0.0
        %v4028 = vadd.f32 %v4026, %v4027
        %v4029 = vsel %vm845, %v3994, 0.0
        %v4030 = vadd.f32 %v4028, %v4029
        %v4031 = vsel %vm845, %v3995, 0.0
        %v4032 = vadd.f32 %v4030, %v4031
        %v4033 = vrot.slane %v4032, 4
        %v4034 = vadd.f32 %v4032, %v4033
        %v4035 = vrot.slane %v4034, 2
        %v4036 = vadd.f32 %v4034, %v4035
        %v4037 = vrot.slane %v4036, 1
        %v4038 = vadd.f32 %v4036, %v4037
        %v4039 = vsel %vm845, %v3996, 0.0
        %v4040 = vsel %vm845, %v3997, 0.0
        %v4041 = vadd.f32 %v4039, %v4040
        %v4042 = vsel %vm845, %v3998, 0.0
        %v4043 = vadd.f32 %v4041, %v4042
        %v4044 = vsel %vm845, %v3999, 0.0
        %v4045 = vadd.f32 %v4043, %v4044
        %v4046 = vrot.slane %v4045, 4
        %v4047 = vadd.f32 %v4045, %v4046
        %v4048 = vrot.slane %v4047, 2
        %v4049 = vadd.f32 %v4047, %v4048
        %v4050 = vrot.slane %v4049, 1
        %v4051 = vadd.f32 %v4049, %v4050
        %v4056 = vsel %vm1262, %v4025, %v4012
        %v4057 = vsel %vm1264, %v4038, %v4056
        %v4058 = vsel %vm1266, %v4051, %v4057
        %v4060 = vsel %vm1269, %v4058, 0.0
        %4061 = vadd.xlane.f32.xlu0 %v4060
        %v4062 = vpop.xlane.xlu0 %4061
        %v4063 = vadd.f32 %v4062, %v1272
        %v4064 = vadd.f32 %v3983, 1.0
        %v4065 = vsub.f32 %v4063, %v3983
        %v4066 = vadd.f32 %v4065, 1.0
        %v4067 = vrcp.pop %v4066
        %v4068 = vmul.f32 %v4066, %v4067
        %v4069 = vsub.f32 1.0, %v4068
        %v4070 = vmul.f32 %v4067, %v4069
        %v4071 = vadd.f32 %v4067, %v4070
        %vm4072 = vweird.f32 %v4066
        %vm4073 = vweird.f32 %v4067
        %vm4074 = vmor %vm4072, %vm4073
        %v4075 = vsel %vm4074, %v4067, %v4071
        %v4076 = vand.u32 2147483647, %v4066
        %vm4077 = vcmp.eq.f32.partialorder %v4076, 8.507059e+37
        %v4078 = vand.u32 %v4066, 2147483648
        %v4079 = vor.u32 1.1754944e-38, %v4078
        %v4080 = vsel %vm4077, %v4079, %v4075
        %v4081 = vmul.f32 %v4064, %v4080
        %v4082 = vsub.f32 1.0, %v4081
        %v4083 = vld [vmem:[%s644] sm:$0xf]
        %v4084 = vld [vmem:[%s644 + $0x4] sm:$0xf]
        %v4085 = vld [vmem:[%s644 + $0x8] sm:$0xf]
        %v4086 = vld [vmem:[%s644 + $0xc] sm:$0xf]
        %v4087 = vld [vmem:[%s644 + $0x10] sm:$0xf]
        %v4088 = vld [vmem:[%s644 + $0x14] sm:$0xf]
        %v4089 = vld [vmem:[%s644 + $0x18] sm:$0xf]
        %v4090 = vld [vmem:[%s644 + $0x1c] sm:$0xf]
        %v4091 = vld [vmem:[%s644 + $0x20] sm:$0xf]
        %v4092 = vld [vmem:[%s644 + $0x24] sm:$0xf]
        %v4093 = vld [vmem:[%s644 + $0x28] sm:$0xf]
        %v4094 = vld [vmem:[%s644 + $0x2c] sm:$0xf]
        %v4095 = vld [vmem:[%s644 + $0x30] sm:$0xf]
        %v4096 = vld [vmem:[%s644 + $0x34] sm:$0xf]
        %v4097 = vld [vmem:[%s644 + $0x38] sm:$0xf]
        %v4098 = vld [vmem:[%s644 + $0x3c] sm:$0xf]
        %v4099 = vunpack.c.l.bf16 %v4083
        %v4100 = vunpack.c.l.bf16 %v4084
        %v4101 = vunpack.c.l.bf16 %v4085
        %v4102 = vunpack.c.l.bf16 %v4086
        %v4103 = vunpack.c.l.bf16 %v4087
        %v4104 = vunpack.c.l.bf16 %v4088
        %v4105 = vunpack.c.l.bf16 %v4089
        %v4106 = vunpack.c.l.bf16 %v4090
        %v4107 = vunpack.c.l.bf16 %v4091
        %v4108 = vunpack.c.l.bf16 %v4092
        %v4109 = vunpack.c.l.bf16 %v4093
        %v4110 = vunpack.c.l.bf16 %v4094
        %v4111 = vunpack.c.l.bf16 %v4095
        %v4112 = vunpack.c.l.bf16 %v4096
        %v4113 = vunpack.c.l.bf16 %v4097
        %v4114 = vunpack.c.l.bf16 %v4098
        %v4115 = vand.u32 2147483647, %v4099
        %v4116 = vand.u32 2147483647, %v4100
        %v4117 = vand.u32 2147483647, %v4101
        %v4118 = vand.u32 2147483647, %v4102
        %v4119 = vand.u32 2147483647, %v4103
        %v4120 = vand.u32 2147483647, %v4104
        %v4121 = vand.u32 2147483647, %v4105
        %v4122 = vand.u32 2147483647, %v4106
        %v4123 = vand.u32 2147483647, %v4107
        %v4124 = vand.u32 2147483647, %v4108
        %v4125 = vand.u32 2147483647, %v4109
        %v4126 = vand.u32 2147483647, %v4110
        %v4127 = vand.u32 2147483647, %v4111
        %v4128 = vand.u32 2147483647, %v4112
        %v4129 = vand.u32 2147483647, %v4113
        %v4130 = vand.u32 2147483647, %v4114
        %v4131 = vsub.f32 0.0, %v4115
        %v4132 = vsub.f32 0.0, %v4116
        %v4133 = vsub.f32 0.0, %v4117
        %v4134 = vsub.f32 0.0, %v4118
        %v4135 = vsub.f32 0.0, %v4119
        %v4136 = vsub.f32 0.0, %v4120
        %v4137 = vsub.f32 0.0, %v4121
        %v4138 = vsub.f32 0.0, %v4122
        %v4139 = vsub.f32 0.0, %v4123
        %v4140 = vsub.f32 0.0, %v4124
        %v4141 = vsub.f32 0.0, %v4125
        %v4142 = vsub.f32 0.0, %v4126
        %v4143 = vsub.f32 0.0, %v4127
        %v4144 = vsub.f32 0.0, %v4128
        %v4145 = vsub.f32 0.0, %v4129
        %v4146 = vsub.f32 0.0, %v4130
        %v4147 = vmul.f32 %v4131, 1.442695
        %v4148 = vpow.pop %v4147
        %v4149 = vmul.f32 %v4132, 1.442695
        %v4150 = vpow.pop %v4149
        %v4151 = vmul.f32 %v4133, 1.442695
        %v4152 = vpow.pop %v4151
        %v4153 = vmul.f32 %v4134, 1.442695
        %v4154 = vpow.pop %v4153
        %v4155 = vmul.f32 %v4135, 1.442695
        %v4156 = vpow.pop %v4155
        %v4157 = vmul.f32 %v4136, 1.442695
        %v4158 = vpow.pop %v4157
        %v4159 = vmul.f32 %v4137, 1.442695
        %v4160 = vpow.pop %v4159
        %v4161 = vmul.f32 %v4138, 1.442695
        %v4162 = vpow.pop %v4161
        %v4163 = vmul.f32 %v4139, 1.442695
        %v4164 = vpow.pop %v4163
        %v4165 = vmul.f32 %v4140, 1.442695
        %v4166 = vpow.pop %v4165
        %v4167 = vmul.f32 %v4141, 1.442695
        %v4168 = vpow.pop %v4167
        %v4169 = vmul.f32 %v4142, 1.442695
        %v4170 = vpow.pop %v4169
        %v4171 = vmul.f32 %v4143, 1.442695
        %v4172 = vpow.pop %v4171
        %v4173 = vmul.f32 %v4144, 1.442695
        %v4174 = vpow.pop %v4173
        %v4175 = vmul.f32 %v4145, 1.442695
        %v4176 = vpow.pop %v4175
        %v4177 = vmul.f32 %v4146, 1.442695
        %v4178 = vpow.pop %v4177
        %v4179 = vadd.f32 %v4148, 1.0
        %v4180 = vadd.f32 %v4150, 1.0
        %v4181 = vadd.f32 %v4152, 1.0
        %v4182 = vadd.f32 %v4154, 1.0
        %v4183 = vadd.f32 %v4156, 1.0
        %v4184 = vadd.f32 %v4158, 1.0
        %v4185 = vadd.f32 %v4160, 1.0
        %v4186 = vadd.f32 %v4162, 1.0
        %v4187 = vadd.f32 %v4164, 1.0
        %v4188 = vadd.f32 %v4166, 1.0
        %v4189 = vadd.f32 %v4168, 1.0
        %v4190 = vadd.f32 %v4170, 1.0
        %v4191 = vadd.f32 %v4172, 1.0
        %v4192 = vadd.f32 %v4174, 1.0
        %v4193 = vadd.f32 %v4176, 1.0
        %v4194 = vadd.f32 %v4178, 1.0
        %v4195 = vmax.f32 %v4099, 0.0
        %v4196 = vmax.f32 %v4100, 0.0
        %v4197 = vmax.f32 %v4101, 0.0
        %v4198 = vmax.f32 %v4102, 0.0
        %v4199 = vmax.f32 %v4103, 0.0
        %v4200 = vmax.f32 %v4104, 0.0
        %v4201 = vmax.f32 %v4105, 0.0
        %v4202 = vmax.f32 %v4106, 0.0
        %v4203 = vmax.f32 %v4107, 0.0
        %v4204 = vmax.f32 %v4108, 0.0
        %v4205 = vmax.f32 %v4109, 0.0
        %v4206 = vmax.f32 %v4110, 0.0
        %v4207 = vmax.f32 %v4111, 0.0
        %v4208 = vmax.f32 %v4112, 0.0
        %v4209 = vmax.f32 %v4113, 0.0
        %v4210 = vmax.f32 %v4114, 0.0
        %v4211 = vmul.f32 %v4099, %v769
        %v4212 = vmul.f32 %v4100, %v770
        %v4213 = vmul.f32 %v4101, %v771
        %v4214 = vmul.f32 %v4102, %v772
        %v4215 = vmul.f32 %v4103, %v773
        %v4216 = vmul.f32 %v4104, %v774
        %v4217 = vmul.f32 %v4105, %v775
        %v4218 = vmul.f32 %v4106, %v776
        %v4219 = vmul.f32 %v4107, %v777
        %v4220 = vmul.f32 %v4108, %v778
        %v4221 = vmul.f32 %v4109, %v779
        %v4222 = vmul.f32 %v4110, %v780
        %v4223 = vmul.f32 %v4111, %v781
        %v4224 = vmul.f32 %v4112, %v782
        %v4225 = vmul.f32 %v4113, %v783
        %v4226 = vmul.f32 %v4114, %v784
        %v4227 = vsub.f32 %v4195, %v4211
        %v4228 = vsub.f32 %v4196, %v4212
        %v4229 = vsub.f32 %v4197, %v4213
        %v4230 = vsub.f32 %v4198, %v4214
        %v4231 = vsub.f32 %v4199, %v4215
        %v4232 = vsub.f32 %v4200, %v4216
        %v4233 = vsub.f32 %v4201, %v4217
        %v4234 = vsub.f32 %v4202, %v4218
        %v4235 = vsub.f32 %v4203, %v4219
        %v4236 = vsub.f32 %v4204, %v4220
        %v4237 = vsub.f32 %v4205, %v4221
        %v4238 = vsub.f32 %v4206, %v4222
        %v4239 = vsub.f32 %v4207, %v4223
        %v4240 = vsub.f32 %v4208, %v4224
        %v4241 = vsub.f32 %v4209, %v4225
        %v4242 = vsub.f32 %v4210, %v4226
        %v4243 = vlog2.pop %v4179
        %v4244 = vmul.f32 %v4243, 0.6931472
        %v4245 = vlog2.pop %v4180
        %v4246 = vmul.f32 %v4245, 0.6931472
        %v4247 = vlog2.pop %v4181
        %v4248 = vmul.f32 %v4247, 0.6931472
        %v4249 = vlog2.pop %v4182
        %v4250 = vmul.f32 %v4249, 0.6931472
        %v4251 = vlog2.pop %v4183
        %v4252 = vmul.f32 %v4251, 0.6931472
        %v4253 = vlog2.pop %v4184
        %v4254 = vmul.f32 %v4253, 0.6931472
        %v4255 = vlog2.pop %v4185
        %v4256 = vmul.f32 %v4255, 0.6931472
        %v4257 = vlog2.pop %v4186
        %v4258 = vmul.f32 %v4257, 0.6931472
        %v4259 = vlog2.pop %v4187
        %v4260 = vmul.f32 %v4259, 0.6931472
        %v4261 = vlog2.pop %v4188
        %v4262 = vmul.f32 %v4261, 0.6931472
        %v4263 = vlog2.pop %v4189
        %v4264 = vmul.f32 %v4263, 0.6931472
        %v4265 = vlog2.pop %v4190
        %v4266 = vmul.f32 %v4265, 0.6931472
        %v4267 = vlog2.pop %v4191
        %v4268 = vmul.f32 %v4267, 0.6931472
        %v4269 = vlog2.pop %v4192
        %v4270 = vmul.f32 %v4269, 0.6931472
        %v4271 = vlog2.pop %v4193
        %v4272 = vmul.f32 %v4271, 0.6931472
        %v4273 = vlog2.pop %v4194
        %v4274 = vmul.f32 %v4273, 0.6931472
        %v4275 = vadd.f32 %v4227, %v4244
        %v4276 = vadd.f32 %v4228, %v4246
        %v4277 = vadd.f32 %v4229, %v4248
        %v4278 = vadd.f32 %v4230, %v4250
        %v4279 = vadd.f32 %v4231, %v4252
        %v4280 = vadd.f32 %v4232, %v4254
        %v4281 = vadd.f32 %v4233, %v4256
        %v4282 = vadd.f32 %v4234, %v4258
        %v4283 = vadd.f32 %v4235, %v4260
        %v4284 = vadd.f32 %v4236, %v4262
        %v4285 = vadd.f32 %v4237, %v4264
        %v4286 = vadd.f32 %v4238, %v4266
        %v4287 = vadd.f32 %v4239, %v4268
        %v4288 = vadd.f32 %v4240, %v4270
        %v4289 = vadd.f32 %v4241, %v4272
        %v4290 = vadd.f32 %v4242, %v4274
        %v4291 = vsel %vm845, %v4275, 0.0
        %v4292 = vsel %vm845, %v4276, 0.0
        %v4293 = vadd.f32 %v4291, %v4292
        %v4294 = vsel %vm845, %v4277, 0.0
        %v4295 = vadd.f32 %v4293, %v4294
        %v4296 = vsel %vm845, %v4278, 0.0
        %v4297 = vadd.f32 %v4295, %v4296
        %v4298 = vrot.slane %v4297, 4
        %v4299 = vadd.f32 %v4297, %v4298
        %v4300 = vrot.slane %v4299, 2
        %v4301 = vadd.f32 %v4299, %v4300
        %v4302 = vrot.slane %v4301, 1
        %v4303 = vadd.f32 %v4301, %v4302
        %v4304 = vsel %vm845, %v4279, 0.0
        %v4305 = vsel %vm845, %v4280, 0.0
        %v4306 = vadd.f32 %v4304, %v4305
        %v4307 = vsel %vm845, %v4281, 0.0
        %v4308 = vadd.f32 %v4306, %v4307
        %v4309 = vsel %vm845, %v4282, 0.0
        %v4310 = vadd.f32 %v4308, %v4309
        %v4311 = vrot.slane %v4310, 4
        %v4312 = vadd.f32 %v4310, %v4311
        %v4313 = vrot.slane %v4312, 2
        %v4314 = vadd.f32 %v4312, %v4313
        %v4315 = vrot.slane %v4314, 1
        %v4316 = vadd.f32 %v4314, %v4315
        %v4317 = vsel %vm845, %v4283, 0.0
        %v4318 = vsel %vm845, %v4284, 0.0
        %v4319 = vadd.f32 %v4317, %v4318
        %v4320 = vsel %vm845, %v4285, 0.0
        %v4321 = vadd.f32 %v4319, %v4320
        %v4322 = vsel %vm845, %v4286, 0.0
        %v4323 = vadd.f32 %v4321, %v4322
        %v4324 = vrot.slane %v4323, 4
        %v4325 = vadd.f32 %v4323, %v4324
        %v4326 = vrot.slane %v4325, 2
        %v4327 = vadd.f32 %v4325, %v4326
        %v4328 = vrot.slane %v4327, 1
        %v4329 = vadd.f32 %v4327, %v4328
        %v4330 = vsel %vm845, %v4287, 0.0
        %v4331 = vsel %vm845, %v4288, 0.0
        %v4332 = vadd.f32 %v4330, %v4331
        %v4333 = vsel %vm845, %v4289, 0.0
        %v4334 = vadd.f32 %v4332, %v4333
        %v4335 = vsel %vm845, %v4290, 0.0
        %v4336 = vadd.f32 %v4334, %v4335
        %v4337 = vrot.slane %v4336, 4
        %v4338 = vadd.f32 %v4336, %v4337
        %v4339 = vrot.slane %v4338, 2
        %v4340 = vadd.f32 %v4338, %v4339
        %v4341 = vrot.slane %v4340, 1
        %v4342 = vadd.f32 %v4340, %v4341
        %v4347 = vsel %vm1262, %v4316, %v4303
        %v4348 = vsel %vm1264, %v4329, %v4347
        %v4349 = vsel %vm1266, %v4342, %v4348
        %v4351 = vsel %vm1269, %v4349, 0.0
        %4352 = vadd.xlane.f32.xlu0 %v4351
        %v4353 = vpop.xlane.xlu0 %4352
        %v4354 = vmul.f32 %v4353, 0.0009765625
        %v4355 = vrcp.pop %v4179
        %v4356 = vrcp.pop %v4180
        %v4357 = vrcp.pop %v4181
        %v4358 = vrcp.pop %v4182
        %v4359 = vrcp.pop %v4183
        %v4360 = vrcp.pop %v4184
        %v4361 = vrcp.pop %v4185
        %v4362 = vrcp.pop %v4186
        %v4363 = vrcp.pop %v4187
        %v4364 = vrcp.pop %v4188
        %v4365 = vrcp.pop %v4189
        %v4366 = vrcp.pop %v4190
        %v4367 = vrcp.pop %v4191
        %v4368 = vrcp.pop %v4192
        %v4369 = vrcp.pop %v4193
        %v4370 = vrcp.pop %v4194
        %v4371 = vmul.f32 %v4179, %v4355
        %v4372 = vmul.f32 %v4180, %v4356
        %v4373 = vmul.f32 %v4181, %v4357
        %v4374 = vmul.f32 %v4182, %v4358
        %v4375 = vmul.f32 %v4183, %v4359
        %v4376 = vmul.f32 %v4184, %v4360
        %v4377 = vmul.f32 %v4185, %v4361
        %v4378 = vmul.f32 %v4186, %v4362
        %v4379 = vmul.f32 %v4187, %v4363
        %v4380 = vmul.f32 %v4188, %v4364
        %v4381 = vmul.f32 %v4189, %v4365
        %v4382 = vmul.f32 %v4190, %v4366
        %v4383 = vmul.f32 %v4191, %v4367
        %v4384 = vmul.f32 %v4192, %v4368
        %v4385 = vmul.f32 %v4193, %v4369
        %v4386 = vmul.f32 %v4194, %v4370
        %v4387 = vsub.f32 2.0, %v4371
        %v4388 = vsub.f32 2.0, %v4372
        %v4389 = vsub.f32 2.0, %v4373
        %v4390 = vsub.f32 2.0, %v4374
        %v4391 = vsub.f32 2.0, %v4375
        %v4392 = vsub.f32 2.0, %v4376
        %v4393 = vsub.f32 2.0, %v4377
        %v4394 = vsub.f32 2.0, %v4378
        %v4395 = vsub.f32 2.0, %v4379
        %v4396 = vsub.f32 2.0, %v4380
        %v4397 = vsub.f32 2.0, %v4381
        %v4398 = vsub.f32 2.0, %v4382
        %v4399 = vsub.f32 2.0, %v4383
        %v4400 = vsub.f32 2.0, %v4384
        %v4401 = vsub.f32 2.0, %v4385
        %v4402 = vsub.f32 2.0, %v4386
        %v4403 = vmul.f32 %v4355, %v4387
        %v4404 = vmul.f32 %v4356, %v4388
        %v4405 = vmul.f32 %v4357, %v4389
        %v4406 = vmul.f32 %v4358, %v4390
        %v4407 = vmul.f32 %v4359, %v4391
        %v4408 = vmul.f32 %v4360, %v4392
        %v4409 = vmul.f32 %v4361, %v4393
        %v4410 = vmul.f32 %v4362, %v4394
        %v4411 = vmul.f32 %v4363, %v4395
        %v4412 = vmul.f32 %v4364, %v4396
        %v4413 = vmul.f32 %v4365, %v4397
        %v4414 = vmul.f32 %v4366, %v4398
        %v4415 = vmul.f32 %v4367, %v4399
        %v4416 = vmul.f32 %v4368, %v4400
        %v4417 = vmul.f32 %v4369, %v4401
        %v4418 = vmul.f32 %v4370, %v4402
        %vm4419 = vcmp.ge.f32.partialorder %v4099, 0.0
        %vm4420 = vcmp.ge.f32.partialorder %v4100, 0.0
        %vm4421 = vcmp.ge.f32.partialorder %v4101, 0.0
        %vm4422 = vcmp.ge.f32.partialorder %v4102, 0.0
        %vm4423 = vcmp.ge.f32.partialorder %v4103, 0.0
        %vm4424 = vcmp.ge.f32.partialorder %v4104, 0.0
        %vm4425 = vcmp.ge.f32.partialorder %v4105, 0.0
        %vm4426 = vcmp.ge.f32.partialorder %v4106, 0.0
        %vm4427 = vcmp.ge.f32.partialorder %v4107, 0.0
        %vm4428 = vcmp.ge.f32.partialorder %v4108, 0.0
        %vm4429 = vcmp.ge.f32.partialorder %v4109, 0.0
        %vm4430 = vcmp.ge.f32.partialorder %v4110, 0.0
        %vm4431 = vcmp.ge.f32.partialorder %v4111, 0.0
        %vm4432 = vcmp.ge.f32.partialorder %v4112, 0.0
        %vm4433 = vcmp.ge.f32.partialorder %v4113, 0.0
        %vm4434 = vcmp.ge.f32.partialorder %v4114, 0.0
        %v4435 = vmul.f32 %v4148, %v4403
        %v4436 = vmul.f32 %v4150, %v4404
        %v4437 = vmul.f32 %v4152, %v4405
        %v4438 = vmul.f32 %v4154, %v4406
        %v4439 = vmul.f32 %v4156, %v4407
        %v4440 = vmul.f32 %v4158, %v4408
        %v4441 = vmul.f32 %v4160, %v4409
        %v4442 = vmul.f32 %v4162, %v4410
        %v4443 = vmul.f32 %v4164, %v4411
        %v4444 = vmul.f32 %v4166, %v4412
        %v4445 = vmul.f32 %v4168, %v4413
        %v4446 = vmul.f32 %v4170, %v4414
        %v4447 = vmul.f32 %v4172, %v4415
        %v4448 = vmul.f32 %v4174, %v4416
        %v4449 = vmul.f32 %v4176, %v4417
        %v4450 = vmul.f32 %v4178, %v4418
        %v4451 = vsel %vm4419, %v4403, %v4435
        %v4452 = vsel %vm4420, %v4404, %v4436
        %v4453 = vsel %vm4421, %v4405, %v4437
        %v4454 = vsel %vm4422, %v4406, %v4438
        %v4455 = vsel %vm4423, %v4407, %v4439
        %v4456 = vsel %vm4424, %v4408, %v4440
        %v4457 = vsel %vm4425, %v4409, %v4441
        %v4458 = vsel %vm4426, %v4410, %v4442
        %v4459 = vsel %vm4427, %v4411, %v4443
        %v4460 = vsel %vm4428, %v4412, %v4444
        %v4461 = vsel %vm4429, %v4413, %v4445
        %v4462 = vsel %vm4430, %v4414, %v4446
        %v4463 = vsel %vm4431, %v4415, %v4447
        %v4464 = vsel %vm4432, %v4416, %v4448
        %v4465 = vsel %vm4433, %v4417, %v4449
        %v4466 = vsel %vm4434, %v4418, %v4450
        %v4467 = vmul.f32 %v4451, %v1190
        %v4468 = vmul.f32 %v4452, %v1191
        %v4469 = vmul.f32 %v4453, %v1192
        %v4470 = vmul.f32 %v4454, %v1193
        %v4471 = vmul.f32 %v4455, %v1194
        %v4472 = vmul.f32 %v4456, %v1195
        %v4473 = vmul.f32 %v4457, %v1196
        %v4474 = vmul.f32 %v4458, %v1197
        %v4475 = vmul.f32 %v4459, %v1198
        %v4476 = vmul.f32 %v4460, %v1199
        %v4477 = vmul.f32 %v4461, %v1200
        %v4478 = vmul.f32 %v4462, %v1201
        %v4479 = vmul.f32 %v4463, %v1202
        %v4480 = vmul.f32 %v4464, %v1203
        %v4481 = vmul.f32 %v4465, %v1204
        %v4482 = vmul.f32 %v4466, %v1205
        %v4483 = vsel %vm845, %v4467, 0.0
        %v4484 = vsel %vm845, %v4468, 0.0
        %v4485 = vadd.f32 %v4483, %v4484
        %v4486 = vsel %vm845, %v4469, 0.0
        %v4487 = vadd.f32 %v4485, %v4486
        %v4488 = vsel %vm845, %v4470, 0.0
        %v4489 = vadd.f32 %v4487, %v4488
        %v4490 = vrot.slane %v4489, 4
        %v4491 = vadd.f32 %v4489, %v4490
        %v4492 = vrot.slane %v4491, 2
        %v4493 = vadd.f32 %v4491, %v4492
        %v4494 = vrot.slane %v4493, 1
        %v4495 = vadd.f32 %v4493, %v4494
        %v4496 = vsel %vm845, %v4471, 0.0
        %v4497 = vsel %vm845, %v4472, 0.0
        %v4498 = vadd.f32 %v4496, %v4497
        %v4499 = vsel %vm845, %v4473, 0.0
        %v4500 = vadd.f32 %v4498, %v4499
        %v4501 = vsel %vm845, %v4474, 0.0
        %v4502 = vadd.f32 %v4500, %v4501
        %v4503 = vrot.slane %v4502, 4
        %v4504 = vadd.f32 %v4502, %v4503
        %v4505 = vrot.slane %v4504, 2
        %v4506 = vadd.f32 %v4504, %v4505
        %v4507 = vrot.slane %v4506, 1
        %v4508 = vadd.f32 %v4506, %v4507
        %v4509 = vsel %vm845, %v4475, 0.0
        %v4510 = vsel %vm845, %v4476, 0.0
        %v4511 = vadd.f32 %v4509, %v4510
        %v4512 = vsel %vm845, %v4477, 0.0
        %v4513 = vadd.f32 %v4511, %v4512
        %v4514 = vsel %vm845, %v4478, 0.0
        %v4515 = vadd.f32 %v4513, %v4514
        %v4516 = vrot.slane %v4515, 4
        %v4517 = vadd.f32 %v4515, %v4516
        %v4518 = vrot.slane %v4517, 2
        %v4519 = vadd.f32 %v4517, %v4518
        %v4520 = vrot.slane %v4519, 1
        %v4521 = vadd.f32 %v4519, %v4520
        %v4522 = vsel %vm845, %v4479, 0.0
        %v4523 = vsel %vm845, %v4480, 0.0
        %v4524 = vadd.f32 %v4522, %v4523
        %v4525 = vsel %vm845, %v4481, 0.0
        %v4526 = vadd.f32 %v4524, %v4525
        %v4527 = vsel %vm845, %v4482, 0.0
        %v4528 = vadd.f32 %v4526, %v4527
        %v4529 = vrot.slane %v4528, 4
        %v4530 = vadd.f32 %v4528, %v4529
        %v4531 = vrot.slane %v4530, 2
        %v4532 = vadd.f32 %v4530, %v4531
        %v4533 = vrot.slane %v4532, 1
        %v4534 = vadd.f32 %v4532, %v4533
        %v4539 = vsel %vm1262, %v4508, %v4495
        %v4540 = vsel %vm1264, %v4521, %v4539
        %v4541 = vsel %vm1266, %v4534, %v4540
        %v4543 = vsel %vm1269, %v4541, 0.0
        %4544 = vadd.xlane.f32.xlu0 %v4543
        %v4545 = vpop.xlane.xlu0 %4544
        %v4546 = vmul.f32 %v4451, %v1174
        %v4547 = vmul.f32 %v4452, %v1175
        %v4548 = vmul.f32 %v4453, %v1176
        %v4549 = vmul.f32 %v4454, %v1177
        %v4550 = vmul.f32 %v4455, %v1178
        %v4551 = vmul.f32 %v4456, %v1179
        %v4552 = vmul.f32 %v4457, %v1180
        %v4553 = vmul.f32 %v4458, %v1181
        %v4554 = vmul.f32 %v4459, %v1182
        %v4555 = vmul.f32 %v4460, %v1183
        %v4556 = vmul.f32 %v4461, %v1184
        %v4557 = vmul.f32 %v4462, %v1185
        %v4558 = vmul.f32 %v4463, %v1186
        %v4559 = vmul.f32 %v4464, %v1187
        %v4560 = vmul.f32 %v4465, %v1188
        %v4561 = vmul.f32 %v4466, %v1189
        %v4562 = vsel %vm845, %v4546, 0.0
        %v4563 = vsel %vm845, %v4547, 0.0
        %v4564 = vadd.f32 %v4562, %v4563
        %v4565 = vsel %vm845, %v4548, 0.0
        %v4566 = vadd.f32 %v4564, %v4565
        %v4567 = vsel %vm845, %v4549, 0.0
        %v4568 = vadd.f32 %v4566, %v4567
        %v4569 = vrot.slane %v4568, 4
        %v4570 = vadd.f32 %v4568, %v4569
        %v4571 = vrot.slane %v4570, 2
        %v4572 = vadd.f32 %v4570, %v4571
        %v4573 = vrot.slane %v4572, 1
        %v4574 = vadd.f32 %v4572, %v4573
        %v4575 = vsel %vm845, %v4550, 0.0
        %v4576 = vsel %vm845, %v4551, 0.0
        %v4577 = vadd.f32 %v4575, %v4576
        %v4578 = vsel %vm845, %v4552, 0.0
        %v4579 = vadd.f32 %v4577, %v4578
        %v4580 = vsel %vm845, %v4553, 0.0
        %v4581 = vadd.f32 %v4579, %v4580
        %v4582 = vrot.slane %v4581, 4
        %v4583 = vadd.f32 %v4581, %v4582
        %v4584 = vrot.slane %v4583, 2
        %v4585 = vadd.f32 %v4583, %v4584
        %v4586 = vrot.slane %v4585, 1
        %v4587 = vadd.f32 %v4585, %v4586
        %v4588 = vsel %vm845, %v4554, 0.0
        %v4589 = vsel %vm845, %v4555, 0.0
        %v4590 = vadd.f32 %v4588, %v4589
        %v4591 = vsel %vm845, %v4556, 0.0
        %v4592 = vadd.f32 %v4590, %v4591
        %v4593 = vsel %vm845, %v4557, 0.0
        %v4594 = vadd.f32 %v4592, %v4593
        %v4595 = vrot.slane %v4594, 4
        %v4596 = vadd.f32 %v4594, %v4595
        %v4597 = vrot.slane %v4596, 2
        %v4598 = vadd.f32 %v4596, %v4597
        %v4599 = vrot.slane %v4598, 1
        %v4600 = vadd.f32 %v4598, %v4599
        %v4601 = vsel %vm845, %v4558, 0.0
        %v4602 = vsel %vm845, %v4559, 0.0
        %v4603 = vadd.f32 %v4601, %v4602
        %v4604 = vsel %vm845, %v4560, 0.0
        %v4605 = vadd.f32 %v4603, %v4604
        %v4606 = vsel %vm845, %v4561, 0.0
        %v4607 = vadd.f32 %v4605, %v4606
        %v4608 = vrot.slane %v4607, 4
        %v4609 = vadd.f32 %v4607, %v4608
        %v4610 = vrot.slane %v4609, 2
        %v4611 = vadd.f32 %v4609, %v4610
        %v4612 = vrot.slane %v4611, 1
        %v4613 = vadd.f32 %v4611, %v4612
        %v4618 = vsel %vm1262, %v4587, %v4574
        %v4619 = vsel %vm1264, %v4600, %v4618
        %v4620 = vsel %vm1266, %v4613, %v4619
        %v4622 = vsel %vm1269, %v4620, 0.0
        %4623 = vadd.xlane.f32.xlu0 %v4622
        %v4624 = vpop.xlane.xlu0 %4623
        %v4625 = vadd.f32 %v4624, %v1272
        %v4626 = vadd.f32 %v4545, 1.0
        %v4627 = vsub.f32 %v4625, %v4545
        %v4628 = vadd.f32 %v4627, 1.0
        %v4629 = vrcp.pop %v4628
        %v4630 = vmul.f32 %v4628, %v4629
        %v4631 = vsub.f32 1.0, %v4630
        %v4632 = vmul.f32 %v4629, %v4631
        %v4633 = vadd.f32 %v4629, %v4632
        %vm4634 = vweird.f32 %v4628
        %vm4635 = vweird.f32 %v4629
        %vm4636 = vmor %vm4634, %vm4635
        %v4637 = vsel %vm4636, %v4629, %v4633
        %v4638 = vand.u32 2147483647, %v4628
        %vm4639 = vcmp.eq.f32.partialorder %v4638, 8.507059e+37
        %v4640 = vand.u32 %v4628, 2147483648
        %v4641 = vor.u32 1.1754944e-38, %v4640
        %v4642 = vsel %vm4639, %v4641, %v4637
        %v4643 = vmul.f32 %v4626, %v4642
        %v4644 = vsub.f32 1.0, %v4643
        %v4645 = vld [vmem:[%s654] sm:$0xf]
        %v4646 = vld [vmem:[%s654 + $0x4] sm:$0xf]
        %v4647 = vld [vmem:[%s654 + $0x8] sm:$0xf]
        %v4648 = vld [vmem:[%s654 + $0xc] sm:$0xf]
        %v4649 = vld [vmem:[%s654 + $0x10] sm:$0xf]
        %v4650 = vld [vmem:[%s654 + $0x14] sm:$0xf]
        %v4651 = vld [vmem:[%s654 + $0x18] sm:$0xf]
        %v4652 = vld [vmem:[%s654 + $0x1c] sm:$0xf]
        %v4653 = vld [vmem:[%s654 + $0x20] sm:$0xf]
        %v4654 = vld [vmem:[%s654 + $0x24] sm:$0xf]
        %v4655 = vld [vmem:[%s654 + $0x28] sm:$0xf]
        %v4656 = vld [vmem:[%s654 + $0x2c] sm:$0xf]
        %v4657 = vld [vmem:[%s654 + $0x30] sm:$0xf]
        %v4658 = vld [vmem:[%s654 + $0x34] sm:$0xf]
        %v4659 = vld [vmem:[%s654 + $0x38] sm:$0xf]
        %v4660 = vld [vmem:[%s654 + $0x3c] sm:$0xf]
        %v4661 = vunpack.c.l.bf16 %v4645
        %v4662 = vunpack.c.l.bf16 %v4646
        %v4663 = vunpack.c.l.bf16 %v4647
        %v4664 = vunpack.c.l.bf16 %v4648
        %v4665 = vunpack.c.l.bf16 %v4649
        %v4666 = vunpack.c.l.bf16 %v4650
        %v4667 = vunpack.c.l.bf16 %v4651
        %v4668 = vunpack.c.l.bf16 %v4652
        %v4669 = vunpack.c.l.bf16 %v4653
        %v4670 = vunpack.c.l.bf16 %v4654
        %v4671 = vunpack.c.l.bf16 %v4655
        %v4672 = vunpack.c.l.bf16 %v4656
        %v4673 = vunpack.c.l.bf16 %v4657
        %v4674 = vunpack.c.l.bf16 %v4658
        %v4675 = vunpack.c.l.bf16 %v4659
        %v4676 = vunpack.c.l.bf16 %v4660
        %v4677 = vand.u32 2147483647, %v4661
        %v4678 = vand.u32 2147483647, %v4662
        %v4679 = vand.u32 2147483647, %v4663
        %v4680 = vand.u32 2147483647, %v4664
        %v4681 = vand.u32 2147483647, %v4665
        %v4682 = vand.u32 2147483647, %v4666
        %v4683 = vand.u32 2147483647, %v4667
        %v4684 = vand.u32 2147483647, %v4668
        %v4685 = vand.u32 2147483647, %v4669
        %v4686 = vand.u32 2147483647, %v4670
        %v4687 = vand.u32 2147483647, %v4671
        %v4688 = vand.u32 2147483647, %v4672
        %v4689 = vand.u32 2147483647, %v4673
        %v4690 = vand.u32 2147483647, %v4674
        %v4691 = vand.u32 2147483647, %v4675
        %v4692 = vand.u32 2147483647, %v4676
        %v4693 = vsub.f32 0.0, %v4677
        %v4694 = vsub.f32 0.0, %v4678
        %v4695 = vsub.f32 0.0, %v4679
        %v4696 = vsub.f32 0.0, %v4680
        %v4697 = vsub.f32 0.0, %v4681
        %v4698 = vsub.f32 0.0, %v4682
        %v4699 = vsub.f32 0.0, %v4683
        %v4700 = vsub.f32 0.0, %v4684
        %v4701 = vsub.f32 0.0, %v4685
        %v4702 = vsub.f32 0.0, %v4686
        %v4703 = vsub.f32 0.0, %v4687
        %v4704 = vsub.f32 0.0, %v4688
        %v4705 = vsub.f32 0.0, %v4689
        %v4706 = vsub.f32 0.0, %v4690
        %v4707 = vsub.f32 0.0, %v4691
        %v4708 = vsub.f32 0.0, %v4692
        %v4709 = vmul.f32 %v4693, 1.442695
        %v4710 = vpow.pop %v4709
        %v4711 = vmul.f32 %v4694, 1.442695
        %v4712 = vpow.pop %v4711
        %v4713 = vmul.f32 %v4695, 1.442695
        %v4714 = vpow.pop %v4713
        %v4715 = vmul.f32 %v4696, 1.442695
        %v4716 = vpow.pop %v4715
        %v4717 = vmul.f32 %v4697, 1.442695
        %v4718 = vpow.pop %v4717
        %v4719 = vmul.f32 %v4698, 1.442695
        %v4720 = vpow.pop %v4719
        %v4721 = vmul.f32 %v4699, 1.442695
        %v4722 = vpow.pop %v4721
        %v4723 = vmul.f32 %v4700, 1.442695
        %v4724 = vpow.pop %v4723
        %v4725 = vmul.f32 %v4701, 1.442695
        %v4726 = vpow.pop %v4725
        %v4727 = vmul.f32 %v4702, 1.442695
        %v4728 = vpow.pop %v4727
        %v4729 = vmul.f32 %v4703, 1.442695
        %v4730 = vpow.pop %v4729
        %v4731 = vmul.f32 %v4704, 1.442695
        %v4732 = vpow.pop %v4731
        %v4733 = vmul.f32 %v4705, 1.442695
        %v4734 = vpow.pop %v4733
        %v4735 = vmul.f32 %v4706, 1.442695
        %v4736 = vpow.pop %v4735
        %v4737 = vmul.f32 %v4707, 1.442695
        %v4738 = vpow.pop %v4737
        %v4739 = vmul.f32 %v4708, 1.442695
        %v4740 = vpow.pop %v4739
        %v4741 = vadd.f32 %v4710, 1.0
        %v4742 = vadd.f32 %v4712, 1.0
        %v4743 = vadd.f32 %v4714, 1.0
        %v4744 = vadd.f32 %v4716, 1.0
        %v4745 = vadd.f32 %v4718, 1.0
        %v4746 = vadd.f32 %v4720, 1.0
        %v4747 = vadd.f32 %v4722, 1.0
        %v4748 = vadd.f32 %v4724, 1.0
        %v4749 = vadd.f32 %v4726, 1.0
        %v4750 = vadd.f32 %v4728, 1.0
        %v4751 = vadd.f32 %v4730, 1.0
        %v4752 = vadd.f32 %v4732, 1.0
        %v4753 = vadd.f32 %v4734, 1.0
        %v4754 = vadd.f32 %v4736, 1.0
        %v4755 = vadd.f32 %v4738, 1.0
        %v4756 = vadd.f32 %v4740, 1.0
        %v4757 = vmax.f32 %v4661, 0.0
        %v4758 = vmax.f32 %v4662, 0.0
        %v4759 = vmax.f32 %v4663, 0.0
        %v4760 = vmax.f32 %v4664, 0.0
        %v4761 = vmax.f32 %v4665, 0.0
        %v4762 = vmax.f32 %v4666, 0.0
        %v4763 = vmax.f32 %v4667, 0.0
        %v4764 = vmax.f32 %v4668, 0.0
        %v4765 = vmax.f32 %v4669, 0.0
        %v4766 = vmax.f32 %v4670, 0.0
        %v4767 = vmax.f32 %v4671, 0.0
        %v4768 = vmax.f32 %v4672, 0.0
        %v4769 = vmax.f32 %v4673, 0.0
        %v4770 = vmax.f32 %v4674, 0.0
        %v4771 = vmax.f32 %v4675, 0.0
        %v4772 = vmax.f32 %v4676, 0.0
        %v4773 = vmul.f32 %v4661, %v769
        %v4774 = vmul.f32 %v4662, %v770
        %v4775 = vmul.f32 %v4663, %v771
        %v4776 = vmul.f32 %v4664, %v772
        %v4777 = vmul.f32 %v4665, %v773
        %v4778 = vmul.f32 %v4666, %v774
        %v4779 = vmul.f32 %v4667, %v775
        %v4780 = vmul.f32 %v4668, %v776
        %v4781 = vmul.f32 %v4669, %v777
        %v4782 = vmul.f32 %v4670, %v778
        %v4783 = vmul.f32 %v4671, %v779
        %v4784 = vmul.f32 %v4672, %v780
        %v4785 = vmul.f32 %v4673, %v781
        %v4786 = vmul.f32 %v4674, %v782
        %v4787 = vmul.f32 %v4675, %v783
        %v4788 = vmul.f32 %v4676, %v784
        %v4789 = vsub.f32 %v4757, %v4773
        %v4790 = vsub.f32 %v4758, %v4774
        %v4791 = vsub.f32 %v4759, %v4775
        %v4792 = vsub.f32 %v4760, %v4776
        %v4793 = vsub.f32 %v4761, %v4777
        %v4794 = vsub.f32 %v4762, %v4778
        %v4795 = vsub.f32 %v4763, %v4779
        %v4796 = vsub.f32 %v4764, %v4780
        %v4797 = vsub.f32 %v4765, %v4781
        %v4798 = vsub.f32 %v4766, %v4782
        %v4799 = vsub.f32 %v4767, %v4783
        %v4800 = vsub.f32 %v4768, %v4784
        %v4801 = vsub.f32 %v4769, %v4785
        %v4802 = vsub.f32 %v4770, %v4786
        %v4803 = vsub.f32 %v4771, %v4787
        %v4804 = vsub.f32 %v4772, %v4788
        %v4805 = vlog2.pop %v4741
        %v4806 = vmul.f32 %v4805, 0.6931472
        %v4807 = vlog2.pop %v4742
        %v4808 = vmul.f32 %v4807, 0.6931472
        %v4809 = vlog2.pop %v4743
        %v4810 = vmul.f32 %v4809, 0.6931472
        %v4811 = vlog2.pop %v4744
        %v4812 = vmul.f32 %v4811, 0.6931472
        %v4813 = vlog2.pop %v4745
        %v4814 = vmul.f32 %v4813, 0.6931472
        %v4815 = vlog2.pop %v4746
        %v4816 = vmul.f32 %v4815, 0.6931472
        %v4817 = vlog2.pop %v4747
        %v4818 = vmul.f32 %v4817, 0.6931472
        %v4819 = vlog2.pop %v4748
        %v4820 = vmul.f32 %v4819, 0.6931472
        %v4821 = vlog2.pop %v4749
        %v4822 = vmul.f32 %v4821, 0.6931472
        %v4823 = vlog2.pop %v4750
        %v4824 = vmul.f32 %v4823, 0.6931472
        %v4825 = vlog2.pop %v4751
        %v4826 = vmul.f32 %v4825, 0.6931472
        %v4827 = vlog2.pop %v4752
        %v4828 = vmul.f32 %v4827, 0.6931472
        %v4829 = vlog2.pop %v4753
        %v4830 = vmul.f32 %v4829, 0.6931472
        %v4831 = vlog2.pop %v4754
        %v4832 = vmul.f32 %v4831, 0.6931472
        %v4833 = vlog2.pop %v4755
        %v4834 = vmul.f32 %v4833, 0.6931472
        %v4835 = vlog2.pop %v4756
        %v4836 = vmul.f32 %v4835, 0.6931472
        %v4837 = vadd.f32 %v4789, %v4806
        %v4838 = vadd.f32 %v4790, %v4808
        %v4839 = vadd.f32 %v4791, %v4810
        %v4840 = vadd.f32 %v4792, %v4812
        %v4841 = vadd.f32 %v4793, %v4814
        %v4842 = vadd.f32 %v4794, %v4816
        %v4843 = vadd.f32 %v4795, %v4818
        %v4844 = vadd.f32 %v4796, %v4820
        %v4845 = vadd.f32 %v4797, %v4822
        %v4846 = vadd.f32 %v4798, %v4824
        %v4847 = vadd.f32 %v4799, %v4826
        %v4848 = vadd.f32 %v4800, %v4828
        %v4849 = vadd.f32 %v4801, %v4830
        %v4850 = vadd.f32 %v4802, %v4832
        %v4851 = vadd.f32 %v4803, %v4834
        %v4852 = vadd.f32 %v4804, %v4836
        %v4853 = vsel %vm845, %v4837, 0.0
        %v4854 = vsel %vm845, %v4838, 0.0
        %v4855 = vadd.f32 %v4853, %v4854
        %v4856 = vsel %vm845, %v4839, 0.0
        %v4857 = vadd.f32 %v4855, %v4856
        %v4858 = vsel %vm845, %v4840, 0.0
        %v4859 = vadd.f32 %v4857, %v4858
        %v4860 = vrot.slane %v4859, 4
        %v4861 = vadd.f32 %v4859, %v4860
        %v4862 = vrot.slane %v4861, 2
        %v4863 = vadd.f32 %v4861, %v4862
        %v4864 = vrot.slane %v4863, 1
        %v4865 = vadd.f32 %v4863, %v4864
        %v4866 = vsel %vm845, %v4841, 0.0
        %v4867 = vsel %vm845, %v4842, 0.0
        %v4868 = vadd.f32 %v4866, %v4867
        %v4869 = vsel %vm845, %v4843, 0.0
        %v4870 = vadd.f32 %v4868, %v4869
        %v4871 = vsel %vm845, %v4844, 0.0
        %v4872 = vadd.f32 %v4870, %v4871
        %v4873 = vrot.slane %v4872, 4
        %v4874 = vadd.f32 %v4872, %v4873
        %v4875 = vrot.slane %v4874, 2
        %v4876 = vadd.f32 %v4874, %v4875
        %v4877 = vrot.slane %v4876, 1
        %v4878 = vadd.f32 %v4876, %v4877
        %v4879 = vsel %vm845, %v4845, 0.0
        %v4880 = vsel %vm845, %v4846, 0.0
        %v4881 = vadd.f32 %v4879, %v4880
        %v4882 = vsel %vm845, %v4847, 0.0
        %v4883 = vadd.f32 %v4881, %v4882
        %v4884 = vsel %vm845, %v4848, 0.0
        %v4885 = vadd.f32 %v4883, %v4884
        %v4886 = vrot.slane %v4885, 4
        %v4887 = vadd.f32 %v4885, %v4886
        %v4888 = vrot.slane %v4887, 2
        %v4889 = vadd.f32 %v4887, %v4888
        %v4890 = vrot.slane %v4889, 1
        %v4891 = vadd.f32 %v4889, %v4890
        %v4892 = vsel %vm845, %v4849, 0.0
        %v4893 = vsel %vm845, %v4850, 0.0
        %v4894 = vadd.f32 %v4892, %v4893
        %v4895 = vsel %vm845, %v4851, 0.0
        %v4896 = vadd.f32 %v4894, %v4895
        %v4897 = vsel %vm845, %v4852, 0.0
        %v4898 = vadd.f32 %v4896, %v4897
        %v4899 = vrot.slane %v4898, 4
        %v4900 = vadd.f32 %v4898, %v4899
        %v4901 = vrot.slane %v4900, 2
        %v4902 = vadd.f32 %v4900, %v4901
        %v4903 = vrot.slane %v4902, 1
        %v4904 = vadd.f32 %v4902, %v4903
        %v4909 = vsel %vm1262, %v4878, %v4865
        %v4910 = vsel %vm1264, %v4891, %v4909
        %v4911 = vsel %vm1266, %v4904, %v4910
        %v4913 = vsel %vm1269, %v4911, 0.0
        %4914 = vadd.xlane.f32.xlu0 %v4913
        %v4915 = vpop.xlane.xlu0 %4914
        %v4916 = vmul.f32 %v4915, 0.0009765625
        %v4917 = vrcp.pop %v4741
        %v4918 = vrcp.pop %v4742
        %v4919 = vrcp.pop %v4743
        %v4920 = vrcp.pop %v4744
        %v4921 = vrcp.pop %v4745
        %v4922 = vrcp.pop %v4746
        %v4923 = vrcp.pop %v4747
        %v4924 = vrcp.pop %v4748
        %v4925 = vrcp.pop %v4749
        %v4926 = vrcp.pop %v4750
        %v4927 = vrcp.pop %v4751
        %v4928 = vrcp.pop %v4752
        %v4929 = vrcp.pop %v4753
        %v4930 = vrcp.pop %v4754
        %v4931 = vrcp.pop %v4755
        %v4932 = vrcp.pop %v4756
        %v4933 = vmul.f32 %v4741, %v4917
        %v4934 = vmul.f32 %v4742, %v4918
        %v4935 = vmul.f32 %v4743, %v4919
        %v4936 = vmul.f32 %v4744, %v4920
        %v4937 = vmul.f32 %v4745, %v4921
        %v4938 = vmul.f32 %v4746, %v4922
        %v4939 = vmul.f32 %v4747, %v4923
        %v4940 = vmul.f32 %v4748, %v4924
        %v4941 = vmul.f32 %v4749, %v4925
        %v4942 = vmul.f32 %v4750, %v4926
        %v4943 = vmul.f32 %v4751, %v4927
        %v4944 = vmul.f32 %v4752, %v4928
        %v4945 = vmul.f32 %v4753, %v4929
        %v4946 = vmul.f32 %v4754, %v4930
        %v4947 = vmul.f32 %v4755, %v4931
        %v4948 = vmul.f32 %v4756, %v4932
        %v4949 = vsub.f32 2.0, %v4933
        %v4950 = vsub.f32 2.0, %v4934
        %v4951 = vsub.f32 2.0, %v4935
        %v4952 = vsub.f32 2.0, %v4936
        %v4953 = vsub.f32 2.0, %v4937
        %v4954 = vsub.f32 2.0, %v4938
        %v4955 = vsub.f32 2.0, %v4939
        %v4956 = vsub.f32 2.0, %v4940
        %v4957 = vsub.f32 2.0, %v4941
        %v4958 = vsub.f32 2.0, %v4942
        %v4959 = vsub.f32 2.0, %v4943
        %v4960 = vsub.f32 2.0, %v4944
        %v4961 = vsub.f32 2.0, %v4945
        %v4962 = vsub.f32 2.0, %v4946
        %v4963 = vsub.f32 2.0, %v4947
        %v4964 = vsub.f32 2.0, %v4948
        %v4965 = vmul.f32 %v4917, %v4949
        %v4966 = vmul.f32 %v4918, %v4950
        %v4967 = vmul.f32 %v4919, %v4951
        %v4968 = vmul.f32 %v4920, %v4952
        %v4969 = vmul.f32 %v4921, %v4953
        %v4970 = vmul.f32 %v4922, %v4954
        %v4971 = vmul.f32 %v4923, %v4955
        %v4972 = vmul.f32 %v4924, %v4956
        %v4973 = vmul.f32 %v4925, %v4957
        %v4974 = vmul.f32 %v4926, %v4958
        %v4975 = vmul.f32 %v4927, %v4959
        %v4976 = vmul.f32 %v4928, %v4960
        %v4977 = vmul.f32 %v4929, %v4961
        %v4978 = vmul.f32 %v4930, %v4962
        %v4979 = vmul.f32 %v4931, %v4963
        %v4980 = vmul.f32 %v4932, %v4964
        %vm4981 = vcmp.ge.f32.partialorder %v4661, 0.0
        %vm4982 = vcmp.ge.f32.partialorder %v4662, 0.0
        %vm4983 = vcmp.ge.f32.partialorder %v4663, 0.0
        %vm4984 = vcmp.ge.f32.partialorder %v4664, 0.0
        %vm4985 = vcmp.ge.f32.partialorder %v4665, 0.0
        %vm4986 = vcmp.ge.f32.partialorder %v4666, 0.0
        %vm4987 = vcmp.ge.f32.partialorder %v4667, 0.0
        %vm4988 = vcmp.ge.f32.partialorder %v4668, 0.0
        %vm4989 = vcmp.ge.f32.partialorder %v4669, 0.0
        %vm4990 = vcmp.ge.f32.partialorder %v4670, 0.0
        %vm4991 = vcmp.ge.f32.partialorder %v4671, 0.0
        %vm4992 = vcmp.ge.f32.partialorder %v4672, 0.0
        %vm4993 = vcmp.ge.f32.partialorder %v4673, 0.0
        %vm4994 = vcmp.ge.f32.partialorder %v4674, 0.0
        %vm4995 = vcmp.ge.f32.partialorder %v4675, 0.0
        %vm4996 = vcmp.ge.f32.partialorder %v4676, 0.0
        %v4997 = vmul.f32 %v4710, %v4965
        %v4998 = vmul.f32 %v4712, %v4966
        %v4999 = vmul.f32 %v4714, %v4967
        %v5000 = vmul.f32 %v4716, %v4968
        %v5001 = vmul.f32 %v4718, %v4969
        %v5002 = vmul.f32 %v4720, %v4970
        %v5003 = vmul.f32 %v4722, %v4971
        %v5004 = vmul.f32 %v4724, %v4972
        %v5005 = vmul.f32 %v4726, %v4973
        %v5006 = vmul.f32 %v4728, %v4974
        %v5007 = vmul.f32 %v4730, %v4975
        %v5008 = vmul.f32 %v4732, %v4976
        %v5009 = vmul.f32 %v4734, %v4977
        %v5010 = vmul.f32 %v4736, %v4978
        %v5011 = vmul.f32 %v4738, %v4979
        %v5012 = vmul.f32 %v4740, %v4980
        %v5013 = vsel %vm4981, %v4965, %v4997
        %v5014 = vsel %vm4982, %v4966, %v4998
        %v5015 = vsel %vm4983, %v4967, %v4999
        %v5016 = vsel %vm4984, %v4968, %v5000
        %v5017 = vsel %vm4985, %v4969, %v5001
        %v5018 = vsel %vm4986, %v4970, %v5002
        %v5019 = vsel %vm4987, %v4971, %v5003
        %v5020 = vsel %vm4988, %v4972, %v5004
        %v5021 = vsel %vm4989, %v4973, %v5005
        %v5022 = vsel %vm4990, %v4974, %v5006
        %v5023 = vsel %vm4991, %v4975, %v5007
        %v5024 = vsel %vm4992, %v4976, %v5008
        %v5025 = vsel %vm4993, %v4977, %v5009
        %v5026 = vsel %vm4994, %v4978, %v5010
        %v5027 = vsel %vm4995, %v4979, %v5011
        %v5028 = vsel %vm4996, %v4980, %v5012
        %v5029 = vmul.f32 %v5013, %v1190
        %v5030 = vmul.f32 %v5014, %v1191
        %v5031 = vmul.f32 %v5015, %v1192
        %v5032 = vmul.f32 %v5016, %v1193
        %v5033 = vmul.f32 %v5017, %v1194
        %v5034 = vmul.f32 %v5018, %v1195
        %v5035 = vmul.f32 %v5019, %v1196
        %v5036 = vmul.f32 %v5020, %v1197
        %v5037 = vmul.f32 %v5021, %v1198
        %v5038 = vmul.f32 %v5022, %v1199
        %v5039 = vmul.f32 %v5023, %v1200
        %v5040 = vmul.f32 %v5024, %v1201
        %v5041 = vmul.f32 %v5025, %v1202
        %v5042 = vmul.f32 %v5026, %v1203
        %v5043 = vmul.f32 %v5027, %v1204
        %v5044 = vmul.f32 %v5028, %v1205
        %v5045 = vsel %vm845, %v5029, 0.0
        %v5046 = vsel %vm845, %v5030, 0.0
        %v5047 = vadd.f32 %v5045, %v5046
        %v5048 = vsel %vm845, %v5031, 0.0
        %v5049 = vadd.f32 %v5047, %v5048
        %v5050 = vsel %vm845, %v5032, 0.0
        %v5051 = vadd.f32 %v5049, %v5050
        %v5052 = vrot.slane %v5051, 4
        %v5053 = vadd.f32 %v5051, %v5052
        %v5054 = vrot.slane %v5053, 2
        %v5055 = vadd.f32 %v5053, %v5054
        %v5056 = vrot.slane %v5055, 1
        %v5057 = vadd.f32 %v5055, %v5056
        %v5058 = vsel %vm845, %v5033, 0.0
        %v5059 = vsel %vm845, %v5034, 0.0
        %v5060 = vadd.f32 %v5058, %v5059
        %v5061 = vsel %vm845, %v5035, 0.0
        %v5062 = vadd.f32 %v5060, %v5061
        %v5063 = vsel %vm845, %v5036, 0.0
        %v5064 = vadd.f32 %v5062, %v5063
        %v5065 = vrot.slane %v5064, 4
        %v5066 = vadd.f32 %v5064, %v5065
        %v5067 = vrot.slane %v5066, 2
        %v5068 = vadd.f32 %v5066, %v5067
        %v5069 = vrot.slane %v5068, 1
        %v5070 = vadd.f32 %v5068, %v5069
        %v5071 = vsel %vm845, %v5037, 0.0
        %v5072 = vsel %vm845, %v5038, 0.0
        %v5073 = vadd.f32 %v5071, %v5072
        %v5074 = vsel %vm845, %v5039, 0.0
        %v5075 = vadd.f32 %v5073, %v5074
        %v5076 = vsel %vm845, %v5040, 0.0
        %v5077 = vadd.f32 %v5075, %v5076
        %v5078 = vrot.slane %v5077, 4
        %v5079 = vadd.f32 %v5077, %v5078
        %v5080 = vrot.slane %v5079, 2
        %v5081 = vadd.f32 %v5079, %v5080
        %v5082 = vrot.slane %v5081, 1
        %v5083 = vadd.f32 %v5081, %v5082
        %v5084 = vsel %vm845, %v5041, 0.0
        %v5085 = vsel %vm845, %v5042, 0.0
        %v5086 = vadd.f32 %v5084, %v5085
        %v5087 = vsel %vm845, %v5043, 0.0
        %v5088 = vadd.f32 %v5086, %v5087
        %v5089 = vsel %vm845, %v5044, 0.0
        %v5090 = vadd.f32 %v5088, %v5089
        %v5091 = vrot.slane %v5090, 4
        %v5092 = vadd.f32 %v5090, %v5091
        %v5093 = vrot.slane %v5092, 2
        %v5094 = vadd.f32 %v5092, %v5093
        %v5095 = vrot.slane %v5094, 1
        %v5096 = vadd.f32 %v5094, %v5095
        %v5101 = vsel %vm1262, %v5070, %v5057
        %v5102 = vsel %vm1264, %v5083, %v5101
        %v5103 = vsel %vm1266, %v5096, %v5102
        %v5105 = vsel %vm1269, %v5103, 0.0
        %5106 = vadd.xlane.f32.xlu0 %v5105
        %v5107 = vpop.xlane.xlu0 %5106
        %v5108 = vmul.f32 %v5013, %v1174
        %v5109 = vmul.f32 %v5014, %v1175
        %v5110 = vmul.f32 %v5015, %v1176
        %v5111 = vmul.f32 %v5016, %v1177
        %v5112 = vmul.f32 %v5017, %v1178
        %v5113 = vmul.f32 %v5018, %v1179
        %v5114 = vmul.f32 %v5019, %v1180
        %v5115 = vmul.f32 %v5020, %v1181
        %v5116 = vmul.f32 %v5021, %v1182
        %v5117 = vmul.f32 %v5022, %v1183
        %v5118 = vmul.f32 %v5023, %v1184
        %v5119 = vmul.f32 %v5024, %v1185
        %v5120 = vmul.f32 %v5025, %v1186
        %v5121 = vmul.f32 %v5026, %v1187
        %v5122 = vmul.f32 %v5027, %v1188
        %v5123 = vmul.f32 %v5028, %v1189
        %v5124 = vsel %vm845, %v5108, 0.0
        %v5125 = vsel %vm845, %v5109, 0.0
        %v5126 = vadd.f32 %v5124, %v5125
        %v5127 = vsel %vm845, %v5110, 0.0
        %v5128 = vadd.f32 %v5126, %v5127
        %v5129 = vsel %vm845, %v5111, 0.0
        %v5130 = vadd.f32 %v5128, %v5129
        %v5131 = vrot.slane %v5130, 4
        %v5132 = vadd.f32 %v5130, %v5131
        %v5133 = vrot.slane %v5132, 2
        %v5134 = vadd.f32 %v5132, %v5133
        %v5135 = vrot.slane %v5134, 1
        %v5136 = vadd.f32 %v5134, %v5135
        %v5137 = vsel %vm845, %v5112, 0.0
        %v5138 = vsel %vm845, %v5113, 0.0
        %v5139 = vadd.f32 %v5137, %v5138
        %v5140 = vsel %vm845, %v5114, 0.0
        %v5141 = vadd.f32 %v5139, %v5140
        %v5142 = vsel %vm845, %v5115, 0.0
        %v5143 = vadd.f32 %v5141, %v5142
        %v5144 = vrot.slane %v5143, 4
        %v5145 = vadd.f32 %v5143, %v5144
        %v5146 = vrot.slane %v5145, 2
        %v5147 = vadd.f32 %v5145, %v5146
        %v5148 = vrot.slane %v5147, 1
        %v5149 = vadd.f32 %v5147, %v5148
        %v5150 = vsel %vm845, %v5116, 0.0
        %v5151 = vsel %vm845, %v5117, 0.0
        %v5152 = vadd.f32 %v5150, %v5151
        %v5153 = vsel %vm845, %v5118, 0.0
        %v5154 = vadd.f32 %v5152, %v5153
        %v5155 = vsel %vm845, %v5119, 0.0
        %v5156 = vadd.f32 %v5154, %v5155
        %v5157 = vrot.slane %v5156, 4
        %v5158 = vadd.f32 %v5156, %v5157
        %v5159 = vrot.slane %v5158, 2
        %v5160 = vadd.f32 %v5158, %v5159
        %v5161 = vrot.slane %v5160, 1
        %v5162 = vadd.f32 %v5160, %v5161
        %v5163 = vsel %vm845, %v5120, 0.0
        %v5164 = vsel %vm845, %v5121, 0.0
        %v5165 = vadd.f32 %v5163, %v5164
        %v5166 = vsel %vm845, %v5122, 0.0
        %v5167 = vadd.f32 %v5165, %v5166
        %v5168 = vsel %vm845, %v5123, 0.0
        %v5169 = vadd.f32 %v5167, %v5168
        %v5170 = vrot.slane %v5169, 4
        %v5171 = vadd.f32 %v5169, %v5170
        %v5172 = vrot.slane %v5171, 2
        %v5173 = vadd.f32 %v5171, %v5172
        %v5174 = vrot.slane %v5173, 1
        %v5175 = vadd.f32 %v5173, %v5174
        %v5180 = vsel %vm1262, %v5149, %v5136
        %v5181 = vsel %vm1264, %v5162, %v5180
        %v5182 = vsel %vm1266, %v5175, %v5181
        %v5184 = vsel %vm1269, %v5182, 0.0
        %5185 = vadd.xlane.f32.xlu0 %v5184
        %v5186 = vpop.xlane.xlu0 %5185
        %v5187 = vadd.f32 %v5186, %v1272
        %v5188 = vadd.f32 %v5107, 1.0
        %v5189 = vsub.f32 %v5187, %v5107
        %v5190 = vadd.f32 %v5189, 1.0
        %v5191 = vrcp.pop %v5190
        %v5192 = vmul.f32 %v5190, %v5191
        %v5193 = vsub.f32 1.0, %v5192
        %v5194 = vmul.f32 %v5191, %v5193
        %v5195 = vadd.f32 %v5191, %v5194
        %vm5196 = vweird.f32 %v5190
        %vm5197 = vweird.f32 %v5191
        %vm5198 = vmor %vm5196, %vm5197
        %v5199 = vsel %vm5198, %v5191, %v5195
        %v5200 = vand.u32 2147483647, %v5190
        %vm5201 = vcmp.eq.f32.partialorder %v5200, 8.507059e+37
        %v5202 = vand.u32 %v5190, 2147483648
        %v5203 = vor.u32 1.1754944e-38, %v5202
        %v5204 = vsel %vm5201, %v5203, %v5199
        %v5205 = vmul.f32 %v5188, %v5204
        %v5206 = vsub.f32 1.0, %v5205
        %vm5207 = vcmask 7168
        %v5208 = vsel %vm5207, %v1544, %v2106
        %vm5209 = vcmask 15360
        %v5210 = vsel %vm5209, %v5208, %v2668
        %vm5211 = vcmask 23552
        %v5212 = vsel %vm5211, %v5210, %v3230
        %vm5213 = vcmask 31744
        %v5214 = vsel %vm5213, %v5212, %v3792
        %vm5215 = vcmask 39936
        %v5216 = vsel %vm5215, %v5214, %v4354
        %vm5217 = vcmask 48128
        %v5218 = vsel %vm5217, %v5216, %v4916
        %vm5219 = vcmask 52224
        %5220 = vst.msk [vmem:[%s736] sm:$0xf] %vm5219, %v5218
        %v5221 = vsel %vm5207, %v1834, %v2396
        %v5222 = vsel %vm5209, %v5221, %v2958
        %v5223 = vsel %vm5211, %v5222, %v3520
        %v5224 = vsel %vm5213, %v5223, %v4082
        %v5225 = vsel %vm5215, %v5224, %v4644
        %v5226 = vsel %vm5217, %v5225, %v5206
        %5227 = vst.msk [vmem:[%s743] sm:$0xf] %vm5219, %v5226
        %s5228 = sand.u32 %s303, 1
        %s5229 = scalar_lea.sflag [#allocation5], %s5228
        %s5230 = sand.u32 %s303, 1
        %s5231 = smul.addr %s5230, 4
        %s5232 = scalar_lea.vmem [#allocation20], %s5231
        %s5233 = sand.u32 %s329, 1
        %s5234 = scalar_lea.sflag [#allocation22], %s5233
        %s5235 = sand.u32 %s329, 1
        %s5236 = smul.addr %s5235, 4
        %s5237 = scalar_lea.vmem [#allocation21], %s5236
        // Predicated region
        $region101: #{tpu_custom_call.1} parent=59 // pred_check
          %p5238 = pneg %p313
        $region102: #{tpu_custom_call.1} parent=59 // pred_check_branch
          %5240 = sbr.rel (%p5238) target = $region104
        $region103: #{tpu_custom_call.1} parent=59 // pred_region
          %5242 = vsyncadd %s5229, 0
          %s5243 = smul.addr %s45, 4
          %s5244 = scalar_lea.hbm %s10, %s5243
          %s5246 = sshll.u32 %s5232, 4
          %s5247 = int_to_ptr.vmem [resolvable:$true] %s5246
          %s5248 = sshll.u32 %s5244, 4
          %s5249 = int_to_ptr.hbm [resolvable:$true] %s5248
          %5251 = dma.vmem_to_hbm [thread:$0]  %s5247, 64, %s5249, %s5229
        $region104: #{tpu_custom_call.1} parent=59 // pred_fallthru
          _
        // Predicated region
        $region105: #{tpu_custom_call.1} parent=59 // pred_check
          %p5252 = pneg %p339
        $region106: #{tpu_custom_call.1} parent=59 // pred_check_branch
          %5254 = sbr.rel (%p5252) target = $region108
        $region107: #{tpu_custom_call.1} parent=59 // pred_region
          %5256 = vsyncadd %s5234, 0
          %s5257 = smul.addr %s45, 4
          %s5258 = scalar_lea.hbm %s11, %s5257
          %s5260 = sshll.u32 %s5237, 4
          %s5261 = int_to_ptr.vmem [resolvable:$true] %s5260
          %s5262 = sshll.u32 %s5258, 4
          %s5263 = int_to_ptr.hbm [resolvable:$true] %s5262
          %5265 = dma.vmem_to_hbm [thread:$0]  %s5261, 64, %s5263, %s5234
        $region108: #{tpu_custom_call.1} parent=59 // pred_fallthru
          _
      $region60: #{tpu_custom_call.1} parent=5 // pred_fallthru
        _
      %p5266 = scmp.le.s32.totalorder 2, %s40
      // Predicated region
      $region109: #{tpu_custom_call.1} parent=5 // pred_check
        %p5267 = pneg %p5266
      $region110: #{tpu_custom_call.1} parent=5 // pred_check_branch
        %5269 = sbr.rel (%p5267) target = $region112
      $region111: #{tpu_custom_call.1} parent=5 // pred_region
        %s5270 = ssub.s32 %s40, 2
        // Predicated region
        $region113: #{tpu_custom_call.1} parent=111 // pred_check
          %p5271 = pneg %p319
        $region114: #{tpu_custom_call.1} parent=111 // pred_check_branch
          %5273 = sbr.rel (%p5271) target = $region116
        $region115: #{tpu_custom_call.1} parent=111 // pred_region
          %s5274 = sand.u32 %s304, 1
          %s5275 = scalar_lea.sflag [#allocation5], %s5274
          %s5276 = sand.u32 %s304, 1
          %s5277 = smul.addr %s5276, 4
          %s5278 = scalar_lea.vmem [#allocation20], %s5277
          %5280 = dma.done %s5275, 64
        $region116: #{tpu_custom_call.1} parent=111 // pred_fallthru
          _
        // Predicated region
        $region117: #{tpu_custom_call.1} parent=111 // pred_check
          %p5281 = pneg %p345
        $region118: #{tpu_custom_call.1} parent=111 // pred_check_branch
          %5283 = sbr.rel (%p5281) target = $region120
        $region119: #{tpu_custom_call.1} parent=111 // pred_region
          %s5284 = sand.u32 %s330, 1
          %s5285 = scalar_lea.sflag [#allocation22], %s5284
          %s5286 = sand.u32 %s330, 1
          %s5287 = smul.addr %s5286, 4
          %s5288 = scalar_lea.vmem [#allocation21], %s5287
          %5290 = dma.done %s5285, 64
        $region120: #{tpu_custom_call.1} parent=111 // pred_fallthru
          _
      $region112: #{tpu_custom_call.1} parent=5 // pred_fallthru
        _
    $region6: #{tpu_custom_call.1} parent=1 // loop_footer
      %s44 = sadd.s32 1, %s40
    $region7: #{tpu_custom_call.1} parent=1 // loop_footer_branch
      %39 = sbr.rel target = $region3
    $region8: #{tpu_custom_call.1} parent=1 // loop_exit
      _
    %5291 = vsyncpa [#allocation4], 1
    %s5292 = scalar_lea.sflag [#allocation4], 1
    %5293 = vsyncpa %s5292, 1
    %5294 = vsyncpa [#allocation7], 1
    %s5295 = scalar_lea.sflag [#allocation7], 1
    %5296 = vsyncpa %s5295, 1
    %5297 = vsyncpa [#allocation10], 1
    %s5298 = scalar_lea.sflag [#allocation10], 1
    %5299 = vsyncpa %s5298, 1
    %5300 = vsyncpa [#allocation13], 1
    %s5301 = scalar_lea.sflag [#allocation13], 1
    %5302 = vsyncpa %s5301, 1
    %5303 = vsyncpa [#allocation16], 1
    %s5304 = scalar_lea.sflag [#allocation16], 1
    %5305 = vsyncpa %s5304, 1
    %5306 = vsyncpa [#allocation19], 1
    %5307 = vsyncpa [#allocation5], 1
    %s5308 = scalar_lea.sflag [#allocation5], 1
    %5309 = vsyncpa %s5308, 1
    %5310 = vsyncpa [#allocation22], 1
    %s5311 = scalar_lea.sflag [#allocation22], 1
    %5312 = vsyncpa %s5311, 1

</llo_original>
